<compile_context>
chip_gen: v7x
topology: tpu7x:2x2x1
jax: 0.10.0
libtpu: 0.0.40
codegen_flags: <defaults>
</compile_context>

<pallas_src>
import functools

import jax
import jax.numpy as jnp
import numpy as np
from jax.experimental import pallas as pl
from jax.experimental.pallas import tpu as pltpu


def _round_up(x, m):
    return ((x + m - 1) // m) * m


def _vmem_limit_bytes():
    """Generation-aware VMEM budget: <= half of physical capacity, capped at 48 MiB."""
    try:
        cap = int(pltpu.get_tpu_info().vmem_capacity_bytes)
    except Exception:
        cap = 128 * 1024 * 1024
    return int(min(48 * 1024 * 1024, max(16 * 1024 * 1024, cap // 2)))


# ---------------------------------------------------------------------------
# Fused conv+BN+ReLU kernel (stride == 1): in-kernel im2col via static tap loop,
# H-tiled output, value-carried f32 accumulator, bf16 output.
# ---------------------------------------------------------------------------
def _fused_conv_bn_kernel(x_ref, w_ref, scale_ref, bias_ref, o_ref, *,
                          KH, KW, dilation, TH, apply_relu):
    # x_ref:     (1, Hp, Wp, Cin)       bf16 padded input image (whole image)
    # w_ref:     (KH*KW, Cin, TN)       bf16 per-tap weights
    # scale_ref: (1, TN)                f32 folded BN scale
    # bias_ref:  (1, TN)                f32 folded BN bias
    # o_ref:     (1, TH, W_out_p, TN)   bf16 output tile for H tile `h`
    h = pl.program_id(2)
    _, _, W_out_p, TN = o_ref.shape
    Cin = x_ref.shape[3]
    M = TH * W_out_p
    h_base = h * TH

    acc = jnp.zeros((M, TN), jnp.float32)
    for kh in range(KH):
        for kw in range(KW):
            # TODO(synk): kw*dilation is not sublane-aligned; avoid the per-tap
            #             relayout via pltpu.roll or host-side KW-shifted copies.
            patch = x_ref[0,
                          pl.ds(h_base + kh * dilation, TH),
                          pl.ds(kw * dilation, W_out_p),
                          :]
            acc = acc + jnp.dot(patch.reshape(M, Cin),
                                w_ref[kh * KW + kw],
                                preferred_element_type=jnp.float32)

    y = acc * scale_ref[...] + bias_ref[...]
    if apply_relu:
        y = jnp.maximum(y, 0.0)
    o_ref[...] = y.reshape(1, TH, W_out_p, TN).astype(o_ref.dtype)


def _conv_bn_fused_nhwc(x_nhwc, weight, scale, bias, *, padding, dilation, relu):
    N, H, W, Cin = x_nhwc.shape
    Cout, _, KH, KW = weight.shape
    H_out = H + 2 * padding - dilation * (KH - 1)
    W_out = W + 2 * padding - dilation * (KW - 1)

    TN = 256 if Cout > 128 else 128           # lane-dense output tile
    Cout_p = _round_up(Cout, TN)
    W_out_p = _round_up(W_out, 16)            # bf16 sublane tile

    # H tile: ~256 flattened rows per matmul keeps the value-carried accumulator
    # and the double-buffered bf16 output block small (v7x: 64 MiB physical VMEM).
    TH = max(1, min(H_out, 256 // W_out_p))
    H_out_p = _round_up(H_out, TH)
    H_tiles = H_out_p // TH

    # bf16, zero-pad spatially (+ alignment pad on the right / bottom).
    x = x_nhwc.astype(jnp.bfloat16)
    xp = jnp.pad(x, ((0, 0),
                     (padding, padding + (H_out_p - H_out)),
                     (padding, padding + (W_out_p - W_out)),
                     (0, 0)))
    Hp, Wp = xp.shape[1], xp.shape[2]

    # (Cout, Cin, KH, KW) -> (KH*KW, Cin, Cout_p) bf16
    w = jnp.transpose(weight, (2, 3, 1, 0)).reshape(KH * KW, Cin, Cout)
    w = jnp.pad(w, ((0, 0), (0, 0), (0, Cout_p - Cout))).astype(jnp.bfloat16)

    scale2d = jnp.pad(scale, (0, Cout_p - Cout)).reshape(1, Cout_p).astype(jnp.float32)
    bias2d = jnp.pad(bias, (0, Cout_p - Cout)).reshape(1, Cout_p).astype(jnp.float32)

    kernel = functools.partial(_fused_conv_bn_kernel, KH=KH, KW=KW,
                               dilation=dilation, TH=TH, apply_relu=relu)

    flops = 2 * N * H_out * W_out * KH * KW * Cin * Cout
    bytes_accessed = (xp.size * 2 + w.size * 2 + scale2d.size * 8
                      + N * H_out_p * W_out_p * Cout_p * 2)

    # TODO(synk): the whole padded image is a single VMEM block; very large maps
    #             would also need an input H-tile (with halo) to stay within VMEM.
    out = pl.pallas_call(
        kernel,
        out_shape=jax.ShapeDtypeStruct((N, H_out_p, W_out_p, Cout_p), jnp.bfloat16),
        grid_spec=pltpu.PrefetchScalarGridSpec(
            num_scalar_prefetch=0,
            grid=(N, Cout_p // TN, H_tiles),
            in_specs=[
                pl.BlockSpec((1, Hp, Wp, Cin), lambda n, j, h: (n, 0, 0, 0)),
                pl.BlockSpec((KH * KW, Cin, TN), lambda n, j, h: (0, 0, j)),
                pl.BlockSpec((1, TN), lambda n, j, h: (0, j)),
                pl.BlockSpec((1, TN), lambda n, j, h: (0, j)),
            ],
            out_specs=pl.BlockSpec((1, TH, W_out_p, TN),
                                   lambda n, j, h: (n, h, 0, j)),
        ),
        compiler_params=pltpu.CompilerParams(
            dimension_semantics=("parallel", "parallel", "parallel"),
            vmem_limit_bytes=_vmem_limit_bytes()),
        cost_estimate=pl.CostEstimate(flops=int(flops), transcendentals=0,
                                      bytes_accessed=int(bytes_accessed)),
    )(xp, w, scale2d, bias2d)

    return out[:, :H_out, :W_out, :Cout]      # NHWC bf16


# ---------------------------------------------------------------------------
# Fallback (stride != 1): host-side im2col + K-tiled matmul with fused epilogue.
# ---------------------------------------------------------------------------
def _matmul_bn_kernel(p_ref, w_ref, scale_ref, bias_ref, o_ref, acc_ref, *,
                      apply_relu):
    @pl.when(pl.program_id(2) == 0)
    def _init():
        acc_ref[...] = jnp.zeros_like(acc_ref)

    acc_ref[...] += jnp.dot(p_ref[...], w_ref[...],
                            preferred_element_type=jnp.float32)

    @pl.when(pl.program_id(2) == pl.num_programs(2) - 1)
    def _finalize():
        y = acc_ref[...] * scale_ref[...] + bias_ref[...]
        if apply_relu:
            y = jnp.maximum(y, 0.0)
        o_ref[...] = y.astype(o_ref.dtype)


def _conv_bn_im2col_nhwc(x_nhwc, weight, scale, bias, *, stride, padding,
                         dilation, relu):
    # TODO(synk): stride > 1 still uses host-side im2col (KH*KW x blow-up of the
    #             output-resolution map); a space-to-depth repack into the fused
    #             stride-1 tap-loop path would remove it.
    N, H, W, Cin = x_nhwc.shape
    Cout, _, KH, KW = weight.shape
    H_out = (H + 2 * padding - dilation * (KH - 1) - 1) // stride + 1
    W_out = (W + 2 * padding - dilation * (KW - 1) - 1) // stride + 1

    x = x_nhwc.astype(jnp.bfloat16)
    xp = jnp.pad(x, ((0, 0), (padding, padding), (padding, padding), (0, 0)))

    slices = []
    for kh in range(KH):
        h0 = kh * dilation
        h1 = h0 + stride * (H_out - 1) + 1
        for kw in range(KW):
            w0 = kw * dilation
            w1 = w0 + stride * (W_out - 1) + 1
            slices.append(xp[:, h0:h1:stride, w0:w1:stride, :])
    Kdim = KH * KW * Cin
    M = N * H_out * W_out
    patches = jnp.concatenate(slices, axis=-1).reshape(M, Kdim)

    w_mat = jnp.transpose(weight, (2, 3, 1, 0)).reshape(Kdim, Cout).astype(jnp.bfloat16)

    TN = 256 if Cout > 128 else 128
    Cout_p = _round_up(Cout, TN)
    w_mat = jnp.pad(w_mat, ((0, 0), (0, Cout_p - Cout)))
    scale2d = jnp.pad(scale, (0, Cout_p - Cout)).reshape(1, Cout_p).astype(jnp.float32)
    bias2d = jnp.pad(bias, (0, Cout_p - Cout)).reshape(1, Cout_p).astype(jnp.float32)

    tm = min(1024, _round_up(M, 8))
    M_pad = _round_up(M, tm)
    # Pick tk to minimize K zero-padding (instead of blindly rounding K up to 512).
    n_k = max(1, (Kdim + 511) // 512)
    tk = _round_up(-(-Kdim // n_k), 128)
    K_pad = _round_up(Kdim, tk)

    patches = jnp.pad(patches, ((0, M_pad - M), (0, K_pad - Kdim)))
    w_mat = jnp.pad(w_mat, ((0, K_pad - Kdim), (0, 0)))

    flops = 2 * M * Kdim * Cout
    bytes_accessed = patches.size * 2 + w_mat.size * 2 + M_pad * Cout_p * 2

    kernel = functools.partial(_matmul_bn_kernel, apply_relu=relu)
    out_flat = pl.pallas_call(
        kernel,
        out_shape=jax.ShapeDtypeStruct((M_pad, Cout_p), jnp.bfloat16),
        grid_spec=pltpu.PrefetchScalarGridSpec(
            num_scalar_prefetch=0,
            grid=(M_pad // tm, Cout_p // TN, K_pad // tk),
            in_specs=[
                pl.BlockSpec((tm, tk), lambda i, j, k: (i, k)),
                pl.BlockSpec((tk, TN), lambda i, j, k: (k, j)),
                pl.BlockSpec((1, TN), lambda i, j, k: (0, j)),
                pl.BlockSpec((1, TN), lambda i, j, k: (0, j)),
            ],
            out_specs=pl.BlockSpec((tm, TN), lambda i, j, k: (i, j)),
            scratch_shapes=[pltpu.VMEM((tm, TN), jnp.float32)],
        ),
        compiler_params=pltpu.CompilerParams(
            dimension_semantics=("parallel", "parallel", "arbitrary"),
            vmem_limit_bytes=_vmem_limit_bytes()),
        cost_estimate=pl.CostEstimate(flops=int(flops), transcendentals=0,
                                      bytes_accessed=int(bytes_accessed)),
    )(patches, w_mat, scale2d, bias2d)

    out = out_flat[:M].reshape(N, H_out, W_out, Cout_p)[..., :Cout]
    return out                                 # NHWC bf16


# ---------------------------------------------------------------------------
# Public entry points
# ---------------------------------------------------------------------------
def basic_conv2d_nhwc(x_nhwc, weight, gamma, beta, running_mean, running_var,
                      *, stride=1, padding=0, dilation=1, relu=False, eps=1e-5):
    """BasicConv2d on NHWC input; returns NHWC bf16 (keep NHWC/bf16 across layers)."""
    scale = (gamma / jnp.sqrt(running_var + eps)).astype(jnp.float32)   # folded BN (eval)
    bias = (beta - running_mean * scale).astype(jnp.float32)
    if stride == 1:
        # TODO(synk): small-Cin (stem) layers underfill the MXU contraction depth;
        #             routing them through a deeper-K (im2col) matmul would help.
        return _conv_bn_fused_nhwc(x_nhwc, weight, scale, bias,
                                   padding=padding, dilation=dilation, relu=relu)
    return _conv_bn_im2col_nhwc(x_nhwc, weight, scale, bias, stride=stride,
                                padding=padding, dilation=dilation, relu=relu)


def basic_conv2d(x_nchw, weight, gamma, beta, running_mean, running_var,
                 *, stride=1, padding=0, dilation=1, relu=False, eps=1e-5):
    """PyTorch-compatible interface: NCHW f32 in, NCHW f32 out."""
    x_nhwc = jnp.transpose(x_nchw, (0, 2, 3, 1))
    y = basic_conv2d_nhwc(x_nhwc, weight, gamma, beta, running_mean, running_var,
                          stride=stride, padding=padding, dilation=dilation,
                          relu=relu, eps=eps)
    return jnp.transpose(y, (0, 3, 1, 2)).astype(jnp.float32)


# ---------------------------------------------------------------------------
# Reference + self-test
# ---------------------------------------------------------------------------
def _reference(x_nchw, weight, gamma, beta, mean, var, *, stride, padding,
               dilation, relu, eps=1e-5):
    y = jax.lax.conv_general_dilated(
        x_nchw.astype(jnp.float32), weight.astype(jnp.float32),
        window_strides=(stride, stride),
        padding=[(padding, padding), (padding, padding)],
        rhs_dilation=(dilation, dilation),
        dimension_numbers=("NCHW", "OIHW", "NCHW"))
    scale = (gamma / jnp.sqrt(var + eps)).reshape(1, -1, 1, 1)
    bias = (beta - mean * gamma / jnp.sqrt(var + eps)).reshape(1, -1, 1, 1)
    y = y * scale + bias
    if relu:
        y = jnp.maximum(y, 0.0)
    return y


def _make_params(key, Cin, Cout, K):
    k1, k2, k3, k4, k5 = jax.random.split(key, 5)
    weight = jax.random.normal(k1, (Cout, Cin, K, K), dtype=jnp.float32) * 0.1
    gamma = jax.random.normal(k2, (Cout,), dtype=jnp.float32) * 0.1 + 1.0
    beta = jax.random.normal(k3, (Cout,), dtype=jnp.float32) * 0.1
    mean = jax.random.normal(k4, (Cout,), dtype=jnp.float32) * 0.1
    var = jax.random.uniform(k5, (Cout,), dtype=jnp.float32, minval=0.5, maxval=1.5)
    return weight, gamma, beta, mean, var


if __name__ == "__main__":
    key = jax.random.PRNGKey(0)
    cases = [
        # (N, Cin, H, W, Cout, K, stride, padding, dilation, relu)
        (2, 4, 16, 16, 8, 3, 1, 1, 1, True),    # fused stride-1 path (module demo)
        (2, 4, 16, 16, 8, 3, 2, 1, 1, False),   # strided -> im2col fallback path
        (1, 4, 20, 20, 8, 3, 1, 1, 1, True),    # fused path, multi H-tile + W/H padding
    ]
    for idx, (N, Cin, H, W, Cout, K, stride, padding, dilation, relu) in enumerate(cases):
        kx, kp, key = jax.random.split(key, 3)
        x = jax.random.normal(kx, (N, Cin, H, W), dtype=jnp.float32)
        weight, gamma, beta, mean, var = _make_params(kp, Cin, Cout, K)

        out = basic_conv2d(x, weight, gamma, beta, mean, var,
                           stride=stride, padding=padding, dilation=dilation,
                           relu=relu)
        out = jax.block_until_ready(out)

        ref = _reference(x, weight, gamma, beta, mean, var,
                         stride=stride, padding=padding, dilation=dilation,
                         relu=relu)
        # bf16 MXU operands + bf16 output -> looser tolerance than pure f32.
        np.testing.assert_allclose(np.asarray(out), np.asarray(ref),
                                   rtol=2e-2, atol=3e-2,
                                   err_msg=f"case {idx} mismatch")
        assert out.shape == ref.shape, f"case {idx}: {out.shape} vs {ref.shape}"
    print("KERNEL_OK")
</pallas_src>

<mosaic_0001>
module attributes {stable_mosaic.version = 11 : i64} {
  func.func @_fused_conv_bn_kernel(%arg0: i32, %arg1: i32, %arg2: i32, %arg3: memref<1x18x18x4xbf16, #tpu.memory_space<vmem>>, %arg4: memref<9x4x128xbf16, #tpu.memory_space<vmem>>, %arg5: memref<1x128xf32, #tpu.memory_space<vmem>>, %arg6: memref<1x128xf32, #tpu.memory_space<vmem>>, %arg7: memref<1x16x16x128xbf16, #tpu.memory_space<vmem>>) attributes {dimension_semantics = [#tpu.dimension_semantics<parallel>, #tpu.dimension_semantics<parallel>, #tpu.dimension_semantics<parallel>], iteration_bounds = array<i64: 2, 1, 1>, scalar_prefetch = 0 : i64, scratch_operands = 0 : i64, tpu.core_type = #tpu.core_type<tc>, window_params = [{transform_indices = @transform_0, window_bounds = array<i64: 1, 18, 18, 4>}, {transform_indices = @transform_1, window_bounds = array<i64: 9, 4, 128>}, {transform_indices = @transform_2, window_bounds = array<i64: 1, 128>}, {transform_indices = @transform_3, window_bounds = array<i64: 1, 128>}, {transform_indices = @transform_4, window_bounds = array<i64: 1, 16, 16, 128>}]} {
    %c16_i32 = arith.constant 16 : i32
    %0 = arith.muli %arg2, %c16_i32 : i32
    %cst = arith.constant 0.000000e+00 : f32
    %1 = vector.broadcast %cst : f32 to vector<256x128xf32>
    %c0_i32 = arith.constant 0 : i32
    %2 = arith.addi %0, %c0_i32 : i32
    %c0 = arith.constant 0 : index
    %3 = arith.index_cast %2 : i32 to index
    %c0_0 = arith.constant 0 : index
    %c0_1 = arith.constant 0 : index
    %4 = vector.load %arg3[%c0, %3, %c0_0, %c0_1] : memref<1x18x18x4xbf16, #tpu.memory_space<vmem>>, vector<1x16x16x4xbf16>
    %5 = vector.shape_cast %4 : vector<1x16x16x4xbf16> to vector<16x16x4xbf16>
    %6 = vector.shape_cast %5 : vector<16x16x4xbf16> to vector<256x4xbf16>
    %c0_2 = arith.constant 0 : index
    %c0_3 = arith.constant 0 : index
    %c0_4 = arith.constant 0 : index
    %7 = vector.load %arg4[%c0_2, %c0_3, %c0_4] : memref<9x4x128xbf16, #tpu.memory_space<vmem>>, vector<1x4x128xbf16>
    %8 = vector.shape_cast %7 : vector<1x4x128xbf16> to vector<4x128xbf16>
    %cst_5 = arith.constant dense<0.000000e+00> : vector<256x128xf32>
    %9 = tpu.matmul %6, %8, %cst_5 {dimension_numbers = #tpu.dot_dimension_numbers<[1], [0], [0], [1], [0, 0, 1, 1], [], []>} : vector<256x4xbf16>, vector<4x128xbf16>, vector<256x128xf32> -> vector<256x128xf32>
    %10 = arith.addf %1, %9 : vector<256x128xf32>
    %c0_i32_6 = arith.constant 0 : i32
    %11 = arith.addi %0, %c0_i32_6 : i32
    %c0_7 = arith.constant 0 : index
    %12 = arith.index_cast %11 : i32 to index
    %c1 = arith.constant 1 : index
    %c0_8 = arith.constant 0 : index
    %13 = vector.load %arg3[%c0_7, %12, %c1, %c0_8] : memref<1x18x18x4xbf16, #tpu.memory_space<vmem>>, vector<1x16x16x4xbf16>
    %14 = vector.shape_cast %13 : vector<1x16x16x4xbf16> to vector<16x16x4xbf16>
    %15 = vector.shape_cast %14 : vector<16x16x4xbf16> to vector<256x4xbf16>
    %c1_9 = arith.constant 1 : index
    %c0_10 = arith.constant 0 : index
    %c0_11 = arith.constant 0 : index
    %16 = vector.load %arg4[%c1_9, %c0_10, %c0_11] : memref<9x4x128xbf16, #tpu.memory_space<vmem>>, vector<1x4x128xbf16>
    %17 = vector.shape_cast %16 : vector<1x4x128xbf16> to vector<4x128xbf16>
    %cst_12 = arith.constant dense<0.000000e+00> : vector<256x128xf32>
    %18 = tpu.matmul %15, %17, %cst_12 {dimension_numbers = #tpu.dot_dimension_numbers<[1], [0], [0], [1], [0, 0, 1, 1], [], []>} : vector<256x4xbf16>, vector<4x128xbf16>, vector<256x128xf32> -> vector<256x128xf32>
    %19 = arith.addf %10, %18 : vector<256x128xf32>
    %c0_i32_13 = arith.constant 0 : i32
    %20 = arith.addi %0, %c0_i32_13 : i32
    %c0_14 = arith.constant 0 : index
    %21 = arith.index_cast %20 : i32 to index
    %c2 = arith.constant 2 : index
    %c0_15 = arith.constant 0 : index
    %22 = vector.load %arg3[%c0_14, %21, %c2, %c0_15] : memref<1x18x18x4xbf16, #tpu.memory_space<vmem>>, vector<1x16x16x4xbf16>
    %23 = vector.shape_cast %22 : vector<1x16x16x4xbf16> to vector<16x16x4xbf16>
    %24 = vector.shape_cast %23 : vector<16x16x4xbf16> to vector<256x4xbf16>
    %c2_16 = arith.constant 2 : index
    %c0_17 = arith.constant 0 : index
    %c0_18 = arith.constant 0 : index
    %25 = vector.load %arg4[%c2_16, %c0_17, %c0_18] : memref<9x4x128xbf16, #tpu.memory_space<vmem>>, vector<1x4x128xbf16>
    %26 = vector.shape_cast %25 : vector<1x4x128xbf16> to vector<4x128xbf16>
    %cst_19 = arith.constant dense<0.000000e+00> : vector<256x128xf32>
    %27 = tpu.matmul %24, %26, %cst_19 {dimension_numbers = #tpu.dot_dimension_numbers<[1], [0], [0], [1], [0, 0, 1, 1], [], []>} : vector<256x4xbf16>, vector<4x128xbf16>, vector<256x128xf32> -> vector<256x128xf32>
    %28 = arith.addf %19, %27 : vector<256x128xf32>
    %c1_i32 = arith.constant 1 : i32
    %29 = arith.addi %0, %c1_i32 : i32
    %c0_20 = arith.constant 0 : index
    %30 = arith.index_cast %29 : i32 to index
    %c0_21 = arith.constant 0 : index
    %c0_22 = arith.constant 0 : index
    %31 = vector.load %arg3[%c0_20, %30, %c0_21, %c0_22] : memref<1x18x18x4xbf16, #tpu.memory_space<vmem>>, vector<1x16x16x4xbf16>
    %32 = vector.shape_cast %31 : vector<1x16x16x4xbf16> to vector<16x16x4xbf16>
    %33 = vector.shape_cast %32 : vector<16x16x4xbf16> to vector<256x4xbf16>
    %c3 = arith.constant 3 : index
    %c0_23 = arith.constant 0 : index
    %c0_24 = arith.constant 0 : index
    %34 = vector.load %arg4[%c3, %c0_23, %c0_24] : memref<9x4x128xbf16, #tpu.memory_space<vmem>>, vector<1x4x128xbf16>
    %35 = vector.shape_cast %34 : vector<1x4x128xbf16> to vector<4x128xbf16>
    %cst_25 = arith.constant dense<0.000000e+00> : vector<256x128xf32>
    %36 = tpu.matmul %33, %35, %cst_25 {dimension_numbers = #tpu.dot_dimension_numbers<[1], [0], [0], [1], [0, 0, 1, 1], [], []>} : vector<256x4xbf16>, vector<4x128xbf16>, vector<256x128xf32> -> vector<256x128xf32>
    %37 = arith.addf %28, %36 : vector<256x128xf32>
    %c1_i32_26 = arith.constant 1 : i32
    %38 = arith.addi %0, %c1_i32_26 : i32
    %c0_27 = arith.constant 0 : index
    %39 = arith.index_cast %38 : i32 to index
    %c1_28 = arith.constant 1 : index
    %c0_29 = arith.constant 0 : index
    %40 = vector.load %arg3[%c0_27, %39, %c1_28, %c0_29] : memref<1x18x18x4xbf16, #tpu.memory_space<vmem>>, vector<1x16x16x4xbf16>
    %41 = vector.shape_cast %40 : vector<1x16x16x4xbf16> to vector<16x16x4xbf16>
    %42 = vector.shape_cast %41 : vector<16x16x4xbf16> to vector<256x4xbf16>
    %c4 = arith.constant 4 : index
    %c0_30 = arith.constant 0 : index
    %c0_31 = arith.constant 0 : index
    %43 = vector.load %arg4[%c4, %c0_30, %c0_31] : memref<9x4x128xbf16, #tpu.memory_space<vmem>>, vector<1x4x128xbf16>
    %44 = vector.shape_cast %43 : vector<1x4x128xbf16> to vector<4x128xbf16>
    %cst_32 = arith.constant dense<0.000000e+00> : vector<256x128xf32>
    %45 = tpu.matmul %42, %44, %cst_32 {dimension_numbers = #tpu.dot_dimension_numbers<[1], [0], [0], [1], [0, 0, 1, 1], [], []>} : vector<256x4xbf16>, vector<4x128xbf16>, vector<256x128xf32> -> vector<256x128xf32>
    %46 = arith.addf %37, %45 : vector<256x128xf32>
    %c1_i32_33 = arith.constant 1 : i32
    %47 = arith.addi %0, %c1_i32_33 : i32
    %c0_34 = arith.constant 0 : index
    %48 = arith.index_cast %47 : i32 to index
    %c2_35 = arith.constant 2 : index
    %c0_36 = arith.constant 0 : index
    %49 = vector.load %arg3[%c0_34, %48, %c2_35, %c0_36] : memref<1x18x18x4xbf16, #tpu.memory_space<vmem>>, vector<1x16x16x4xbf16>
    %50 = vector.shape_cast %49 : vector<1x16x16x4xbf16> to vector<16x16x4xbf16>
    %51 = vector.shape_cast %50 : vector<16x16x4xbf16> to vector<256x4xbf16>
    %c5 = arith.constant 5 : index
    %c0_37 = arith.constant 0 : index
    %c0_38 = arith.constant 0 : index
    %52 = vector.load %arg4[%c5, %c0_37, %c0_38] : memref<9x4x128xbf16, #tpu.memory_space<vmem>>, vector<1x4x128xbf16>
    %53 = vector.shape_cast %52 : vector<1x4x128xbf16> to vector<4x128xbf16>
    %cst_39 = arith.constant dense<0.000000e+00> : vector<256x128xf32>
    %54 = tpu.matmul %51, %53, %cst_39 {dimension_numbers = #tpu.dot_dimension_numbers<[1], [0], [0], [1], [0, 0, 1, 1], [], []>} : vector<256x4xbf16>, vector<4x128xbf16>, vector<256x128xf32> -> vector<256x128xf32>
    %55 = arith.addf %46, %54 : vector<256x128xf32>
    %c2_i32 = arith.constant 2 : i32
    %56 = arith.addi %0, %c2_i32 : i32
    %c0_40 = arith.constant 0 : index
    %57 = arith.index_cast %56 : i32 to index
    %c0_41 = arith.constant 0 : index
    %c0_42 = arith.constant 0 : index
    %58 = vector.load %arg3[%c0_40, %57, %c0_41, %c0_42] : memref<1x18x18x4xbf16, #tpu.memory_space<vmem>>, vector<1x16x16x4xbf16>
    %59 = vector.shape_cast %58 : vector<1x16x16x4xbf16> to vector<16x16x4xbf16>
    %60 = vector.shape_cast %59 : vector<16x16x4xbf16> to vector<256x4xbf16>
    %c6 = arith.constant 6 : index
    %c0_43 = arith.constant 0 : index
    %c0_44 = arith.constant 0 : index
    %61 = vector.load %arg4[%c6, %c0_43, %c0_44] : memref<9x4x128xbf16, #tpu.memory_space<vmem>>, vector<1x4x128xbf16>
    %62 = vector.shape_cast %61 : vector<1x4x128xbf16> to vector<4x128xbf16>
    %cst_45 = arith.constant dense<0.000000e+00> : vector<256x128xf32>
    %63 = tpu.matmul %60, %62, %cst_45 {dimension_numbers = #tpu.dot_dimension_numbers<[1], [0], [0], [1], [0, 0, 1, 1], [], []>} : vector<256x4xbf16>, vector<4x128xbf16>, vector<256x128xf32> -> vector<256x128xf32>
    %64 = arith.addf %55, %63 : vector<256x128xf32>
    %c2_i32_46 = arith.constant 2 : i32
    %65 = arith.addi %0, %c2_i32_46 : i32
    %c0_47 = arith.constant 0 : index
    %66 = arith.index_cast %65 : i32 to index
    %c1_48 = arith.constant 1 : index
    %c0_49 = arith.constant 0 : index
    %67 = vector.load %arg3[%c0_47, %66, %c1_48, %c0_49] : memref<1x18x18x4xbf16, #tpu.memory_space<vmem>>, vector<1x16x16x4xbf16>
    %68 = vector.shape_cast %67 : vector<1x16x16x4xbf16> to vector<16x16x4xbf16>
    %69 = vector.shape_cast %68 : vector<16x16x4xbf16> to vector<256x4xbf16>
    %c7 = arith.constant 7 : index
    %c0_50 = arith.constant 0 : index
    %c0_51 = arith.constant 0 : index
    %70 = vector.load %arg4[%c7, %c0_50, %c0_51] : memref<9x4x128xbf16, #tpu.memory_space<vmem>>, vector<1x4x128xbf16>
    %71 = vector.shape_cast %70 : vector<1x4x128xbf16> to vector<4x128xbf16>
    %cst_52 = arith.constant dense<0.000000e+00> : vector<256x128xf32>
    %72 = tpu.matmul %69, %71, %cst_52 {dimension_numbers = #tpu.dot_dimension_numbers<[1], [0], [0], [1], [0, 0, 1, 1], [], []>} : vector<256x4xbf16>, vector<4x128xbf16>, vector<256x128xf32> -> vector<256x128xf32>
    %73 = arith.addf %64, %72 : vector<256x128xf32>
    %c2_i32_53 = arith.constant 2 : i32
    %74 = arith.addi %0, %c2_i32_53 : i32
    %c0_54 = arith.constant 0 : index
    %75 = arith.index_cast %74 : i32 to index
    %c2_55 = arith.constant 2 : index
    %c0_56 = arith.constant 0 : index
    %76 = vector.load %arg3[%c0_54, %75, %c2_55, %c0_56] : memref<1x18x18x4xbf16, #tpu.memory_space<vmem>>, vector<1x16x16x4xbf16>
    %77 = vector.shape_cast %76 : vector<1x16x16x4xbf16> to vector<16x16x4xbf16>
    %78 = vector.shape_cast %77 : vector<16x16x4xbf16> to vector<256x4xbf16>
    %c8 = arith.constant 8 : index
    %c0_57 = arith.constant 0 : index
    %c0_58 = arith.constant 0 : index
    %79 = vector.load %arg4[%c8, %c0_57, %c0_58] : memref<9x4x128xbf16, #tpu.memory_space<vmem>>, vector<1x4x128xbf16>
    %80 = vector.shape_cast %79 : vector<1x4x128xbf16> to vector<4x128xbf16>
    %cst_59 = arith.constant dense<0.000000e+00> : vector<256x128xf32>
    %81 = tpu.matmul %78, %80, %cst_59 {dimension_numbers = #tpu.dot_dimension_numbers<[1], [0], [0], [1], [0, 0, 1, 1], [], []>} : vector<256x4xbf16>, vector<4x128xbf16>, vector<256x128xf32> -> vector<256x128xf32>
    %82 = arith.addf %73, %81 : vector<256x128xf32>
    %c0_60 = arith.constant 0 : index
    %c0_61 = arith.constant 0 : index
    %83 = vector.load %arg5[%c0_60, %c0_61] : memref<1x128xf32, #tpu.memory_space<vmem>>, vector<1x128xf32>
    %84 = vector.broadcast %83 : vector<1x128xf32> to vector<256x128xf32>
    %85 = arith.mulf %82, %84 : vector<256x128xf32>
    %c0_62 = arith.constant 0 : index
    %c0_63 = arith.constant 0 : index
    %86 = vector.load %arg6[%c0_62, %c0_63] : memref<1x128xf32, #tpu.memory_space<vmem>>, vector<1x128xf32>
    %87 = vector.broadcast %86 : vector<1x128xf32> to vector<256x128xf32>
    %88 = arith.addf %85, %87 : vector<256x128xf32>
    %cst_64 = arith.constant 0.000000e+00 : f32
    %89 = vector.broadcast %cst_64 : f32 to vector<256x128xf32>
    %90 = arith.maximumf %88, %89 : vector<256x128xf32>
    %91 = vector.shape_cast %90 : vector<256x128xf32> to vector<1x16x16x128xf32>
    %92 = arith.truncf %91 : vector<1x16x16x128xf32> to vector<1x16x16x128xbf16>
    %c0_65 = arith.constant 0 : index
    %c0_66 = arith.constant 0 : index
    %c0_67 = arith.constant 0 : index
    %c0_68 = arith.constant 0 : index
    %93 = vector.load %arg7[%c0_65, %c0_66, %c0_67, %c0_68] : memref<1x16x16x128xbf16, #tpu.memory_space<vmem>>, vector<1x16x16x128xbf16>
    tpu.vector_store %arg7[%c0_65, %c0_66, %c0_67, %c0_68], %92 {strides = array<i32>} : memref<1x16x16x128xbf16, #tpu.memory_space<vmem>>, vector<1x16x16x128xbf16>,
    return
  }
  func.func @transform_0(%arg0: i32, %arg1: i32, %arg2: i32) -> (i32, i32, i32, i32) {
    %c0_i32 = arith.constant 0 : i32
    %c0_i32_0 = arith.constant 0 : i32
    %c0_i32_1 = arith.constant 0 : i32
    %c0_i32_2 = arith.constant 0 : i32
    return %arg0, %c0_i32, %c0_i32_0, %c0_i32_1 : i32, i32, i32, i32
  }
  func.func @transform_1(%arg0: i32, %arg1: i32, %arg2: i32) -> (i32, i32, i32) {
    %c0_i32 = arith.constant 0 : i32
    %c0_i32_0 = arith.constant 0 : i32
    %c0_i32_1 = arith.constant 0 : i32
    return %c0_i32, %c0_i32_0, %arg1 : i32, i32, i32
  }
  func.func @transform_2(%arg0: i32, %arg1: i32, %arg2: i32) -> (i32, i32) {
    %c0_i32 = arith.constant 0 : i32
    %c0_i32_0 = arith.constant 0 : i32
    return %c0_i32, %arg1 : i32, i32
  }
  func.func @transform_3(%arg0: i32, %arg1: i32, %arg2: i32) -> (i32, i32) {
    %c0_i32 = arith.constant 0 : i32
    %c0_i32_0 = arith.constant 0 : i32
    return %c0_i32, %arg1 : i32, i32
  }
  func.func @transform_4(%arg0: i32, %arg1: i32, %arg2: i32) -> (i32, i32, i32, i32) {
    %c0_i32 = arith.constant 0 : i32
    %c0_i32_0 = arith.constant 0 : i32
    return %arg0, %arg2, %c0_i32, %arg1 : i32, i32, i32, i32
  }
}

</mosaic_0001>

<llo_original>
// kernel: tpu_custom_call.1
$region0: #{tpu_custom_call.1}
  #allocation0 [shape = 'u32[]', space=smem, size = 0x4, offset = 0x4, fixed_abs, tag = 'smem constant byte address 0x4 - core index']
  #allocation1 [shape = 'u32[144,128]{1,0:T(1,128)}', space=vmem, size = 0x12000, scoped, tag = 'internal scratch']
  %s0 = inlined_call_operand.vmem [shape: bf16[2,18,18,4], index: 0, kind: input, shape index: {}]
  %s1 = inlined_call_operand.vmem [shape: bf16[9,4,128], index: 1, kind: input, shape index: {}]
  %s2 = inlined_call_operand.vmem [shape: f32[1,128], index: 2, kind: input, shape index: {}]
  %s3 = inlined_call_operand.vmem [shape: f32[1,128], index: 3, kind: input, shape index: {}]
  %s4 = inlined_call_operand.hbm [shape: bf16[2,16,16,128], index: 4, kind: output, shape index: {}]
  %s5 = sld [smem:[#allocation0]]
  $region49: #{tpu_custom_call.1} parent=0
    _
  %s7 = ssub.s32 1, %s5
  %s8 = scalar_select 0, %s7, %s5
  $region1: #{tpu_custom_call.1} parent=0
    #allocation2 [shape = 'u8[131072]{0}', space=vmem, size = 0x20000, scoped, tag = 'output window, operand 0']
    #allocation3 [shape = 's32[2]{0}', space=sflag, size = 0x8, scoped, tag = 'scoped memory for tpu_custom_call.1']
    %9 = vsyncpa [#allocation3], 0
    %s10 = scalar_lea.sflag [#allocation3], 1
    %11 = vsyncpa %s10, 0
    loop: start=0, step=1, limit=4
    $region2: #{tpu_custom_call.1} parent=1 // loop_pre_header
      _
    $region3: #{tpu_custom_call.1} parent=1 // loop_header
      %s13 = sphi 0, %s17
      %p14 = scmp.ge.s32.totalorder %s13, 4
      %s20 = sphi 0, %s39
      %s21 = sphi 0, %s35
      %s22 = sphi 0, %s31
      %s23 = sphi 0, %s20
      %s24 = sphi 0, %s21
      %s25 = sphi 0, %s22
      %s26 = sphi 0, %s23
      %s27 = sphi 0, %s24
      %s28 = sphi 0, %s25
      %s42 = sphi 0, %s44
      %s45 = sphi 0, %s42
      %s46 = sphi 0, %s45
      %s62 = sphi 0, %s46
      %s68 = sphi 0, %s70
      %s71 = sphi 0, %s68
      %s72 = sphi 0, %s71
      %s88 = sphi 0, %s72
      %s94 = sphi 0, %s96
      %s97 = sphi 0, %s94
      %s98 = sphi 0, %s97
      %s114 = sphi 0, %s98
      %s120 = sphi 0, %s122
      %s123 = sphi 0, %s120
      %s124 = sphi 0, %s123
      %s140 = sphi 0, %s124
      %s150 = sphi 0, %s152
      %s153 = sphi 0, %s150
      %s154 = sphi 0, %s153
      %s170 = sphi 0, %s154
    $region4: #{tpu_custom_call.1} parent=1 // loop_header_branch
      %16 = sbr.rel (%p14) target = $region8
    $region5: #{tpu_custom_call.1} parent=1 // loop_body
      %s18 = ssub.s32 %s13, 1
      %s19 = ssub.s32 %s13, 2
      %s29 = sadd.s32 1, %s22
      %p30 = scmp.ge.s32.totalorder %s29, 1
      %s31 = scalar_select %p30, 0, %s29
      %s32 = sadd.s32 1, %s21
      %s33 = scalar_select %p30, %s32, %s21
      %p34 = scmp.ge.s32.totalorder %s33, 1
      %s35 = scalar_select %p34, 0, %s33
      %s36 = sadd.s32 1, %s20
      %s37 = scalar_select %p34, %s36, %s20
      %p38 = scmp.ge.s32.totalorder %s37, 2
      %s39 = scalar_select %p38, 0, %s37
      %s40 = ssub.s32 %s20, %s39
      %p41 = scmp.eq.s32.totalorder %s40, 0
      %s43 = sadd.s32 %s42, 1
      %s44 = scalar_select %p41, %s42, %s43
      %p47 = pneg %p41
      %p48 = scmp.eq.s32.totalorder %s13, 1
      %p49 = por %p47, %p48
      %p50 = scmp.ne.s32.totalorder %s42, %s45
      %p51 = scmp.eq.s32.totalorder %s13, 0
      %p52 = por %p50, %p51
      %p53 = scmp.ne.s32.totalorder %s42, %s45
      %p54 = scmp.eq.s32.totalorder %s18, 1
      %p55 = por %p53, %p54
      %p56 = scmp.ne.s32.totalorder %s45, %s46
      %p57 = scmp.eq.s32.totalorder %s18, 0
      %p58 = por %p56, %p57
      %p59 = scmp.ne.s32.totalorder %s45, %s46
      %p60 = scmp.eq.s32.totalorder %s19, 1
      %p61 = por %p59, %p60
      %p63 = scmp.ne.s32.totalorder %s46, %s62
      %p64 = scmp.eq.s32.totalorder %s19, 0
      %p65 = por %p63, %p64
      %s66 = ssub.s32 %s21, %s35
      %p67 = scmp.eq.s32.totalorder %s66, 0
      %s69 = sadd.s32 %s68, 1
      %s70 = scalar_select %p67, %s68, %s69
      %p73 = pneg %p67
      %p74 = scmp.eq.s32.totalorder %s13, 1
      %p75 = por %p73, %p74
      %p76 = scmp.ne.s32.totalorder %s68, %s71
      %p77 = scmp.eq.s32.totalorder %s13, 0
      %p78 = por %p76, %p77
      %p79 = scmp.ne.s32.totalorder %s68, %s71
      %p80 = scmp.eq.s32.totalorder %s18, 1
      %p81 = por %p79, %p80
      %p82 = scmp.ne.s32.totalorder %s71, %s72
      %p83 = scmp.eq.s32.totalorder %s18, 0
      %p84 = por %p82, %p83
      %p85 = scmp.ne.s32.totalorder %s71, %s72
      %p86 = scmp.eq.s32.totalorder %s19, 1
      %p87 = por %p85, %p86
      %p89 = scmp.ne.s32.totalorder %s72, %s88
      %p90 = scmp.eq.s32.totalorder %s19, 0
      %p91 = por %p89, %p90
      %s92 = ssub.s32 %s21, %s35
      %p93 = scmp.eq.s32.totalorder %s92, 0
      %s95 = sadd.s32 %s94, 1
      %s96 = scalar_select %p93, %s94, %s95
      %p99 = pneg %p93
      %p100 = scmp.eq.s32.totalorder %s13, 1
      %p101 = por %p99, %p100
      %p102 = scmp.ne.s32.totalorder %s94, %s97
      %p103 = scmp.eq.s32.totalorder %s13, 0
      %p104 = por %p102, %p103
      %p105 = scmp.ne.s32.totalorder %s94, %s97
      %p106 = scmp.eq.s32.totalorder %s18, 1
      %p107 = por %p105, %p106
      %p108 = scmp.ne.s32.totalorder %s97, %s98
      %p109 = scmp.eq.s32.totalorder %s18, 0
      %p110 = por %p108, %p109
      %p111 = scmp.ne.s32.totalorder %s97, %s98
      %p112 = scmp.eq.s32.totalorder %s19, 1
      %p113 = por %p111, %p112
      %p115 = scmp.ne.s32.totalorder %s98, %s114
      %p116 = scmp.eq.s32.totalorder %s19, 0
      %p117 = por %p115, %p116
      %s118 = ssub.s32 %s21, %s35
      %p119 = scmp.eq.s32.totalorder %s118, 0
      %s121 = sadd.s32 %s120, 1
      %s122 = scalar_select %p119, %s120, %s121
      %p125 = pneg %p119
      %p126 = scmp.eq.s32.totalorder %s13, 1
      %p127 = por %p125, %p126
      %p128 = scmp.ne.s32.totalorder %s120, %s123
      %p129 = scmp.eq.s32.totalorder %s13, 0
      %p130 = por %p128, %p129
      %p131 = scmp.ne.s32.totalorder %s120, %s123
      %p132 = scmp.eq.s32.totalorder %s18, 1
      %p133 = por %p131, %p132
      %p134 = scmp.ne.s32.totalorder %s123, %s124
      %p135 = scmp.eq.s32.totalorder %s18, 0
      %p136 = por %p134, %p135
      %p137 = scmp.ne.s32.totalorder %s123, %s124
      %p138 = scmp.eq.s32.totalorder %s19, 1
      %p139 = por %p137, %p138
      %p141 = scmp.ne.s32.totalorder %s124, %s140
      %p142 = scmp.eq.s32.totalorder %s19, 0
      %p143 = por %p141, %p142
      %s144 = ssub.s32 %s20, %s39
      %s145 = ssub.s32 %s22, %s31
      %s146 = sor.u32 %s144, %s145
      %s147 = ssub.s32 %s21, %s35
      %s148 = sor.u32 %s146, %s147
      %p149 = scmp.eq.s32.totalorder %s148, 0
      %s151 = sadd.s32 %s150, 1
      %s152 = scalar_select %p149, %s150, %s151
      %p155 = pneg %p149
      %p156 = scmp.eq.s32.totalorder %s13, 1
      %p157 = por %p155, %p156
      %p158 = scmp.ne.s32.totalorder %s150, %s153
      %p159 = scmp.eq.s32.totalorder %s13, 0
      %p160 = por %p158, %p159
      %p161 = scmp.ne.s32.totalorder %s150, %s153
      %p162 = scmp.eq.s32.totalorder %s18, 1
      %p163 = por %p161, %p162
      %p164 = scmp.ne.s32.totalorder %s153, %s154
      %p165 = scmp.eq.s32.totalorder %s18, 0
      %p166 = por %p164, %p165
      %p167 = scmp.ne.s32.totalorder %s153, %s154
      %p168 = scmp.eq.s32.totalorder %s19, 1
      %p169 = por %p167, %p168
      %p171 = scmp.ne.s32.totalorder %s154, %s170
      %p172 = scmp.eq.s32.totalorder %s19, 0
      %p173 = por %p171, %p172
      %p174 = scmp.le.s32.totalorder 1, %s13
      %p175 = scmp.lt.s32.totalorder %s13, 3
      %p176 = pnand %p174, %p175
      %p177 = pneg %p176
      // Predicated region
      $region9: #{tpu_custom_call.1} parent=5 // pred_check
        _
      $region10: #{tpu_custom_call.1} parent=5 // pred_check_branch
        %179 = sbr.rel (%p176) target = $region12
      $region11: #{tpu_custom_call.1} parent=5 // pred_region
        %s180 = ssub.s32 %s13, 1
        // Predicated region
        $region13: #{tpu_custom_call.1} parent=11 // pred_check
          %p181 = pneg %p84
        $region14: #{tpu_custom_call.1} parent=11 // pred_check_branch
          %183 = sbr.rel (%p181) target = $region16
        $region15: #{tpu_custom_call.1} parent=11 // pred_region
          %p184 = scmp.lt.s32.totalorder %s24, 0
          %s185 = scalar_select %p184, %s24, 0
          %s186 = smul.addr %s185, 2
          %s187 = scalar_lea.vmem %s1, %s186
        $region16: #{tpu_custom_call.1} parent=11 // pred_fallthru
          _
        // Predicated region
        $region17: #{tpu_custom_call.1} parent=11 // pred_check
          %p188 = pneg %p110
        $region18: #{tpu_custom_call.1} parent=11 // pred_check_branch
          %190 = sbr.rel (%p188) target = $region20
        $region19: #{tpu_custom_call.1} parent=11 // pred_region
          %p191 = scmp.lt.s32.totalorder %s24, 0
          %s192 = scalar_select %p191, %s24, 0
          %s193 = scalar_lea.vmem %s2, %s192
        $region20: #{tpu_custom_call.1} parent=11 // pred_fallthru
          _
        // Predicated region
        $region21: #{tpu_custom_call.1} parent=11 // pred_check
          %p194 = pneg %p136
        $region22: #{tpu_custom_call.1} parent=11 // pred_check_branch
          %196 = sbr.rel (%p194) target = $region24
        $region23: #{tpu_custom_call.1} parent=11 // pred_region
          %p197 = scmp.lt.s32.totalorder %s24, 0
          %s198 = scalar_select %p197, %s24, 0
          %s199 = scalar_lea.vmem %s3, %s198
        $region24: #{tpu_custom_call.1} parent=11 // pred_fallthru
          _
      $region12: #{tpu_custom_call.1} parent=5 // pred_fallthru
        _
      %p200 = scmp.lt.s32.totalorder %s13, 2
      // Predicated region
      $region25: #{tpu_custom_call.1} parent=5 // pred_check
        %p201 = pneg %p200
      $region26: #{tpu_custom_call.1} parent=5 // pred_check_branch
        %203 = sbr.rel (%p201) target = $region28
      $region27: #{tpu_custom_call.1} parent=5 // pred_region
        // Predicated region
        $region29: #{tpu_custom_call.1} parent=27 // pred_check
          %p204 = pneg %p52
        $region30: #{tpu_custom_call.1} parent=27 // pred_check_branch
          %206 = sbr.rel (%p204) target = $region32
        $region31: #{tpu_custom_call.1} parent=27 // pred_region
          %p207 = scmp.lt.s32.totalorder %s20, 1
          %s208 = scalar_select %p207, %s20, 1
          %s209 = smul.addr %s208, 54
          %s210 = smul.addr %s209, 4
          %s211 = scalar_lea.vmem %s0, %s210
        $region32: #{tpu_custom_call.1} parent=27 // pred_fallthru
          _
      $region28: #{tpu_custom_call.1} parent=5 // pred_fallthru
        _
      %p212 = scmp.le.s32.totalorder 1, %s13
      %p213 = scmp.lt.s32.totalorder %s13, 3
      %p214 = pnand %p212, %p213
      %p215 = pneg %p214
      // Predicated region
      $region33: #{tpu_custom_call.1} parent=5 // pred_check
        _
      $region34: #{tpu_custom_call.1} parent=5 // pred_check_branch
        %217 = sbr.rel (%p214) target = $region36
      $region35: #{tpu_custom_call.1} parent=5 // pred_region
        %s218 = ssub.s32 %s13, 1
        %p219 = scmp.lt.s32.totalorder %s23, 1
        %s220 = scalar_select %p219, %s23, 1
        %s221 = smul.addr %s220, 54
        %s222 = smul.addr %s221, 4
        %s223 = scalar_lea.vmem %s0, %s222
        %p224 = pneg %p58
        %p225 = pneg %p55
        %p226 = scmp.lt.s32.totalorder %s24, 0
        %s227 = scalar_select %p226, %s24, 0
        %s228 = smul.addr %s227, 2
        %s229 = scalar_lea.vmem %s1, %s228
        %p230 = pneg %p84
        %p231 = pneg %p81
        %p232 = scmp.lt.s32.totalorder %s24, 0
        %s233 = scalar_select %p232, %s24, 0
        %s234 = scalar_lea.vmem %s2, %s233
        %p235 = pneg %p110
        %p236 = pneg %p107
        %p237 = scmp.lt.s32.totalorder %s24, 0
        %s238 = scalar_select %p237, %s24, 0
        %s239 = scalar_lea.vmem %s3, %s238
        %p240 = pneg %p136
        %p241 = pneg %p133
        %p242 = pneg %p166
        %p243 = pneg %p163
        %s244 = sand.u32 %s153, 1
        %s245 = scalar_lea.sflag [#allocation3], %s244
        %s246 = sand.u32 %s153, 1
        %s247 = smul.addr %s246, 128
        %s248 = scalar_lea.vmem [#allocation2], %s247
        %p249 = scmp.lt.s32.totalorder %s23, 1
        %s250 = scalar_select %p249, %s23, 1
        %s251 = smul.addr %s250, 54
        %s252 = smul.addr %s251, 4
        %s253 = scalar_lea.vmem %s0, %s252
        %p254 = scmp.lt.s32.totalorder %s24, 0
        %s255 = scalar_select %p254, %s24, 0
        %s256 = smul.addr %s255, 2
        %s257 = scalar_lea.vmem %s1, %s256
        %p258 = scmp.lt.s32.totalorder %s24, 0
        %s259 = scalar_select %p258, %s24, 0
        %s260 = scalar_lea.vmem %s2, %s259
        %p261 = scmp.lt.s32.totalorder %s24, 0
        %s262 = scalar_select %p261, %s24, 0
        %s263 = scalar_lea.vmem %s3, %s262
        %s264 = smul.u32 16, %s25
        %s266 = smul.u32 %s25, 16
        %s267 = smul.u32 %s266, 3
        %s268 = smul.addr %s267, 4
        %s269 = scalar_lea.vmem %s253, %s268
        %v270 = vld [vmem:[%s269] sm:$0xf]
        %v271 = vld [vmem:[%s269 + $0x4] sm:$0xf]
        %v272 = vld [vmem:[%s269 + $0xc] sm:$0xf]
        %v273 = vld [vmem:[%s269 + $0x10] sm:$0xf]
        %v274 = vld [vmem:[%s269 + $0x18] sm:$0xf]
        %v275 = vld [vmem:[%s269 + $0x1c] sm:$0xf]
        %v276 = vld [vmem:[%s269 + $0x24] sm:$0xf]
        %v277 = vld [vmem:[%s269 + $0x28] sm:$0xf]
        %v278 = vld [vmem:[%s269 + $0x30] sm:$0xf]
        %v279 = vld [vmem:[%s269 + $0x34] sm:$0xf]
        %v280 = vld [vmem:[%s269 + $0x3c] sm:$0xf]
        %v281 = vld [vmem:[%s269 + $0x40] sm:$0xf]
        %v282 = vld [vmem:[%s269 + $0x48] sm:$0xf]
        %v283 = vld [vmem:[%s269 + $0x4c] sm:$0xf]
        %v284 = vld [vmem:[%s269 + $0x54] sm:$0xf]
        %v285 = vld [vmem:[%s269 + $0x58] sm:$0xf]
        %v286 = vld [vmem:[%s269 + $0x60] sm:$0xf]
        %v287 = vld [vmem:[%s269 + $0x64] sm:$0xf]
        %v288 = vld [vmem:[%s269 + $0x6c] sm:$0xf]
        %v289 = vld [vmem:[%s269 + $0x70] sm:$0xf]
        %v290 = vld [vmem:[%s269 + $0x78] sm:$0xf]
        %v291 = vld [vmem:[%s269 + $0x7c] sm:$0xf]
        %v292 = vld [vmem:[%s269 + $0x84] sm:$0xf]
        %v293 = vld [vmem:[%s269 + $0x88] sm:$0xf]
        %v294 = vld [vmem:[%s269 + $0x90] sm:$0xf]
        %v295 = vld [vmem:[%s269 + $0x94] sm:$0xf]
        %v296 = vld [vmem:[%s269 + $0x9c] sm:$0xf]
        %v297 = vld [vmem:[%s269 + $0xa0] sm:$0xf]
        %v298 = vld [vmem:[%s269 + $0xa8] sm:$0xf]
        %v299 = vld [vmem:[%s269 + $0xac] sm:$0xf]
        %v300 = vld [vmem:[%s269 + $0xb4] sm:$0xf]
        %v301 = vld [vmem:[%s269 + $0xb8] sm:$0xf]
        %v302 = vld [vmem:[%s257] sm:$0x3]
        %v303 = vld [vmem:[%s269 + $0x8] sm:$0x1]
        %v304 = vld [vmem:[%s269 + $0x14] sm:$0x1]
        %v305 = vld [vmem:[%s269 + $0x20] sm:$0x1]
        %v306 = vld [vmem:[%s269 + $0x2c] sm:$0x1]
        %v307 = vld [vmem:[%s269 + $0x38] sm:$0x1]
        %v308 = vld [vmem:[%s269 + $0x44] sm:$0x1]
        %v309 = vld [vmem:[%s269 + $0x50] sm:$0x1]
        %v310 = vld [vmem:[%s269 + $0x5c] sm:$0x1]
        %v311 = vld [vmem:[%s269 + $0x68] sm:$0x1]
        %v312 = vld [vmem:[%s269 + $0x74] sm:$0x1]
        %v313 = vld [vmem:[%s269 + $0x80] sm:$0x1]
        %v314 = vld [vmem:[%s269 + $0x8c] sm:$0x1]
        %v315 = vld [vmem:[%s269 + $0x98] sm:$0x1]
        %v316 = vld [vmem:[%s269 + $0xa4] sm:$0x1]
        %v317 = vld [vmem:[%s269 + $0xb0] sm:$0x1]
        %v318 = vld [vmem:[%s269 + $0xbc] sm:$0x1]
        %vm319 = vsmask.f32 3328
        %vm320 = vsmask.f32 7440
        %vm321 = vmor %vm319, %vm320
        %v323 = vshrl.u32 %v270, 16
        %v325 = vrot.slane %v323, 4
        %v326 = vshll.u32 %v270, 16
        %v328 = vrot.slane %v326, 5
        %v329 = vor.u32 %v325, %v328
        %v330 = vrot.slane %v329, 4
        %v332 = vshll.u32 %v271, 16
        %v334 = vrot.slane %v332, 5
        %v335 = vsel %vm321, %v330, %v334
        %v336 = vshrl.u32 %v271, 16
        %v338 = vrot.slane %v336, 4
        %v339 = vor.u32 %v338, %v334
        %v340 = vrot.slane %v339, 4
        %v342 = vshll.u32 %v303, 16
        %v344 = vrot.slane %v342, 5
        %v345 = vsel %vm321, %v340, %v344
        %v347 = vshrl.u32 %v272, 16
        %v349 = vrot.slane %v347, 4
        %v350 = vshll.u32 %v272, 16
        %v352 = vrot.slane %v350, 5
        %v353 = vor.u32 %v349, %v352
        %v354 = vrot.slane %v353, 4
        %v356 = vshll.u32 %v273, 16
        %v358 = vrot.slane %v356, 5
        %v359 = vsel %vm321, %v354, %v358
        %v360 = vshrl.u32 %v273, 16
        %v362 = vrot.slane %v360, 4
        %v363 = vor.u32 %v362, %v358
        %v364 = vrot.slane %v363, 4
        %v366 = vshll.u32 %v304, 16
        %v368 = vrot.slane %v366, 5
        %v369 = vsel %vm321, %v364, %v368
        %v371 = vshrl.u32 %v274, 16
        %v373 = vrot.slane %v371, 4
        %v374 = vshll.u32 %v274, 16
        %v376 = vrot.slane %v374, 5
        %v377 = vor.u32 %v373, %v376
        %v378 = vrot.slane %v377, 4
        %v380 = vshll.u32 %v275, 16
        %v382 = vrot.slane %v380, 5
        %v383 = vsel %vm321, %v378, %v382
        %v384 = vshrl.u32 %v275, 16
        %v386 = vrot.slane %v384, 4
        %v387 = vor.u32 %v386, %v382
        %v388 = vrot.slane %v387, 4
        %v390 = vshll.u32 %v305, 16
        %v392 = vrot.slane %v390, 5
        %v393 = vsel %vm321, %v388, %v392
        %v395 = vshrl.u32 %v276, 16
        %v397 = vrot.slane %v395, 4
        %v398 = vshll.u32 %v276, 16
        %v400 = vrot.slane %v398, 5
        %v401 = vor.u32 %v397, %v400
        %v402 = vrot.slane %v401, 4
        %v404 = vshll.u32 %v277, 16
        %v406 = vrot.slane %v404, 5
        %v407 = vsel %vm321, %v402, %v406
        %v408 = vshrl.u32 %v277, 16
        %v410 = vrot.slane %v408, 4
        %v411 = vor.u32 %v410, %v406
        %v412 = vrot.slane %v411, 4
        %v414 = vshll.u32 %v306, 16
        %v416 = vrot.slane %v414, 5
        %v417 = vsel %vm321, %v412, %v416
        %v419 = vshrl.u32 %v278, 16
        %v421 = vrot.slane %v419, 4
        %v422 = vshll.u32 %v278, 16
        %v424 = vrot.slane %v422, 5
        %v425 = vor.u32 %v421, %v424
        %v426 = vrot.slane %v425, 4
        %v428 = vshll.u32 %v279, 16
        %v430 = vrot.slane %v428, 5
        %v431 = vsel %vm321, %v426, %v430
        %v432 = vshrl.u32 %v279, 16
        %v434 = vrot.slane %v432, 4
        %v435 = vor.u32 %v434, %v430
        %v436 = vrot.slane %v435, 4
        %v438 = vshll.u32 %v307, 16
        %v440 = vrot.slane %v438, 5
        %v441 = vsel %vm321, %v436, %v440
        %v443 = vshrl.u32 %v280, 16
        %v445 = vrot.slane %v443, 4
        %v446 = vshll.u32 %v280, 16
        %v448 = vrot.slane %v446, 5
        %v449 = vor.u32 %v445, %v448
        %v450 = vrot.slane %v449, 4
        %v452 = vshll.u32 %v281, 16
        %v454 = vrot.slane %v452, 5
        %v455 = vsel %vm321, %v450, %v454
        %v456 = vshrl.u32 %v281, 16
        %v458 = vrot.slane %v456, 4
        %v459 = vor.u32 %v458, %v454
        %v460 = vrot.slane %v459, 4
        %v462 = vshll.u32 %v308, 16
        %v464 = vrot.slane %v462, 5
        %v465 = vsel %vm321, %v460, %v464
        %v467 = vshrl.u32 %v282, 16
        %v469 = vrot.slane %v467, 4
        %v470 = vshll.u32 %v282, 16
        %v472 = vrot.slane %v470, 5
        %v473 = vor.u32 %v469, %v472
        %v474 = vrot.slane %v473, 4
        %v476 = vshll.u32 %v283, 16
        %v478 = vrot.slane %v476, 5
        %v479 = vsel %vm321, %v474, %v478
        %v480 = vshrl.u32 %v283, 16
        %v482 = vrot.slane %v480, 4
        %v483 = vor.u32 %v482, %v478
        %v484 = vrot.slane %v483, 4
        %v486 = vshll.u32 %v309, 16
        %v488 = vrot.slane %v486, 5
        %v489 = vsel %vm321, %v484, %v488
        %v491 = vshrl.u32 %v284, 16
        %v493 = vrot.slane %v491, 4
        %v494 = vshll.u32 %v284, 16
        %v496 = vrot.slane %v494, 5
        %v497 = vor.u32 %v493, %v496
        %v498 = vrot.slane %v497, 4
        %v500 = vshll.u32 %v285, 16
        %v502 = vrot.slane %v500, 5
        %v503 = vsel %vm321, %v498, %v502
        %v504 = vshrl.u32 %v285, 16
        %v506 = vrot.slane %v504, 4
        %v507 = vor.u32 %v506, %v502
        %v508 = vrot.slane %v507, 4
        %v510 = vshll.u32 %v310, 16
        %v512 = vrot.slane %v510, 5
        %v513 = vsel %vm321, %v508, %v512
        %v515 = vshrl.u32 %v286, 16
        %v517 = vrot.slane %v515, 4
        %v518 = vshll.u32 %v286, 16
        %v520 = vrot.slane %v518, 5
        %v521 = vor.u32 %v517, %v520
        %v522 = vrot.slane %v521, 4
        %v524 = vshll.u32 %v287, 16
        %v526 = vrot.slane %v524, 5
        %v527 = vsel %vm321, %v522, %v526
        %v528 = vshrl.u32 %v287, 16
        %v530 = vrot.slane %v528, 4
        %v531 = vor.u32 %v530, %v526
        %v532 = vrot.slane %v531, 4
        %v534 = vshll.u32 %v311, 16
        %v536 = vrot.slane %v534, 5
        %v537 = vsel %vm321, %v532, %v536
        %v539 = vshrl.u32 %v288, 16
        %v541 = vrot.slane %v539, 4
        %v542 = vshll.u32 %v288, 16
        %v544 = vrot.slane %v542, 5
        %v545 = vor.u32 %v541, %v544
        %v546 = vrot.slane %v545, 4
        %v548 = vshll.u32 %v289, 16
        %v550 = vrot.slane %v548, 5
        %v551 = vsel %vm321, %v546, %v550
        %v552 = vshrl.u32 %v289, 16
        %v554 = vrot.slane %v552, 4
        %v555 = vor.u32 %v554, %v550
        %v556 = vrot.slane %v555, 4
        %v558 = vshll.u32 %v312, 16
        %v560 = vrot.slane %v558, 5
        %v561 = vsel %vm321, %v556, %v560
        %v563 = vshrl.u32 %v290, 16
        %v565 = vrot.slane %v563, 4
        %v566 = vshll.u32 %v290, 16
        %v568 = vrot.slane %v566, 5
        %v569 = vor.u32 %v565, %v568
        %v570 = vrot.slane %v569, 4
        %v572 = vshll.u32 %v291, 16
        %v574 = vrot.slane %v572, 5
        %v575 = vsel %vm321, %v570, %v574
        %v576 = vshrl.u32 %v291, 16
        %v578 = vrot.slane %v576, 4
        %v579 = vor.u32 %v578, %v574
        %v580 = vrot.slane %v579, 4
        %v582 = vshll.u32 %v313, 16
        %v584 = vrot.slane %v582, 5
        %v585 = vsel %vm321, %v580, %v584
        %v587 = vshrl.u32 %v292, 16
        %v589 = vrot.slane %v587, 4
        %v590 = vshll.u32 %v292, 16
        %v592 = vrot.slane %v590, 5
        %v593 = vor.u32 %v589, %v592
        %v594 = vrot.slane %v593, 4
        %v596 = vshll.u32 %v293, 16
        %v598 = vrot.slane %v596, 5
        %v599 = vsel %vm321, %v594, %v598
        %v600 = vshrl.u32 %v293, 16
        %v602 = vrot.slane %v600, 4
        %v603 = vor.u32 %v602, %v598
        %v604 = vrot.slane %v603, 4
        %v606 = vshll.u32 %v314, 16
        %v608 = vrot.slane %v606, 5
        %v609 = vsel %vm321, %v604, %v608
        %v611 = vshrl.u32 %v294, 16
        %v613 = vrot.slane %v611, 4
        %v614 = vshll.u32 %v294, 16
        %v616 = vrot.slane %v614, 5
        %v617 = vor.u32 %v613, %v616
        %v618 = vrot.slane %v617, 4
        %v620 = vshll.u32 %v295, 16
        %v622 = vrot.slane %v620, 5
        %v623 = vsel %vm321, %v618, %v622
        %v624 = vshrl.u32 %v295, 16
        %v626 = vrot.slane %v624, 4
        %v627 = vor.u32 %v626, %v622
        %v628 = vrot.slane %v627, 4
        %v630 = vshll.u32 %v315, 16
        %v632 = vrot.slane %v630, 5
        %v633 = vsel %vm321, %v628, %v632
        %v635 = vshrl.u32 %v296, 16
        %v637 = vrot.slane %v635, 4
        %v638 = vshll.u32 %v296, 16
        %v640 = vrot.slane %v638, 5
        %v641 = vor.u32 %v637, %v640
        %v642 = vrot.slane %v641, 4
        %v644 = vshll.u32 %v297, 16
        %v646 = vrot.slane %v644, 5
        %v647 = vsel %vm321, %v642, %v646
        %v648 = vshrl.u32 %v297, 16
        %v650 = vrot.slane %v648, 4
        %v651 = vor.u32 %v650, %v646
        %v652 = vrot.slane %v651, 4
        %v654 = vshll.u32 %v316, 16
        %v656 = vrot.slane %v654, 5
        %v657 = vsel %vm321, %v652, %v656
        %v659 = vshrl.u32 %v298, 16
        %v661 = vrot.slane %v659, 4
        %v662 = vshll.u32 %v298, 16
        %v664 = vrot.slane %v662, 5
        %v665 = vor.u32 %v661, %v664
        %v666 = vrot.slane %v665, 4
        %v668 = vshll.u32 %v299, 16
        %v670 = vrot.slane %v668, 5
        %v671 = vsel %vm321, %v666, %v670
        %v672 = vshrl.u32 %v299, 16
        %v674 = vrot.slane %v672, 4
        %v675 = vor.u32 %v674, %v670
        %v676 = vrot.slane %v675, 4
        %v678 = vshll.u32 %v317, 16
        %v680 = vrot.slane %v678, 5
        %v681 = vsel %vm321, %v676, %v680
        %v683 = vshrl.u32 %v300, 16
        %v685 = vrot.slane %v683, 4
        %v686 = vshll.u32 %v300, 16
        %v688 = vrot.slane %v686, 5
        %v689 = vor.u32 %v685, %v688
        %v690 = vrot.slane %v689, 4
        %v692 = vshll.u32 %v301, 16
        %v694 = vrot.slane %v692, 5
        %v695 = vsel %vm321, %v690, %v694
        %v696 = vshrl.u32 %v301, 16
        %v698 = vrot.slane %v696, 4
        %v699 = vor.u32 %v698, %v694
        %v700 = vrot.slane %v699, 4
        %v702 = vshll.u32 %v318, 16
        %v704 = vrot.slane %v702, 5
        %v705 = vsel %vm321, %v700, %v704
        %s706 = scalar_lea.vmem %s257, 2
        %v707 = vld [vmem:[%s706] sm:$0x3]
        %v708 = vunpack.c.l.b16 %v335
        %v709 = vunpack.c.l.b16 %v345
        %v710 = vunpack.c.l.b16 %v359
        %v711 = vunpack.c.l.b16 %v369
        %v712 = vunpack.c.l.b16 %v383
        %v713 = vunpack.c.l.b16 %v393
        %v714 = vunpack.c.l.b16 %v407
        %v715 = vunpack.c.l.b16 %v417
        %v716 = vunpack.c.l.b16 %v431
        %v717 = vunpack.c.l.b16 %v441
        %v718 = vunpack.c.l.b16 %v455
        %v719 = vunpack.c.l.b16 %v465
        %v720 = vunpack.c.l.b16 %v479
        %v721 = vunpack.c.l.b16 %v489
        %v722 = vunpack.c.l.b16 %v503
        %v723 = vunpack.c.l.b16 %v513
        %v724 = vunpack.c.l.b16 %v527
        %v725 = vunpack.c.l.b16 %v537
        %v726 = vunpack.c.l.b16 %v551
        %v727 = vunpack.c.l.b16 %v561
        %v728 = vunpack.c.l.b16 %v575
        %v729 = vunpack.c.l.b16 %v585
        %v730 = vunpack.c.l.b16 %v599
        %v731 = vunpack.c.l.b16 %v609
        %v732 = vunpack.c.l.b16 %v623
        %v733 = vunpack.c.l.b16 %v633
        %v734 = vunpack.c.l.b16 %v647
        %v735 = vunpack.c.l.b16 %v657
        %v736 = vunpack.c.l.b16 %v671
        %v737 = vunpack.c.l.b16 %v681
        %v738 = vunpack.c.l.b16 %v695
        %v739 = vunpack.c.l.b16 %v705
        %v740 = vpack.c.b16 %v709, %v708
        %v741 = vpack.c.b16 %v711, %v710
        %v742 = vpack.c.b16 %v713, %v712
        %v743 = vpack.c.b16 %v715, %v714
        %v744 = vpack.c.b16 %v717, %v716
        %v745 = vpack.c.b16 %v719, %v718
        %v746 = vpack.c.b16 %v721, %v720
        %v747 = vpack.c.b16 %v723, %v722
        %v748 = vpack.c.b16 %v725, %v724
        %v749 = vpack.c.b16 %v727, %v726
        %v750 = vpack.c.b16 %v729, %v728
        %v751 = vpack.c.b16 %v731, %v730
        %v752 = vpack.c.b16 %v733, %v732
        %v753 = vpack.c.b16 %v735, %v734
        %v754 = vpack.c.b16 %v737, %v736
        %v755 = vpack.c.b16 %v739, %v738
        %vm756 = vcmask 31744
        %v758 = vsel %vm756, %v740, 0
        %v761 = vsel %vm756, %v741, 0
        %v764 = vsel %vm756, %v742, 0
        %v767 = vsel %vm756, %v743, 0
        %v770 = vsel %vm756, %v744, 0
        %v773 = vsel %vm756, %v745, 0
        %v776 = vsel %vm756, %v746, 0
        %v779 = vsel %vm756, %v747, 0
        %v782 = vsel %vm756, %v748, 0
        %v785 = vsel %vm756, %v749, 0
        %v788 = vsel %vm756, %v750, 0
        %v791 = vsel %vm756, %v751, 0
        %v794 = vsel %vm756, %v752, 0
        %v797 = vsel %vm756, %v753, 0
        %v800 = vsel %vm756, %v754, 0
        %v803 = vsel %vm756, %v755, 0
        %vm805 = vcmask 1041408
        %v807 = vsel %vm805, %v707, 0
        %809 = vmatprep.subr.bf16.mxu0 0
        %810 = vmatpush1.bf16.msra.mxu0 %v807
        %811 = vmatprep.subr.bf16.mxu0 0
        %812 = vmatpush1.bf16.msra.mxu0 0
        %813 = vmatprep.subr.bf16.mxu0 0
        %814 = vmatpush1.bf16.msra.mxu0 0
        %815 = vmatprep.subr.bf16.mxu0 0
        %816 = vmatpush1.bf16.msra.mxu0 0
        %817 = vmatprep.subr.bf16.mxu0 0
        %818 = vmatpush1.bf16.msra.mxu0 0
        %819 = vmatprep.subr.bf16.mxu0 0
        %820 = vmatpush1.bf16.msra.mxu0 0
        %821 = vmatprep.subr.bf16.mxu0 0
        %822 = vmatpush1.bf16.msra.mxu0 0
        %823 = vmatprep.subr.bf16.mxu0 0
        %824 = vmatpush1.bf16.msra.mxu0 0
        %825 = vmatprep.subr.bf16.mxu0 0
        %826 = vmatpush1.bf16.msra.mxu0 0
        %827 = vmatprep.subr.bf16.mxu0 0
        %828 = vmatpush1.bf16.msra.mxu0 0
        %829 = vmatprep.subr.bf16.mxu0 0
        %830 = vmatpush1.bf16.msra.mxu0 0
        %831 = vmatprep.subr.bf16.mxu0 0
        %832 = vmatpush1.bf16.msra.mxu0 0
        %833 = vmatprep.subr.bf16.mxu0 0
        %834 = vmatpush1.bf16.msra.mxu0 0
        %835 = vmatprep.subr.bf16.mxu0 0
        %836 = vmatpush1.bf16.msra.mxu0 0
        %837 = vmatprep.subr.bf16.mxu0 0
        %838 = vmatpush1.bf16.msra.mxu0 0
        %839 = vmatprep.subr.bf16.mxu0 0
        %840 = vmatpush1.bf16.msra.mxu0 0
        %841 = vmatprep.mubr.bf16.mxu0 0
        %842 = vmatmul.mubr.bf16.gmra.mrb[0].mxu0 %v758
        %v843 = vpop.f32.mrb[0].mxu0
        %v844 = vadd.f32 0.0, %v843
        %v845 = vpop.f32.mrb[0].mxu0
        %v846 = vpop.f32.mrb[0].mxu0
        %v847 = vadd.f32 0.0, %v846
        %v848 = vpop.f32.mrb[0].mxu0
        %849 = vmatprep.mubr.bf16.mxu0 0
        %850 = vmatmul.mubr.bf16.gmra.mrb[0].mxu0 %v761
        %v851 = vpop.f32.mrb[0].mxu0
        %v852 = vadd.f32 0.0, %v851
        %v853 = vpop.f32.mrb[0].mxu0
        %v854 = vpop.f32.mrb[0].mxu0
        %v855 = vadd.f32 0.0, %v854
        %v856 = vpop.f32.mrb[0].mxu0
        %857 = vmatprep.mubr.bf16.mxu0 0
        %858 = vmatmul.mubr.bf16.gmra.mrb[0].mxu0 %v764
        %v859 = vpop.f32.mrb[0].mxu0
        %v860 = vadd.f32 0.0, %v859
        %v861 = vpop.f32.mrb[0].mxu0
        %v862 = vpop.f32.mrb[0].mxu0
        %v863 = vadd.f32 0.0, %v862
        %v864 = vpop.f32.mrb[0].mxu0
        %865 = vmatprep.mubr.bf16.mxu0 0
        %866 = vmatmul.mubr.bf16.gmra.mrb[0].mxu0 %v767
        %v867 = vpop.f32.mrb[0].mxu0
        %v868 = vadd.f32 0.0, %v867
        %v869 = vpop.f32.mrb[0].mxu0
        %v870 = vpop.f32.mrb[0].mxu0
        %v871 = vadd.f32 0.0, %v870
        %v872 = vpop.f32.mrb[0].mxu0
        %873 = vmatprep.mubr.bf16.mxu0 0
        %874 = vmatmul.mubr.bf16.gmra.mrb[0].mxu0 %v770
        %v875 = vpop.f32.mrb[0].mxu0
        %v876 = vadd.f32 0.0, %v875
        %v877 = vpop.f32.mrb[0].mxu0
        %v878 = vpop.f32.mrb[0].mxu0
        %v879 = vadd.f32 0.0, %v878
        %v880 = vpop.f32.mrb[0].mxu0
        %881 = vmatprep.mubr.bf16.mxu0 0
        %882 = vmatmul.mubr.bf16.gmra.mrb[0].mxu0 %v773
        %v883 = vpop.f32.mrb[0].mxu0
        %v884 = vadd.f32 0.0, %v883
        %v885 = vpop.f32.mrb[0].mxu0
        %v886 = vpop.f32.mrb[0].mxu0
        %v887 = vadd.f32 0.0, %v886
        %v888 = vpop.f32.mrb[0].mxu0
        %889 = vmatprep.mubr.bf16.mxu0 0
        %890 = vmatmul.mubr.bf16.gmra.mrb[0].mxu0 %v776
        %v891 = vpop.f32.mrb[0].mxu0
        %v892 = vadd.f32 0.0, %v891
        %v893 = vpop.f32.mrb[0].mxu0
        %v894 = vpop.f32.mrb[0].mxu0
        %v895 = vadd.f32 0.0, %v894
        %v896 = vpop.f32.mrb[0].mxu0
        %897 = vmatprep.mubr.bf16.mxu0 0
        %898 = vmatmul.mubr.bf16.gmra.mrb[0].mxu0 %v779
        %v899 = vpop.f32.mrb[0].mxu0
        %v900 = vadd.f32 0.0, %v899
        %v901 = vpop.f32.mrb[0].mxu0
        %v902 = vpop.f32.mrb[0].mxu0
        %v903 = vadd.f32 0.0, %v902
        %v904 = vpop.f32.mrb[0].mxu0
        %905 = vmatprep.mubr.bf16.mxu0 0
        %906 = vmatmul.mubr.bf16.gmra.mrb[0].mxu0 %v782
        %v907 = vpop.f32.mrb[0].mxu0
        %v908 = vadd.f32 0.0, %v907
        %v909 = vpop.f32.mrb[0].mxu0
        %v910 = vpop.f32.mrb[0].mxu0
        %v911 = vadd.f32 0.0, %v910
        %v912 = vpop.f32.mrb[0].mxu0
        %913 = vmatprep.mubr.bf16.mxu0 0
        %914 = vmatmul.mubr.bf16.gmra.mrb[0].mxu0 %v785
        %v915 = vpop.f32.mrb[0].mxu0
        %v916 = vadd.f32 0.0, %v915
        %v917 = vpop.f32.mrb[0].mxu0
        %v918 = vpop.f32.mrb[0].mxu0
        %v919 = vadd.f32 0.0, %v918
        %v920 = vpop.f32.mrb[0].mxu0
        %921 = vmatprep.mubr.bf16.mxu0 0
        %922 = vmatmul.mubr.bf16.gmra.mrb[0].mxu0 %v788
        %v923 = vpop.f32.mrb[0].mxu0
        %v924 = vadd.f32 0.0, %v923
        %v925 = vpop.f32.mrb[0].mxu0
        %v926 = vpop.f32.mrb[0].mxu0
        %v927 = vadd.f32 0.0, %v926
        %v928 = vpop.f32.mrb[0].mxu0
        %929 = vmatprep.mubr.bf16.mxu0 0
        %930 = vmatmul.mubr.bf16.gmra.mrb[0].mxu0 %v791
        %v931 = vpop.f32.mrb[0].mxu0
        %v932 = vadd.f32 0.0, %v931
        %v933 = vpop.f32.mrb[0].mxu0
        %v934 = vpop.f32.mrb[0].mxu0
        %v935 = vadd.f32 0.0, %v934
        %v936 = vpop.f32.mrb[0].mxu0
        %937 = vmatprep.mubr.bf16.mxu0 0
        %938 = vmatmul.mubr.bf16.gmra.mrb[0].mxu0 %v794
        %v939 = vpop.f32.mrb[0].mxu0
        %v940 = vadd.f32 0.0, %v939
        %v941 = vpop.f32.mrb[0].mxu0
        %v942 = vpop.f32.mrb[0].mxu0
        %v943 = vadd.f32 0.0, %v942
        %v944 = vpop.f32.mrb[0].mxu0
        %945 = vmatprep.mubr.bf16.mxu0 0
        %946 = vmatmul.mubr.bf16.gmra.mrb[0].mxu0 %v797
        %v947 = vpop.f32.mrb[0].mxu0
        %v948 = vadd.f32 0.0, %v947
        %v949 = vpop.f32.mrb[0].mxu0
        %v950 = vpop.f32.mrb[0].mxu0
        %v951 = vadd.f32 0.0, %v950
        %v952 = vpop.f32.mrb[0].mxu0
        %953 = vmatprep.mubr.bf16.mxu0 0
        %954 = vmatmul.mubr.bf16.gmra.mrb[0].mxu0 %v800
        %v955 = vpop.f32.mrb[0].mxu0
        %v956 = vadd.f32 0.0, %v955
        %v957 = vpop.f32.mrb[0].mxu0
        %v958 = vpop.f32.mrb[0].mxu0
        %v959 = vadd.f32 0.0, %v958
        %v960 = vpop.f32.mrb[0].mxu0
        %961 = vmatprep.mubr.bf16.mxu0 0
        %962 = vmatmul.mubr.bf16.gmra.mrb[0].mxu0 %v803
        %v963 = vpop.f32.mrb[0].mxu0
        %v964 = vadd.f32 0.0, %v963
        %v965 = vpop.f32.mrb[0].mxu0
        %v966 = vpop.f32.mrb[0].mxu0
        %v967 = vadd.f32 0.0, %v966
        %v968 = vpop.f32.mrb[0].mxu0
        %969 = vdwg.mxu0
        %v1002 = vunpack.c.l.b16 %v270
        %v1003 = vunpack.c.l.b16 %v271
        %v1004 = vunpack.c.l.b16 %v272
        %v1005 = vunpack.c.l.b16 %v273
        %v1006 = vunpack.c.l.b16 %v274
        %v1007 = vunpack.c.l.b16 %v275
        %v1008 = vunpack.c.l.b16 %v276
        %v1009 = vunpack.c.l.b16 %v277
        %v1010 = vunpack.c.l.b16 %v278
        %v1011 = vunpack.c.l.b16 %v279
        %v1012 = vunpack.c.l.b16 %v280
        %v1013 = vunpack.c.l.b16 %v281
        %v1014 = vunpack.c.l.b16 %v282
        %v1015 = vunpack.c.l.b16 %v283
        %v1016 = vunpack.c.l.b16 %v284
        %v1017 = vunpack.c.l.b16 %v285
        %v1018 = vunpack.c.l.b16 %v286
        %v1019 = vunpack.c.l.b16 %v287
        %v1020 = vunpack.c.l.b16 %v288
        %v1021 = vunpack.c.l.b16 %v289
        %v1022 = vunpack.c.l.b16 %v290
        %v1023 = vunpack.c.l.b16 %v291
        %v1024 = vunpack.c.l.b16 %v292
        %v1025 = vunpack.c.l.b16 %v293
        %v1026 = vunpack.c.l.b16 %v294
        %v1027 = vunpack.c.l.b16 %v295
        %v1028 = vunpack.c.l.b16 %v296
        %v1029 = vunpack.c.l.b16 %v297
        %v1030 = vunpack.c.l.b16 %v298
        %v1031 = vunpack.c.l.b16 %v299
        %v1032 = vunpack.c.l.b16 %v300
        %v1033 = vunpack.c.l.b16 %v301
        %v1034 = vpack.c.b16 %v1003, %v1002
        %v1035 = vpack.c.b16 %v1005, %v1004
        %v1036 = vpack.c.b16 %v1007, %v1006
        %v1037 = vpack.c.b16 %v1009, %v1008
        %v1038 = vpack.c.b16 %v1011, %v1010
        %v1039 = vpack.c.b16 %v1013, %v1012
        %v1040 = vpack.c.b16 %v1015, %v1014
        %v1041 = vpack.c.b16 %v1017, %v1016
        %v1042 = vpack.c.b16 %v1019, %v1018
        %v1043 = vpack.c.b16 %v1021, %v1020
        %v1044 = vpack.c.b16 %v1023, %v1022
        %v1045 = vpack.c.b16 %v1025, %v1024
        %v1046 = vpack.c.b16 %v1027, %v1026
        %v1047 = vpack.c.b16 %v1029, %v1028
        %v1048 = vpack.c.b16 %v1031, %v1030
        %v1049 = vpack.c.b16 %v1033, %v1032
        %v1051 = vsel %vm756, %v1034, 0
        %v1054 = vsel %vm756, %v1035, 0
        %v1057 = vsel %vm756, %v1036, 0
        %v1060 = vsel %vm756, %v1037, 0
        %v1063 = vsel %vm756, %v1038, 0
        %v1066 = vsel %vm756, %v1039, 0
        %v1069 = vsel %vm756, %v1040, 0
        %v1072 = vsel %vm756, %v1041, 0
        %v1075 = vsel %vm756, %v1042, 0
        %v1078 = vsel %vm756, %v1043, 0
        %v1081 = vsel %vm756, %v1044, 0
        %v1084 = vsel %vm756, %v1045, 0
        %v1087 = vsel %vm756, %v1046, 0
        %v1090 = vsel %vm756, %v1047, 0
        %v1093 = vsel %vm756, %v1048, 0
        %v1096 = vsel %vm756, %v1049, 0
        %v1099 = vsel %vm805, %v302, 0
        %1101 = vmatprep.subr.bf16.mxu0 0
        %1102 = vmatpush1.bf16.msra.mxu0 %v1099
        %1103 = vmatprep.subr.bf16.mxu0 0
        %1104 = vmatpush1.bf16.msra.mxu0 0
        %1105 = vmatprep.subr.bf16.mxu0 0
        %1106 = vmatpush1.bf16.msra.mxu0 0
        %1107 = vmatprep.subr.bf16.mxu0 0
        %1108 = vmatpush1.bf16.msra.mxu0 0
        %1109 = vmatprep.subr.bf16.mxu0 0
        %1110 = vmatpush1.bf16.msra.mxu0 0
        %1111 = vmatprep.subr.bf16.mxu0 0
        %1112 = vmatpush1.bf16.msra.mxu0 0
        %1113 = vmatprep.subr.bf16.mxu0 0
        %1114 = vmatpush1.bf16.msra.mxu0 0
        %1115 = vmatprep.subr.bf16.mxu0 0
        %1116 = vmatpush1.bf16.msra.mxu0 0
        %1117 = vmatprep.subr.bf16.mxu0 0
        %1118 = vmatpush1.bf16.msra.mxu0 0
        %1119 = vmatprep.subr.bf16.mxu0 0
        %1120 = vmatpush1.bf16.msra.mxu0 0
        %1121 = vmatprep.subr.bf16.mxu0 0
        %1122 = vmatpush1.bf16.msra.mxu0 0
        %1123 = vmatprep.subr.bf16.mxu0 0
        %1124 = vmatpush1.bf16.msra.mxu0 0
        %1125 = vmatprep.subr.bf16.mxu0 0
        %1126 = vmatpush1.bf16.msra.mxu0 0
        %1127 = vmatprep.subr.bf16.mxu0 0
        %1128 = vmatpush1.bf16.msra.mxu0 0
        %1129 = vmatprep.subr.bf16.mxu0 0
        %1130 = vmatpush1.bf16.msra.mxu0 0
        %1131 = vmatprep.subr.bf16.mxu0 0
        %1132 = vmatpush1.bf16.msra.mxu0 0
        %1133 = vmatprep.mubr.bf16.mxu0 0
        %1134 = vmatmul.mubr.bf16.gmra.mrb[0].mxu0 %v1051
        %v1135 = vpop.f32.mrb[0].mxu0
        %v1136 = vadd.f32 %v844, %v1135
        %v1137 = vpop.f32.mrb[0].mxu0
        %v1138 = vpop.f32.mrb[0].mxu0
        %v1139 = vadd.f32 %v847, %v1138
        %v1140 = vpop.f32.mrb[0].mxu0
        %1141 = vmatprep.mubr.bf16.mxu0 0
        %1142 = vmatmul.mubr.bf16.gmra.mrb[0].mxu0 %v1054
        %v1143 = vpop.f32.mrb[0].mxu0
        %v1144 = vadd.f32 %v852, %v1143
        %v1145 = vpop.f32.mrb[0].mxu0
        %v1146 = vpop.f32.mrb[0].mxu0
        %v1147 = vadd.f32 %v855, %v1146
        %v1148 = vpop.f32.mrb[0].mxu0
        %1149 = vmatprep.mubr.bf16.mxu0 0
        %1150 = vmatmul.mubr.bf16.gmra.mrb[0].mxu0 %v1057
        %v1151 = vpop.f32.mrb[0].mxu0
        %v1152 = vadd.f32 %v860, %v1151
        %v1153 = vpop.f32.mrb[0].mxu0
        %v1154 = vpop.f32.mrb[0].mxu0
        %v1155 = vadd.f32 %v863, %v1154
        %v1156 = vpop.f32.mrb[0].mxu0
        %1157 = vmatprep.mubr.bf16.mxu0 0
        %1158 = vmatmul.mubr.bf16.gmra.mrb[0].mxu0 %v1060
        %v1159 = vpop.f32.mrb[0].mxu0
        %v1160 = vadd.f32 %v868, %v1159
        %v1161 = vpop.f32.mrb[0].mxu0
        %v1162 = vpop.f32.mrb[0].mxu0
        %v1163 = vadd.f32 %v871, %v1162
        %v1164 = vpop.f32.mrb[0].mxu0
        %1165 = vmatprep.mubr.bf16.mxu0 0
        %1166 = vmatmul.mubr.bf16.gmra.mrb[0].mxu0 %v1063
        %v1167 = vpop.f32.mrb[0].mxu0
        %v1168 = vadd.f32 %v876, %v1167
        %v1169 = vpop.f32.mrb[0].mxu0
        %v1170 = vpop.f32.mrb[0].mxu0
        %v1171 = vadd.f32 %v879, %v1170
        %v1172 = vpop.f32.mrb[0].mxu0
        %1173 = vmatprep.mubr.bf16.mxu0 0
        %1174 = vmatmul.mubr.bf16.gmra.mrb[0].mxu0 %v1066
        %v1175 = vpop.f32.mrb[0].mxu0
        %v1176 = vadd.f32 %v884, %v1175
        %v1177 = vpop.f32.mrb[0].mxu0
        %v1178 = vpop.f32.mrb[0].mxu0
        %v1179 = vadd.f32 %v887, %v1178
        %v1180 = vpop.f32.mrb[0].mxu0
        %1181 = vmatprep.mubr.bf16.mxu0 0
        %1182 = vmatmul.mubr.bf16.gmra.mrb[0].mxu0 %v1069
        %v1183 = vpop.f32.mrb[0].mxu0
        %v1184 = vadd.f32 %v892, %v1183
        %v1185 = vpop.f32.mrb[0].mxu0
        %v1186 = vpop.f32.mrb[0].mxu0
        %v1187 = vadd.f32 %v895, %v1186
        %v1188 = vpop.f32.mrb[0].mxu0
        %1189 = vmatprep.mubr.bf16.mxu0 0
        %1190 = vmatmul.mubr.bf16.gmra.mrb[0].mxu0 %v1072
        %v1191 = vpop.f32.mrb[0].mxu0
        %v1192 = vadd.f32 %v900, %v1191
        %v1193 = vpop.f32.mrb[0].mxu0
        %v1194 = vpop.f32.mrb[0].mxu0
        %v1195 = vadd.f32 %v903, %v1194
        %v1196 = vpop.f32.mrb[0].mxu0
        %1197 = vmatprep.mubr.bf16.mxu0 0
        %1198 = vmatmul.mubr.bf16.gmra.mrb[0].mxu0 %v1075
        %v1199 = vpop.f32.mrb[0].mxu0
        %v1200 = vadd.f32 %v908, %v1199
        %v1201 = vpop.f32.mrb[0].mxu0
        %v1202 = vpop.f32.mrb[0].mxu0
        %v1203 = vadd.f32 %v911, %v1202
        %v1204 = vpop.f32.mrb[0].mxu0
        %1205 = vmatprep.mubr.bf16.mxu0 0
        %1206 = vmatmul.mubr.bf16.gmra.mrb[0].mxu0 %v1078
        %v1207 = vpop.f32.mrb[0].mxu0
        %v1208 = vadd.f32 %v916, %v1207
        %v1209 = vpop.f32.mrb[0].mxu0
        %v1210 = vpop.f32.mrb[0].mxu0
        %v1211 = vadd.f32 %v919, %v1210
        %v1212 = vpop.f32.mrb[0].mxu0
        %1213 = vmatprep.mubr.bf16.mxu0 0
        %1214 = vmatmul.mubr.bf16.gmra.mrb[0].mxu0 %v1081
        %v1215 = vpop.f32.mrb[0].mxu0
        %v1216 = vadd.f32 %v924, %v1215
        %v1217 = vpop.f32.mrb[0].mxu0
        %v1218 = vpop.f32.mrb[0].mxu0
        %v1219 = vadd.f32 %v927, %v1218
        %v1220 = vpop.f32.mrb[0].mxu0
        %1221 = vmatprep.mubr.bf16.mxu0 0
        %1222 = vmatmul.mubr.bf16.gmra.mrb[0].mxu0 %v1084
        %v1223 = vpop.f32.mrb[0].mxu0
        %v1224 = vadd.f32 %v932, %v1223
        %v1225 = vpop.f32.mrb[0].mxu0
        %v1226 = vpop.f32.mrb[0].mxu0
        %v1227 = vadd.f32 %v935, %v1226
        %v1228 = vpop.f32.mrb[0].mxu0
        %1229 = vmatprep.mubr.bf16.mxu0 0
        %1230 = vmatmul.mubr.bf16.gmra.mrb[0].mxu0 %v1087
        %v1231 = vpop.f32.mrb[0].mxu0
        %v1232 = vadd.f32 %v940, %v1231
        %v1233 = vpop.f32.mrb[0].mxu0
        %v1234 = vpop.f32.mrb[0].mxu0
        %v1235 = vadd.f32 %v943, %v1234
        %v1236 = vpop.f32.mrb[0].mxu0
        %1237 = vmatprep.mubr.bf16.mxu0 0
        %1238 = vmatmul.mubr.bf16.gmra.mrb[0].mxu0 %v1090
        %v1239 = vpop.f32.mrb[0].mxu0
        %v1240 = vadd.f32 %v948, %v1239
        %v1241 = vpop.f32.mrb[0].mxu0
        %v1242 = vpop.f32.mrb[0].mxu0
        %v1243 = vadd.f32 %v951, %v1242
        %v1244 = vpop.f32.mrb[0].mxu0
        %1245 = vmatprep.mubr.bf16.mxu0 0
        %1246 = vmatmul.mubr.bf16.gmra.mrb[0].mxu0 %v1093
        %v1247 = vpop.f32.mrb[0].mxu0
        %v1248 = vadd.f32 %v956, %v1247
        %v1249 = vpop.f32.mrb[0].mxu0
        %v1250 = vpop.f32.mrb[0].mxu0
        %v1251 = vadd.f32 %v959, %v1250
        %v1252 = vpop.f32.mrb[0].mxu0
        %1253 = vmatprep.mubr.bf16.mxu0 0
        %1254 = vmatmul.mubr.bf16.gmra.mrb[0].mxu0 %v1096
        %v1255 = vpop.f32.mrb[0].mxu0
        %v1256 = vadd.f32 %v964, %v1255
        %v1257 = vpop.f32.mrb[0].mxu0
        %v1258 = vpop.f32.mrb[0].mxu0
        %v1259 = vadd.f32 %v967, %v1258
        %v1260 = vpop.f32.mrb[0].mxu0
        %1261 = vdwg.mxu0
        %v1262 = vld [vmem:[%s269] sm:$0xe]
        %v1263 = vld [vmem:[%s269 + $0xc] sm:$0xe]
        %v1264 = vld [vmem:[%s269 + $0x18] sm:$0xe]
        %v1265 = vld [vmem:[%s269 + $0x24] sm:$0xe]
        %v1266 = vld [vmem:[%s269 + $0x30] sm:$0xe]
        %v1267 = vld [vmem:[%s269 + $0x3c] sm:$0xe]
        %v1268 = vld [vmem:[%s269 + $0x48] sm:$0xe]
        %v1269 = vld [vmem:[%s269 + $0x54] sm:$0xe]
        %v1270 = vld [vmem:[%s269 + $0x60] sm:$0xe]
        %v1271 = vld [vmem:[%s269 + $0x6c] sm:$0xe]
        %v1272 = vld [vmem:[%s269 + $0x78] sm:$0xe]
        %v1273 = vld [vmem:[%s269 + $0x84] sm:$0xe]
        %v1274 = vld [vmem:[%s269 + $0x90] sm:$0xe]
        %v1275 = vld [vmem:[%s269 + $0x9c] sm:$0xe]
        %v1276 = vld [vmem:[%s269 + $0xa8] sm:$0xe]
        %v1277 = vld [vmem:[%s269 + $0xb4] sm:$0xe]
        %vm1310 = vcmask 1042432
        %vm1311 = vcmask 1046532
        %vm1312 = vmor %vm1310, %vm1311
        %v1313 = vrot.slane %v1262, 5
        %v1314 = vrot.slane %v1313, 4
        %v1315 = vrot.slane %v271, 5
        %v1316 = vsel %vm1312, %v1314, %v1315
        %v1317 = vrot.slane %v1315, 4
        %v1318 = vrot.slane %v303, 5
        %v1319 = vsel %vm1312, %v1317, %v1318
        %v1320 = vrot.slane %v1263, 5
        %v1321 = vrot.slane %v1320, 4
        %v1322 = vrot.slane %v273, 5
        %v1323 = vsel %vm1312, %v1321, %v1322
        %v1324 = vrot.slane %v1322, 4
        %v1325 = vrot.slane %v304, 5
        %v1326 = vsel %vm1312, %v1324, %v1325
        %v1327 = vrot.slane %v1264, 5
        %v1328 = vrot.slane %v1327, 4
        %v1329 = vrot.slane %v275, 5
        %v1330 = vsel %vm1312, %v1328, %v1329
        %v1331 = vrot.slane %v1329, 4
        %v1332 = vrot.slane %v305, 5
        %v1333 = vsel %vm1312, %v1331, %v1332
        %v1334 = vrot.slane %v1265, 5
        %v1335 = vrot.slane %v1334, 4
        %v1336 = vrot.slane %v277, 5
        %v1337 = vsel %vm1312, %v1335, %v1336
        %v1338 = vrot.slane %v1336, 4
        %v1339 = vrot.slane %v306, 5
        %v1340 = vsel %vm1312, %v1338, %v1339
        %v1341 = vrot.slane %v1266, 5
        %v1342 = vrot.slane %v1341, 4
        %v1343 = vrot.slane %v279, 5
        %v1344 = vsel %vm1312, %v1342, %v1343
        %v1345 = vrot.slane %v1343, 4
        %v1346 = vrot.slane %v307, 5
        %v1347 = vsel %vm1312, %v1345, %v1346
        %v1348 = vrot.slane %v1267, 5
        %v1349 = vrot.slane %v1348, 4
        %v1350 = vrot.slane %v281, 5
        %v1351 = vsel %vm1312, %v1349, %v1350
        %v1352 = vrot.slane %v1350, 4
        %v1353 = vrot.slane %v308, 5
        %v1354 = vsel %vm1312, %v1352, %v1353
        %v1355 = vrot.slane %v1268, 5
        %v1356 = vrot.slane %v1355, 4
        %v1357 = vrot.slane %v283, 5
        %v1358 = vsel %vm1312, %v1356, %v1357
        %v1359 = vrot.slane %v1357, 4
        %v1360 = vrot.slane %v309, 5
        %v1361 = vsel %vm1312, %v1359, %v1360
        %v1362 = vrot.slane %v1269, 5
        %v1363 = vrot.slane %v1362, 4
        %v1364 = vrot.slane %v285, 5
        %v1365 = vsel %vm1312, %v1363, %v1364
        %v1366 = vrot.slane %v1364, 4
        %v1367 = vrot.slane %v310, 5
        %v1368 = vsel %vm1312, %v1366, %v1367
        %v1369 = vrot.slane %v1270, 5
        %v1370 = vrot.slane %v1369, 4
        %v1371 = vrot.slane %v287, 5
        %v1372 = vsel %vm1312, %v1370, %v1371
        %v1373 = vrot.slane %v1371, 4
        %v1374 = vrot.slane %v311, 5
        %v1375 = vsel %vm1312, %v1373, %v1374
        %v1376 = vrot.slane %v1271, 5
        %v1377 = vrot.slane %v1376, 4
        %v1378 = vrot.slane %v289, 5
        %v1379 = vsel %vm1312, %v1377, %v1378
        %v1380 = vrot.slane %v1378, 4
        %v1381 = vrot.slane %v312, 5
        %v1382 = vsel %vm1312, %v1380, %v1381
        %v1383 = vrot.slane %v1272, 5
        %v1384 = vrot.slane %v1383, 4
        %v1385 = vrot.slane %v291, 5
        %v1386 = vsel %vm1312, %v1384, %v1385
        %v1387 = vrot.slane %v1385, 4
        %v1388 = vrot.slane %v313, 5
        %v1389 = vsel %vm1312, %v1387, %v1388
        %v1390 = vrot.slane %v1273, 5
        %v1391 = vrot.slane %v1390, 4
        %v1392 = vrot.slane %v293, 5
        %v1393 = vsel %vm1312, %v1391, %v1392
        %v1394 = vrot.slane %v1392, 4
        %v1395 = vrot.slane %v314, 5
        %v1396 = vsel %vm1312, %v1394, %v1395
        %v1397 = vrot.slane %v1274, 5
        %v1398 = vrot.slane %v1397, 4
        %v1399 = vrot.slane %v295, 5
        %v1400 = vsel %vm1312, %v1398, %v1399
        %v1401 = vrot.slane %v1399, 4
        %v1402 = vrot.slane %v315, 5
        %v1403 = vsel %vm1312, %v1401, %v1402
        %v1404 = vrot.slane %v1275, 5
        %v1405 = vrot.slane %v1404, 4
        %v1406 = vrot.slane %v297, 5
        %v1407 = vsel %vm1312, %v1405, %v1406
        %v1408 = vrot.slane %v1406, 4
        %v1409 = vrot.slane %v316, 5
        %v1410 = vsel %vm1312, %v1408, %v1409
        %v1411 = vrot.slane %v1276, 5
        %v1412 = vrot.slane %v1411, 4
        %v1413 = vrot.slane %v299, 5
        %v1414 = vsel %vm1312, %v1412, %v1413
        %v1415 = vrot.slane %v1413, 4
        %v1416 = vrot.slane %v317, 5
        %v1417 = vsel %vm1312, %v1415, %v1416
        %v1418 = vrot.slane %v1277, 5
        %v1419 = vrot.slane %v1418, 4
        %v1420 = vrot.slane %v301, 5
        %v1421 = vsel %vm1312, %v1419, %v1420
        %v1422 = vrot.slane %v1420, 4
        %v1423 = vrot.slane %v318, 5
        %v1424 = vsel %vm1312, %v1422, %v1423
        %s1425 = scalar_lea.vmem %s257, 4
        %v1426 = vld [vmem:[%s1425] sm:$0x3]
        %v1427 = vunpack.c.l.b16 %v1316
        %v1428 = vunpack.c.l.b16 %v1319
        %v1429 = vunpack.c.l.b16 %v1323
        %v1430 = vunpack.c.l.b16 %v1326
        %v1431 = vunpack.c.l.b16 %v1330
        %v1432 = vunpack.c.l.b16 %v1333
        %v1433 = vunpack.c.l.b16 %v1337
        %v1434 = vunpack.c.l.b16 %v1340
        %v1435 = vunpack.c.l.b16 %v1344
        %v1436 = vunpack.c.l.b16 %v1347
        %v1437 = vunpack.c.l.b16 %v1351
        %v1438 = vunpack.c.l.b16 %v1354
        %v1439 = vunpack.c.l.b16 %v1358
        %v1440 = vunpack.c.l.b16 %v1361
        %v1441 = vunpack.c.l.b16 %v1365
        %v1442 = vunpack.c.l.b16 %v1368
        %v1443 = vunpack.c.l.b16 %v1372
        %v1444 = vunpack.c.l.b16 %v1375
        %v1445 = vunpack.c.l.b16 %v1379
        %v1446 = vunpack.c.l.b16 %v1382
        %v1447 = vunpack.c.l.b16 %v1386
        %v1448 = vunpack.c.l.b16 %v1389
        %v1449 = vunpack.c.l.b16 %v1393
        %v1450 = vunpack.c.l.b16 %v1396
        %v1451 = vunpack.c.l.b16 %v1400
        %v1452 = vunpack.c.l.b16 %v1403
        %v1453 = vunpack.c.l.b16 %v1407
        %v1454 = vunpack.c.l.b16 %v1410
        %v1455 = vunpack.c.l.b16 %v1414
        %v1456 = vunpack.c.l.b16 %v1417
        %v1457 = vunpack.c.l.b16 %v1421
        %v1458 = vunpack.c.l.b16 %v1424
        %v1459 = vpack.c.b16 %v1428, %v1427
        %v1460 = vpack.c.b16 %v1430, %v1429
        %v1461 = vpack.c.b16 %v1432, %v1431
        %v1462 = vpack.c.b16 %v1434, %v1433
        %v1463 = vpack.c.b16 %v1436, %v1435
        %v1464 = vpack.c.b16 %v1438, %v1437
        %v1465 = vpack.c.b16 %v1440, %v1439
        %v1466 = vpack.c.b16 %v1442, %v1441
        %v1467 = vpack.c.b16 %v1444, %v1443
        %v1468 = vpack.c.b16 %v1446, %v1445
        %v1469 = vpack.c.b16 %v1448, %v1447
        %v1470 = vpack.c.b16 %v1450, %v1449
        %v1471 = vpack.c.b16 %v1452, %v1451
        %v1472 = vpack.c.b16 %v1454, %v1453
        %v1473 = vpack.c.b16 %v1456, %v1455
        %v1474 = vpack.c.b16 %v1458, %v1457
        %v1476 = vsel %vm756, %v1459, 0
        %v1479 = vsel %vm756, %v1460, 0
        %v1482 = vsel %vm756, %v1461, 0
        %v1485 = vsel %vm756, %v1462, 0
        %v1488 = vsel %vm756, %v1463, 0
        %v1491 = vsel %vm756, %v1464, 0
        %v1494 = vsel %vm756, %v1465, 0
        %v1497 = vsel %vm756, %v1466, 0
        %v1500 = vsel %vm756, %v1467, 0
        %v1503 = vsel %vm756, %v1468, 0
        %v1506 = vsel %vm756, %v1469, 0
        %v1509 = vsel %vm756, %v1470, 0
        %v1512 = vsel %vm756, %v1471, 0
        %v1515 = vsel %vm756, %v1472, 0
        %v1518 = vsel %vm756, %v1473, 0
        %v1521 = vsel %vm756, %v1474, 0
        %v1524 = vsel %vm805, %v1426, 0
        %1526 = vmatprep.subr.bf16.mxu0 0
        %1527 = vmatpush1.bf16.msra.mxu0 %v1524
        %1528 = vmatprep.subr.bf16.mxu0 0
        %1529 = vmatpush1.bf16.msra.mxu0 0
        %1530 = vmatprep.subr.bf16.mxu0 0
        %1531 = vmatpush1.bf16.msra.mxu0 0
        %1532 = vmatprep.subr.bf16.mxu0 0
        %1533 = vmatpush1.bf16.msra.mxu0 0
        %1534 = vmatprep.subr.bf16.mxu0 0
        %1535 = vmatpush1.bf16.msra.mxu0 0
        %1536 = vmatprep.subr.bf16.mxu0 0
        %1537 = vmatpush1.bf16.msra.mxu0 0
        %1538 = vmatprep.subr.bf16.mxu0 0
        %1539 = vmatpush1.bf16.msra.mxu0 0
        %1540 = vmatprep.subr.bf16.mxu0 0
        %1541 = vmatpush1.bf16.msra.mxu0 0
        %1542 = vmatprep.subr.bf16.mxu0 0
        %1543 = vmatpush1.bf16.msra.mxu0 0
        %1544 = vmatprep.subr.bf16.mxu0 0
        %1545 = vmatpush1.bf16.msra.mxu0 0
        %1546 = vmatprep.subr.bf16.mxu0 0
        %1547 = vmatpush1.bf16.msra.mxu0 0
        %1548 = vmatprep.subr.bf16.mxu0 0
        %1549 = vmatpush1.bf16.msra.mxu0 0
        %1550 = vmatprep.subr.bf16.mxu0 0
        %1551 = vmatpush1.bf16.msra.mxu0 0
        %1552 = vmatprep.subr.bf16.mxu0 0
        %1553 = vmatpush1.bf16.msra.mxu0 0
        %1554 = vmatprep.subr.bf16.mxu0 0
        %1555 = vmatpush1.bf16.msra.mxu0 0
        %1556 = vmatprep.subr.bf16.mxu0 0
        %1557 = vmatpush1.bf16.msra.mxu0 0
        %1558 = vmatprep.mubr.bf16.mxu0 0
        %1559 = vmatmul.mubr.bf16.gmra.mrb[0].mxu0 %v1476
        %v1560 = vpop.f32.mrb[0].mxu0
        %v1561 = vadd.f32 0.0, %v1560
        %v1562 = vpop.f32.mrb[0].mxu0
        %v1563 = vpop.f32.mrb[0].mxu0
        %v1564 = vadd.f32 0.0, %v1563
        %v1565 = vpop.f32.mrb[0].mxu0
        %1566 = vmatprep.mubr.bf16.mxu0 0
        %1567 = vmatmul.mubr.bf16.gmra.mrb[0].mxu0 %v1479
        %v1568 = vpop.f32.mrb[0].mxu0
        %v1569 = vadd.f32 0.0, %v1568
        %v1570 = vpop.f32.mrb[0].mxu0
        %v1571 = vpop.f32.mrb[0].mxu0
        %v1572 = vadd.f32 0.0, %v1571
        %v1573 = vpop.f32.mrb[0].mxu0
        %1574 = vmatprep.mubr.bf16.mxu0 0
        %1575 = vmatmul.mubr.bf16.gmra.mrb[0].mxu0 %v1482
        %v1576 = vpop.f32.mrb[0].mxu0
        %v1577 = vadd.f32 0.0, %v1576
        %v1578 = vpop.f32.mrb[0].mxu0
        %v1579 = vpop.f32.mrb[0].mxu0
        %v1580 = vadd.f32 0.0, %v1579
        %v1581 = vpop.f32.mrb[0].mxu0
        %1582 = vmatprep.mubr.bf16.mxu0 0
        %1583 = vmatmul.mubr.bf16.gmra.mrb[0].mxu0 %v1485
        %v1584 = vpop.f32.mrb[0].mxu0
        %v1585 = vadd.f32 0.0, %v1584
        %v1586 = vpop.f32.mrb[0].mxu0
        %v1587 = vpop.f32.mrb[0].mxu0
        %v1588 = vadd.f32 0.0, %v1587
        %v1589 = vpop.f32.mrb[0].mxu0
        %1590 = vmatprep.mubr.bf16.mxu0 0
        %1591 = vmatmul.mubr.bf16.gmra.mrb[0].mxu0 %v1488
        %v1592 = vpop.f32.mrb[0].mxu0
        %v1593 = vadd.f32 0.0, %v1592
        %v1594 = vpop.f32.mrb[0].mxu0
        %v1595 = vpop.f32.mrb[0].mxu0
        %v1596 = vadd.f32 0.0, %v1595
        %v1597 = vpop.f32.mrb[0].mxu0
        %1598 = vmatprep.mubr.bf16.mxu0 0
        %1599 = vmatmul.mubr.bf16.gmra.mrb[0].mxu0 %v1491
        %v1600 = vpop.f32.mrb[0].mxu0
        %v1601 = vadd.f32 0.0, %v1600
        %v1602 = vpop.f32.mrb[0].mxu0
        %v1603 = vpop.f32.mrb[0].mxu0
        %v1604 = vadd.f32 0.0, %v1603
        %v1605 = vpop.f32.mrb[0].mxu0
        %1606 = vmatprep.mubr.bf16.mxu0 0
        %1607 = vmatmul.mubr.bf16.gmra.mrb[0].mxu0 %v1494
        %v1608 = vpop.f32.mrb[0].mxu0
        %v1609 = vadd.f32 0.0, %v1608
        %v1610 = vpop.f32.mrb[0].mxu0
        %v1611 = vpop.f32.mrb[0].mxu0
        %v1612 = vadd.f32 0.0, %v1611
        %v1613 = vpop.f32.mrb[0].mxu0
        %1614 = vmatprep.mubr.bf16.mxu0 0
        %1615 = vmatmul.mubr.bf16.gmra.mrb[0].mxu0 %v1497
        %v1616 = vpop.f32.mrb[0].mxu0
        %v1617 = vadd.f32 0.0, %v1616
        %v1618 = vpop.f32.mrb[0].mxu0
        %v1619 = vpop.f32.mrb[0].mxu0
        %v1620 = vadd.f32 0.0, %v1619
        %v1621 = vpop.f32.mrb[0].mxu0
        %1622 = vmatprep.mubr.bf16.mxu0 0
        %1623 = vmatmul.mubr.bf16.gmra.mrb[0].mxu0 %v1500
        %v1624 = vpop.f32.mrb[0].mxu0
        %v1625 = vadd.f32 0.0, %v1624
        %v1626 = vpop.f32.mrb[0].mxu0
        %v1627 = vpop.f32.mrb[0].mxu0
        %v1628 = vadd.f32 0.0, %v1627
        %v1629 = vpop.f32.mrb[0].mxu0
        %1630 = vmatprep.mubr.bf16.mxu0 0
        %1631 = vmatmul.mubr.bf16.gmra.mrb[0].mxu0 %v1503
        %v1632 = vpop.f32.mrb[0].mxu0
        %v1633 = vadd.f32 0.0, %v1632
        %v1634 = vpop.f32.mrb[0].mxu0
        %v1635 = vpop.f32.mrb[0].mxu0
        %v1636 = vadd.f32 0.0, %v1635
        %v1637 = vpop.f32.mrb[0].mxu0
        %1638 = vmatprep.mubr.bf16.mxu0 0
        %1639 = vmatmul.mubr.bf16.gmra.mrb[0].mxu0 %v1506
        %v1640 = vpop.f32.mrb[0].mxu0
        %v1641 = vadd.f32 0.0, %v1640
        %v1642 = vpop.f32.mrb[0].mxu0
        %v1643 = vpop.f32.mrb[0].mxu0
        %v1644 = vadd.f32 0.0, %v1643
        %v1645 = vpop.f32.mrb[0].mxu0
        %1646 = vmatprep.mubr.bf16.mxu0 0
        %1647 = vmatmul.mubr.bf16.gmra.mrb[0].mxu0 %v1509
        %v1648 = vpop.f32.mrb[0].mxu0
        %v1649 = vadd.f32 0.0, %v1648
        %v1650 = vpop.f32.mrb[0].mxu0
        %v1651 = vpop.f32.mrb[0].mxu0
        %v1652 = vadd.f32 0.0, %v1651
        %v1653 = vpop.f32.mrb[0].mxu0
        %1654 = vmatprep.mubr.bf16.mxu0 0
        %1655 = vmatmul.mubr.bf16.gmra.mrb[0].mxu0 %v1512
        %v1656 = vpop.f32.mrb[0].mxu0
        %v1657 = vadd.f32 0.0, %v1656
        %v1658 = vpop.f32.mrb[0].mxu0
        %v1659 = vpop.f32.mrb[0].mxu0
        %v1660 = vadd.f32 0.0, %v1659
        %v1661 = vpop.f32.mrb[0].mxu0
        %1662 = vmatprep.mubr.bf16.mxu0 0
        %1663 = vmatmul.mubr.bf16.gmra.mrb[0].mxu0 %v1515
        %v1664 = vpop.f32.mrb[0].mxu0
        %v1665 = vadd.f32 0.0, %v1664
        %v1666 = vpop.f32.mrb[0].mxu0
        %v1667 = vpop.f32.mrb[0].mxu0
        %v1668 = vadd.f32 0.0, %v1667
        %v1669 = vpop.f32.mrb[0].mxu0
        %1670 = vmatprep.mubr.bf16.mxu0 0
        %1671 = vmatmul.mubr.bf16.gmra.mrb[0].mxu0 %v1518
        %v1672 = vpop.f32.mrb[0].mxu0
        %v1673 = vadd.f32 0.0, %v1672
        %v1674 = vpop.f32.mrb[0].mxu0
        %v1675 = vpop.f32.mrb[0].mxu0
        %v1676 = vadd.f32 0.0, %v1675
        %v1677 = vpop.f32.mrb[0].mxu0
        %1678 = vmatprep.mubr.bf16.mxu0 0
        %1679 = vmatmul.mubr.bf16.gmra.mrb[0].mxu0 %v1521
        %v1680 = vpop.f32.mrb[0].mxu0
        %v1681 = vadd.f32 0.0, %v1680
        %v1682 = vpop.f32.mrb[0].mxu0
        %v1683 = vpop.f32.mrb[0].mxu0
        %v1684 = vadd.f32 0.0, %v1683
        %v1685 = vpop.f32.mrb[0].mxu0
        %1686 = vdwg.mxu0
        %v1687 = vadd.f32 %v1136, %v1561
        %v1688 = vadd.f32 %v1139, %v1564
        %v1689 = vadd.f32 %v1144, %v1569
        %v1690 = vadd.f32 %v1147, %v1572
        %v1691 = vadd.f32 %v1152, %v1577
        %v1692 = vadd.f32 %v1155, %v1580
        %v1693 = vadd.f32 %v1160, %v1585
        %v1694 = vadd.f32 %v1163, %v1588
        %v1695 = vadd.f32 %v1168, %v1593
        %v1696 = vadd.f32 %v1171, %v1596
        %v1697 = vadd.f32 %v1176, %v1601
        %v1698 = vadd.f32 %v1179, %v1604
        %v1699 = vadd.f32 %v1184, %v1609
        %v1700 = vadd.f32 %v1187, %v1612
        %v1701 = vadd.f32 %v1192, %v1617
        %v1702 = vadd.f32 %v1195, %v1620
        %v1703 = vadd.f32 %v1200, %v1625
        %v1704 = vadd.f32 %v1203, %v1628
        %v1705 = vadd.f32 %v1208, %v1633
        %v1706 = vadd.f32 %v1211, %v1636
        %v1707 = vadd.f32 %v1216, %v1641
        %v1708 = vadd.f32 %v1219, %v1644
        %v1709 = vadd.f32 %v1224, %v1649
        %v1710 = vadd.f32 %v1227, %v1652
        %v1711 = vadd.f32 %v1232, %v1657
        %v1712 = vadd.f32 %v1235, %v1660
        %v1713 = vadd.f32 %v1240, %v1665
        %v1714 = vadd.f32 %v1243, %v1668
        %v1715 = vadd.f32 %v1248, %v1673
        %v1716 = vadd.f32 %v1251, %v1676
        %v1717 = vadd.f32 %v1256, %v1681
        %v1718 = vadd.f32 %v1259, %v1684
        %s1719 = sadd.s32 %s266, 1
        %s1720 = smul.u32 %s1719, 3
        %s1721 = smul.addr %s1720, 4
        %s1722 = scalar_lea.vmem %s253, %s1721
        %v1723 = vld [vmem:[%s1722] sm:$0xf]
        %v1724 = vld [vmem:[%s1722 + $0x4] sm:$0xf]
        %v1725 = vld [vmem:[%s1722 + $0xc] sm:$0xf]
        %v1726 = vld [vmem:[%s1722 + $0x10] sm:$0xf]
        %v1727 = vld [vmem:[%s1722 + $0x18] sm:$0xf]
        %v1728 = vld [vmem:[%s1722 + $0x1c] sm:$0xf]
        %v1729 = vld [vmem:[%s1722 + $0x24] sm:$0xf]
        %v1730 = vld [vmem:[%s1722 + $0x28] sm:$0xf]
        %v1731 = vld [vmem:[%s1722 + $0x30] sm:$0xf]
        %v1732 = vld [vmem:[%s1722 + $0x34] sm:$0xf]
        %v1733 = vld [vmem:[%s1722 + $0x3c] sm:$0xf]
        %v1734 = vld [vmem:[%s1722 + $0x40] sm:$0xf]
        %v1735 = vld [vmem:[%s1722 + $0x48] sm:$0xf]
        %v1736 = vld [vmem:[%s1722 + $0x4c] sm:$0xf]
        %v1737 = vld [vmem:[%s1722 + $0x54] sm:$0xf]
        %v1738 = vld [vmem:[%s1722 + $0x58] sm:$0xf]
        %v1739 = vld [vmem:[%s1722 + $0x60] sm:$0xf]
        %v1740 = vld [vmem:[%s1722 + $0x64] sm:$0xf]
        %v1741 = vld [vmem:[%s1722 + $0x6c] sm:$0xf]
        %v1742 = vld [vmem:[%s1722 + $0x70] sm:$0xf]
        %v1743 = vld [vmem:[%s1722 + $0x78] sm:$0xf]
        %v1744 = vld [vmem:[%s1722 + $0x7c] sm:$0xf]
        %v1745 = vld [vmem:[%s1722 + $0x84] sm:$0xf]
        %v1746 = vld [vmem:[%s1722 + $0x88] sm:$0xf]
        %v1747 = vld [vmem:[%s1722 + $0x90] sm:$0xf]
        %v1748 = vld [vmem:[%s1722 + $0x94] sm:$0xf]
        %v1749 = vld [vmem:[%s1722 + $0x9c] sm:$0xf]
        %v1750 = vld [vmem:[%s1722 + $0xa0] sm:$0xf]
        %v1751 = vld [vmem:[%s1722 + $0xa8] sm:$0xf]
        %v1752 = vld [vmem:[%s1722 + $0xac] sm:$0xf]
        %v1753 = vld [vmem:[%s1722 + $0xb4] sm:$0xf]
        %v1754 = vld [vmem:[%s1722 + $0xb8] sm:$0xf]
        %s1755 = scalar_lea.vmem %s257, 6
        %v1756 = vld [vmem:[%s1755] sm:$0x3]
        %v1789 = vunpack.c.l.b16 %v1723
        %v1790 = vunpack.c.l.b16 %v1724
        %v1791 = vunpack.c.l.b16 %v1725
        %v1792 = vunpack.c.l.b16 %v1726
        %v1793 = vunpack.c.l.b16 %v1727
        %v1794 = vunpack.c.l.b16 %v1728
        %v1795 = vunpack.c.l.b16 %v1729
        %v1796 = vunpack.c.l.b16 %v1730
        %v1797 = vunpack.c.l.b16 %v1731
        %v1798 = vunpack.c.l.b16 %v1732
        %v1799 = vunpack.c.l.b16 %v1733
        %v1800 = vunpack.c.l.b16 %v1734
        %v1801 = vunpack.c.l.b16 %v1735
        %v1802 = vunpack.c.l.b16 %v1736
        %v1803 = vunpack.c.l.b16 %v1737
        %v1804 = vunpack.c.l.b16 %v1738
        %v1805 = vunpack.c.l.b16 %v1739
        %v1806 = vunpack.c.l.b16 %v1740
        %v1807 = vunpack.c.l.b16 %v1741
        %v1808 = vunpack.c.l.b16 %v1742
        %v1809 = vunpack.c.l.b16 %v1743
        %v1810 = vunpack.c.l.b16 %v1744
        %v1811 = vunpack.c.l.b16 %v1745
        %v1812 = vunpack.c.l.b16 %v1746
        %v1813 = vunpack.c.l.b16 %v1747
        %v1814 = vunpack.c.l.b16 %v1748
        %v1815 = vunpack.c.l.b16 %v1749
        %v1816 = vunpack.c.l.b16 %v1750
        %v1817 = vunpack.c.l.b16 %v1751
        %v1818 = vunpack.c.l.b16 %v1752
        %v1819 = vunpack.c.l.b16 %v1753
        %v1820 = vunpack.c.l.b16 %v1754
        %v1821 = vpack.c.b16 %v1790, %v1789
        %v1822 = vpack.c.b16 %v1792, %v1791
        %v1823 = vpack.c.b16 %v1794, %v1793
        %v1824 = vpack.c.b16 %v1796, %v1795
        %v1825 = vpack.c.b16 %v1798, %v1797
        %v1826 = vpack.c.b16 %v1800, %v1799
        %v1827 = vpack.c.b16 %v1802, %v1801
        %v1828 = vpack.c.b16 %v1804, %v1803
        %v1829 = vpack.c.b16 %v1806, %v1805
        %v1830 = vpack.c.b16 %v1808, %v1807
        %v1831 = vpack.c.b16 %v1810, %v1809
        %v1832 = vpack.c.b16 %v1812, %v1811
        %v1833 = vpack.c.b16 %v1814, %v1813
        %v1834 = vpack.c.b16 %v1816, %v1815
        %v1835 = vpack.c.b16 %v1818, %v1817
        %v1836 = vpack.c.b16 %v1820, %v1819
        %v1838 = vsel %vm756, %v1821, 0
        %v1841 = vsel %vm756, %v1822, 0
        %v1844 = vsel %vm756, %v1823, 0
        %v1847 = vsel %vm756, %v1824, 0
        %v1850 = vsel %vm756, %v1825, 0
        %v1853 = vsel %vm756, %v1826, 0
        %v1856 = vsel %vm756, %v1827, 0
        %v1859 = vsel %vm756, %v1828, 0
        %v1862 = vsel %vm756, %v1829, 0
        %v1865 = vsel %vm756, %v1830, 0
        %v1868 = vsel %vm756, %v1831, 0
        %v1871 = vsel %vm756, %v1832, 0
        %v1874 = vsel %vm756, %v1833, 0
        %v1877 = vsel %vm756, %v1834, 0
        %v1880 = vsel %vm756, %v1835, 0
        %v1883 = vsel %vm756, %v1836, 0
        %v1886 = vsel %vm805, %v1756, 0
        %1888 = vmatprep.subr.bf16.mxu0 0
        %1889 = vmatpush1.bf16.msra.mxu0 %v1886
        %1890 = vmatprep.subr.bf16.mxu0 0
        %1891 = vmatpush1.bf16.msra.mxu0 0
        %1892 = vmatprep.subr.bf16.mxu0 0
        %1893 = vmatpush1.bf16.msra.mxu0 0
        %1894 = vmatprep.subr.bf16.mxu0 0
        %1895 = vmatpush1.bf16.msra.mxu0 0
        %1896 = vmatprep.subr.bf16.mxu0 0
        %1897 = vmatpush1.bf16.msra.mxu0 0
        %1898 = vmatprep.subr.bf16.mxu0 0
        %1899 = vmatpush1.bf16.msra.mxu0 0
        %1900 = vmatprep.subr.bf16.mxu0 0
        %1901 = vmatpush1.bf16.msra.mxu0 0
        %1902 = vmatprep.subr.bf16.mxu0 0
        %1903 = vmatpush1.bf16.msra.mxu0 0
        %1904 = vmatprep.subr.bf16.mxu0 0
        %1905 = vmatpush1.bf16.msra.mxu0 0
        %1906 = vmatprep.subr.bf16.mxu0 0
        %1907 = vmatpush1.bf16.msra.mxu0 0
        %1908 = vmatprep.subr.bf16.mxu0 0
        %1909 = vmatpush1.bf16.msra.mxu0 0
        %1910 = vmatprep.subr.bf16.mxu0 0
        %1911 = vmatpush1.bf16.msra.mxu0 0
        %1912 = vmatprep.subr.bf16.mxu0 0
        %1913 = vmatpush1.bf16.msra.mxu0 0
        %1914 = vmatprep.subr.bf16.mxu0 0
        %1915 = vmatpush1.bf16.msra.mxu0 0
        %1916 = vmatprep.subr.bf16.mxu0 0
        %1917 = vmatpush1.bf16.msra.mxu0 0
        %1918 = vmatprep.subr.bf16.mxu0 0
        %1919 = vmatpush1.bf16.msra.mxu0 0
        %1920 = vmatprep.mubr.bf16.mxu0 0
        %1921 = vmatmul.mubr.bf16.gmra.mrb[0].mxu0 %v1838
        %v1922 = vpop.f32.mrb[0].mxu0
        %v1923 = vadd.f32 0.0, %v1922
        %v1924 = vpop.f32.mrb[0].mxu0
        %v1925 = vpop.f32.mrb[0].mxu0
        %v1926 = vadd.f32 0.0, %v1925
        %v1927 = vpop.f32.mrb[0].mxu0
        %1928 = vmatprep.mubr.bf16.mxu0 0
        %1929 = vmatmul.mubr.bf16.gmra.mrb[0].mxu0 %v1841
        %v1930 = vpop.f32.mrb[0].mxu0
        %v1931 = vadd.f32 0.0, %v1930
        %v1932 = vpop.f32.mrb[0].mxu0
        %v1933 = vpop.f32.mrb[0].mxu0
        %v1934 = vadd.f32 0.0, %v1933
        %v1935 = vpop.f32.mrb[0].mxu0
        %1936 = vmatprep.mubr.bf16.mxu0 0
        %1937 = vmatmul.mubr.bf16.gmra.mrb[0].mxu0 %v1844
        %v1938 = vpop.f32.mrb[0].mxu0
        %v1939 = vadd.f32 0.0, %v1938
        %v1940 = vpop.f32.mrb[0].mxu0
        %v1941 = vpop.f32.mrb[0].mxu0
        %v1942 = vadd.f32 0.0, %v1941
        %v1943 = vpop.f32.mrb[0].mxu0
        %1944 = vmatprep.mubr.bf16.mxu0 0
        %1945 = vmatmul.mubr.bf16.gmra.mrb[0].mxu0 %v1847
        %v1946 = vpop.f32.mrb[0].mxu0
        %v1947 = vadd.f32 0.0, %v1946
        %v1948 = vpop.f32.mrb[0].mxu0
        %v1949 = vpop.f32.mrb[0].mxu0
        %v1950 = vadd.f32 0.0, %v1949
        %v1951 = vpop.f32.mrb[0].mxu0
        %1952 = vmatprep.mubr.bf16.mxu0 0
        %1953 = vmatmul.mubr.bf16.gmra.mrb[0].mxu0 %v1850
        %v1954 = vpop.f32.mrb[0].mxu0
        %v1955 = vadd.f32 0.0, %v1954
        %v1956 = vpop.f32.mrb[0].mxu0
        %v1957 = vpop.f32.mrb[0].mxu0
        %v1958 = vadd.f32 0.0, %v1957
        %v1959 = vpop.f32.mrb[0].mxu0
        %1960 = vmatprep.mubr.bf16.mxu0 0
        %1961 = vmatmul.mubr.bf16.gmra.mrb[0].mxu0 %v1853
        %v1962 = vpop.f32.mrb[0].mxu0
        %v1963 = vadd.f32 0.0, %v1962
        %v1964 = vpop.f32.mrb[0].mxu0
        %v1965 = vpop.f32.mrb[0].mxu0
        %v1966 = vadd.f32 0.0, %v1965
        %v1967 = vpop.f32.mrb[0].mxu0
        %1968 = vmatprep.mubr.bf16.mxu0 0
        %1969 = vmatmul.mubr.bf16.gmra.mrb[0].mxu0 %v1856
        %v1970 = vpop.f32.mrb[0].mxu0
        %v1971 = vadd.f32 0.0, %v1970
        %v1972 = vpop.f32.mrb[0].mxu0
        %v1973 = vpop.f32.mrb[0].mxu0
        %v1974 = vadd.f32 0.0, %v1973
        %v1975 = vpop.f32.mrb[0].mxu0
        %1976 = vmatprep.mubr.bf16.mxu0 0
        %1977 = vmatmul.mubr.bf16.gmra.mrb[0].mxu0 %v1859
        %v1978 = vpop.f32.mrb[0].mxu0
        %v1979 = vadd.f32 0.0, %v1978
        %v1980 = vpop.f32.mrb[0].mxu0
        %v1981 = vpop.f32.mrb[0].mxu0
        %v1982 = vadd.f32 0.0, %v1981
        %v1983 = vpop.f32.mrb[0].mxu0
        %1984 = vmatprep.mubr.bf16.mxu0 0
        %1985 = vmatmul.mubr.bf16.gmra.mrb[0].mxu0 %v1862
        %v1986 = vpop.f32.mrb[0].mxu0
        %v1987 = vadd.f32 0.0, %v1986
        %v1988 = vpop.f32.mrb[0].mxu0
        %v1989 = vpop.f32.mrb[0].mxu0
        %v1990 = vadd.f32 0.0, %v1989
        %v1991 = vpop.f32.mrb[0].mxu0
        %1992 = vmatprep.mubr.bf16.mxu0 0
        %1993 = vmatmul.mubr.bf16.gmra.mrb[0].mxu0 %v1865
        %v1994 = vpop.f32.mrb[0].mxu0
        %v1995 = vadd.f32 0.0, %v1994
        %v1996 = vpop.f32.mrb[0].mxu0
        %v1997 = vpop.f32.mrb[0].mxu0
        %v1998 = vadd.f32 0.0, %v1997
        %v1999 = vpop.f32.mrb[0].mxu0
        %2000 = vmatprep.mubr.bf16.mxu0 0
        %2001 = vmatmul.mubr.bf16.gmra.mrb[0].mxu0 %v1868
        %v2002 = vpop.f32.mrb[0].mxu0
        %v2003 = vadd.f32 0.0, %v2002
        %v2004 = vpop.f32.mrb[0].mxu0
        %v2005 = vpop.f32.mrb[0].mxu0
        %v2006 = vadd.f32 0.0, %v2005
        %v2007 = vpop.f32.mrb[0].mxu0
        %2008 = vmatprep.mubr.bf16.mxu0 0
        %2009 = vmatmul.mubr.bf16.gmra.mrb[0].mxu0 %v1871
        %v2010 = vpop.f32.mrb[0].mxu0
        %v2011 = vadd.f32 0.0, %v2010
        %v2012 = vpop.f32.mrb[0].mxu0
        %v2013 = vpop.f32.mrb[0].mxu0
        %v2014 = vadd.f32 0.0, %v2013
        %v2015 = vpop.f32.mrb[0].mxu0
        %2016 = vmatprep.mubr.bf16.mxu0 0
        %2017 = vmatmul.mubr.bf16.gmra.mrb[0].mxu0 %v1874
        %v2018 = vpop.f32.mrb[0].mxu0
        %v2019 = vadd.f32 0.0, %v2018
        %v2020 = vpop.f32.mrb[0].mxu0
        %v2021 = vpop.f32.mrb[0].mxu0
        %v2022 = vadd.f32 0.0, %v2021
        %v2023 = vpop.f32.mrb[0].mxu0
        %2024 = vmatprep.mubr.bf16.mxu0 0
        %2025 = vmatmul.mubr.bf16.gmra.mrb[0].mxu0 %v1877
        %v2026 = vpop.f32.mrb[0].mxu0
        %v2027 = vadd.f32 0.0, %v2026
        %v2028 = vpop.f32.mrb[0].mxu0
        %v2029 = vpop.f32.mrb[0].mxu0
        %v2030 = vadd.f32 0.0, %v2029
        %v2031 = vpop.f32.mrb[0].mxu0
        %2032 = vmatprep.mubr.bf16.mxu0 0
        %2033 = vmatmul.mubr.bf16.gmra.mrb[0].mxu0 %v1880
        %v2034 = vpop.f32.mrb[0].mxu0
        %v2035 = vadd.f32 0.0, %v2034
        %v2036 = vpop.f32.mrb[0].mxu0
        %v2037 = vpop.f32.mrb[0].mxu0
        %v2038 = vadd.f32 0.0, %v2037
        %v2039 = vpop.f32.mrb[0].mxu0
        %2040 = vmatprep.mubr.bf16.mxu0 0
        %2041 = vmatmul.mubr.bf16.gmra.mrb[0].mxu0 %v1883
        %v2042 = vpop.f32.mrb[0].mxu0
        %v2043 = vadd.f32 0.0, %v2042
        %v2044 = vpop.f32.mrb[0].mxu0
        %v2045 = vpop.f32.mrb[0].mxu0
        %v2046 = vadd.f32 0.0, %v2045
        %v2047 = vpop.f32.mrb[0].mxu0
        %2048 = vdwg.mxu0
        %v2049 = vadd.f32 %v1687, %v1923
        %v2050 = vadd.f32 %v1688, %v1926
        %v2051 = vadd.f32 %v1689, %v1931
        %v2052 = vadd.f32 %v1690, %v1934
        %v2053 = vadd.f32 %v1691, %v1939
        %v2054 = vadd.f32 %v1692, %v1942
        %v2055 = vadd.f32 %v1693, %v1947
        %v2056 = vadd.f32 %v1694, %v1950
        %v2057 = vadd.f32 %v1695, %v1955
        %v2058 = vadd.f32 %v1696, %v1958
        %v2059 = vadd.f32 %v1697, %v1963
        %v2060 = vadd.f32 %v1698, %v1966
        %v2061 = vadd.f32 %v1699, %v1971
        %v2062 = vadd.f32 %v1700, %v1974
        %v2063 = vadd.f32 %v1701, %v1979
        %v2064 = vadd.f32 %v1702, %v1982
        %v2065 = vadd.f32 %v1703, %v1987
        %v2066 = vadd.f32 %v1704, %v1990
        %v2067 = vadd.f32 %v1705, %v1995
        %v2068 = vadd.f32 %v1706, %v1998
        %v2069 = vadd.f32 %v1707, %v2003
        %v2070 = vadd.f32 %v1708, %v2006
        %v2071 = vadd.f32 %v1709, %v2011
        %v2072 = vadd.f32 %v1710, %v2014
        %v2073 = vadd.f32 %v1711, %v2019
        %v2074 = vadd.f32 %v1712, %v2022
        %v2075 = vadd.f32 %v1713, %v2027
        %v2076 = vadd.f32 %v1714, %v2030
        %v2077 = vadd.f32 %v1715, %v2035
        %v2078 = vadd.f32 %v1716, %v2038
        %v2079 = vadd.f32 %v1717, %v2043
        %v2080 = vadd.f32 %v1718, %v2046
        %v2081 = vld [vmem:[%s1722] sm:$0xf]
        %v2082 = vld [vmem:[%s1722 + $0x4] sm:$0xf]
        %v2083 = vld [vmem:[%s1722 + $0x8] sm:$0x1]
        %v2084 = vld [vmem:[%s1722 + $0xc] sm:$0xf]
        %v2085 = vld [vmem:[%s1722 + $0x10] sm:$0xf]
        %v2086 = vld [vmem:[%s1722 + $0x14] sm:$0x1]
        %v2087 = vld [vmem:[%s1722 + $0x18] sm:$0xf]
        %v2088 = vld [vmem:[%s1722 + $0x1c] sm:$0xf]
        %v2089 = vld [vmem:[%s1722 + $0x20] sm:$0x1]
        %v2090 = vld [vmem:[%s1722 + $0x24] sm:$0xf]
        %v2091 = vld [vmem:[%s1722 + $0x28] sm:$0xf]
        %v2092 = vld [vmem:[%s1722 + $0x2c] sm:$0x1]
        %v2093 = vld [vmem:[%s1722 + $0x30] sm:$0xf]
        %v2094 = vld [vmem:[%s1722 + $0x34] sm:$0xf]
        %v2095 = vld [vmem:[%s1722 + $0x38] sm:$0x1]
        %v2096 = vld [vmem:[%s1722 + $0x3c] sm:$0xf]
        %v2097 = vld [vmem:[%s1722 + $0x40] sm:$0xf]
        %v2098 = vld [vmem:[%s1722 + $0x44] sm:$0x1]
        %v2099 = vld [vmem:[%s1722 + $0x48] sm:$0xf]
        %v2100 = vld [vmem:[%s1722 + $0x4c] sm:$0xf]
        %v2101 = vld [vmem:[%s1722 + $0x50] sm:$0x1]
        %v2102 = vld [vmem:[%s1722 + $0x54] sm:$0xf]
        %v2103 = vld [vmem:[%s1722 + $0x58] sm:$0xf]
        %v2104 = vld [vmem:[%s1722 + $0x5c] sm:$0x1]
        %v2105 = vld [vmem:[%s1722 + $0x60] sm:$0xf]
        %v2106 = vld [vmem:[%s1722 + $0x64] sm:$0xf]
        %v2107 = vld [vmem:[%s1722 + $0x68] sm:$0x1]
        %v2108 = vld [vmem:[%s1722 + $0x6c] sm:$0xf]
        %v2109 = vld [vmem:[%s1722 + $0x70] sm:$0xf]
        %v2110 = vld [vmem:[%s1722 + $0x74] sm:$0x1]
        %v2111 = vld [vmem:[%s1722 + $0x78] sm:$0xf]
        %v2112 = vld [vmem:[%s1722 + $0x7c] sm:$0xf]
        %v2113 = vld [vmem:[%s1722 + $0x80] sm:$0x1]
        %v2114 = vld [vmem:[%s1722 + $0x84] sm:$0xf]
        %v2115 = vld [vmem:[%s1722 + $0x88] sm:$0xf]
        %v2116 = vld [vmem:[%s1722 + $0x8c] sm:$0x1]
        %v2117 = vld [vmem:[%s1722 + $0x90] sm:$0xf]
        %v2118 = vld [vmem:[%s1722 + $0x94] sm:$0xf]
        %v2119 = vld [vmem:[%s1722 + $0x98] sm:$0x1]
        %v2120 = vld [vmem:[%s1722 + $0x9c] sm:$0xf]
        %v2121 = vld [vmem:[%s1722 + $0xa0] sm:$0xf]
        %v2122 = vld [vmem:[%s1722 + $0xa4] sm:$0x1]
        %v2123 = vld [vmem:[%s1722 + $0xa8] sm:$0xf]
        %v2124 = vld [vmem:[%s1722 + $0xac] sm:$0xf]
        %v2125 = vld [vmem:[%s1722 + $0xb0] sm:$0x1]
        %v2126 = vld [vmem:[%s1722 + $0xb4] sm:$0xf]
        %v2127 = vld [vmem:[%s1722 + $0xb8] sm:$0xf]
        %v2128 = vld [vmem:[%s1722 + $0xbc] sm:$0x1]
        %v2130 = vshrl.u32 %v2081, 16
        %v2132 = vrot.slane %v2130, 4
        %v2133 = vshll.u32 %v2081, 16
        %v2135 = vrot.slane %v2133, 5
        %v2136 = vor.u32 %v2132, %v2135
        %v2137 = vrot.slane %v2136, 4
        %v2139 = vshll.u32 %v2082, 16
        %v2141 = vrot.slane %v2139, 5
        %v2142 = vsel %vm321, %v2137, %v2141
        %v2143 = vshrl.u32 %v2082, 16
        %v2145 = vrot.slane %v2143, 4
        %v2146 = vor.u32 %v2145, %v2141
        %v2147 = vrot.slane %v2146, 4
        %v2149 = vshll.u32 %v2083, 16
        %v2151 = vrot.slane %v2149, 5
        %v2152 = vsel %vm321, %v2147, %v2151
        %v2154 = vshrl.u32 %v2084, 16
        %v2156 = vrot.slane %v2154, 4
        %v2157 = vshll.u32 %v2084, 16
        %v2159 = vrot.slane %v2157, 5
        %v2160 = vor.u32 %v2156, %v2159
        %v2161 = vrot.slane %v2160, 4
        %v2163 = vshll.u32 %v2085, 16
        %v2165 = vrot.slane %v2163, 5
        %v2166 = vsel %vm321, %v2161, %v2165
        %v2167 = vshrl.u32 %v2085, 16
        %v2169 = vrot.slane %v2167, 4
        %v2170 = vor.u32 %v2169, %v2165
        %v2171 = vrot.slane %v2170, 4
        %v2173 = vshll.u32 %v2086, 16
        %v2175 = vrot.slane %v2173, 5
        %v2176 = vsel %vm321, %v2171, %v2175
        %v2178 = vshrl.u32 %v2087, 16
        %v2180 = vrot.slane %v2178, 4
        %v2181 = vshll.u32 %v2087, 16
        %v2183 = vrot.slane %v2181, 5
        %v2184 = vor.u32 %v2180, %v2183
        %v2185 = vrot.slane %v2184, 4
        %v2187 = vshll.u32 %v2088, 16
        %v2189 = vrot.slane %v2187, 5
        %v2190 = vsel %vm321, %v2185, %v2189
        %v2191 = vshrl.u32 %v2088, 16
        %v2193 = vrot.slane %v2191, 4
        %v2194 = vor.u32 %v2193, %v2189
        %v2195 = vrot.slane %v2194, 4
        %v2197 = vshll.u32 %v2089, 16
        %v2199 = vrot.slane %v2197, 5
        %v2200 = vsel %vm321, %v2195, %v2199
        %v2202 = vshrl.u32 %v2090, 16
        %v2204 = vrot.slane %v2202, 4
        %v2205 = vshll.u32 %v2090, 16
        %v2207 = vrot.slane %v2205, 5
        %v2208 = vor.u32 %v2204, %v2207
        %v2209 = vrot.slane %v2208, 4
        %v2211 = vshll.u32 %v2091, 16
        %v2213 = vrot.slane %v2211, 5
        %v2214 = vsel %vm321, %v2209, %v2213
        %v2215 = vshrl.u32 %v2091, 16
        %v2217 = vrot.slane %v2215, 4
        %v2218 = vor.u32 %v2217, %v2213
        %v2219 = vrot.slane %v2218, 4
        %v2221 = vshll.u32 %v2092, 16
        %v2223 = vrot.slane %v2221, 5
        %v2224 = vsel %vm321, %v2219, %v2223
        %v2226 = vshrl.u32 %v2093, 16
        %v2228 = vrot.slane %v2226, 4
        %v2229 = vshll.u32 %v2093, 16
        %v2231 = vrot.slane %v2229, 5
        %v2232 = vor.u32 %v2228, %v2231
        %v2233 = vrot.slane %v2232, 4
        %v2235 = vshll.u32 %v2094, 16
        %v2237 = vrot.slane %v2235, 5
        %v2238 = vsel %vm321, %v2233, %v2237
        %v2239 = vshrl.u32 %v2094, 16
        %v2241 = vrot.slane %v2239, 4
        %v2242 = vor.u32 %v2241, %v2237
        %v2243 = vrot.slane %v2242, 4
        %v2245 = vshll.u32 %v2095, 16
        %v2247 = vrot.slane %v2245, 5
        %v2248 = vsel %vm321, %v2243, %v2247
        %v2250 = vshrl.u32 %v2096, 16
        %v2252 = vrot.slane %v2250, 4
        %v2253 = vshll.u32 %v2096, 16
        %v2255 = vrot.slane %v2253, 5
        %v2256 = vor.u32 %v2252, %v2255
        %v2257 = vrot.slane %v2256, 4
        %v2259 = vshll.u32 %v2097, 16
        %v2261 = vrot.slane %v2259, 5
        %v2262 = vsel %vm321, %v2257, %v2261
        %v2263 = vshrl.u32 %v2097, 16
        %v2265 = vrot.slane %v2263, 4
        %v2266 = vor.u32 %v2265, %v2261
        %v2267 = vrot.slane %v2266, 4
        %v2269 = vshll.u32 %v2098, 16
        %v2271 = vrot.slane %v2269, 5
        %v2272 = vsel %vm321, %v2267, %v2271
        %v2274 = vshrl.u32 %v2099, 16
        %v2276 = vrot.slane %v2274, 4
        %v2277 = vshll.u32 %v2099, 16
        %v2279 = vrot.slane %v2277, 5
        %v2280 = vor.u32 %v2276, %v2279
        %v2281 = vrot.slane %v2280, 4
        %v2283 = vshll.u32 %v2100, 16
        %v2285 = vrot.slane %v2283, 5
        %v2286 = vsel %vm321, %v2281, %v2285
        %v2287 = vshrl.u32 %v2100, 16
        %v2289 = vrot.slane %v2287, 4
        %v2290 = vor.u32 %v2289, %v2285
        %v2291 = vrot.slane %v2290, 4
        %v2293 = vshll.u32 %v2101, 16
        %v2295 = vrot.slane %v2293, 5
        %v2296 = vsel %vm321, %v2291, %v2295
        %v2298 = vshrl.u32 %v2102, 16
        %v2300 = vrot.slane %v2298, 4
        %v2301 = vshll.u32 %v2102, 16
        %v2303 = vrot.slane %v2301, 5
        %v2304 = vor.u32 %v2300, %v2303
        %v2305 = vrot.slane %v2304, 4
        %v2307 = vshll.u32 %v2103, 16
        %v2309 = vrot.slane %v2307, 5
        %v2310 = vsel %vm321, %v2305, %v2309
        %v2311 = vshrl.u32 %v2103, 16
        %v2313 = vrot.slane %v2311, 4
        %v2314 = vor.u32 %v2313, %v2309
        %v2315 = vrot.slane %v2314, 4
        %v2317 = vshll.u32 %v2104, 16
        %v2319 = vrot.slane %v2317, 5
        %v2320 = vsel %vm321, %v2315, %v2319
        %v2322 = vshrl.u32 %v2105, 16
        %v2324 = vrot.slane %v2322, 4
        %v2325 = vshll.u32 %v2105, 16
        %v2327 = vrot.slane %v2325, 5
        %v2328 = vor.u32 %v2324, %v2327
        %v2329 = vrot.slane %v2328, 4
        %v2331 = vshll.u32 %v2106, 16
        %v2333 = vrot.slane %v2331, 5
        %v2334 = vsel %vm321, %v2329, %v2333
        %v2335 = vshrl.u32 %v2106, 16
        %v2337 = vrot.slane %v2335, 4
        %v2338 = vor.u32 %v2337, %v2333
        %v2339 = vrot.slane %v2338, 4
        %v2341 = vshll.u32 %v2107, 16
        %v2343 = vrot.slane %v2341, 5
        %v2344 = vsel %vm321, %v2339, %v2343
        %v2346 = vshrl.u32 %v2108, 16
        %v2348 = vrot.slane %v2346, 4
        %v2349 = vshll.u32 %v2108, 16
        %v2351 = vrot.slane %v2349, 5
        %v2352 = vor.u32 %v2348, %v2351
        %v2353 = vrot.slane %v2352, 4
        %v2355 = vshll.u32 %v2109, 16
        %v2357 = vrot.slane %v2355, 5
        %v2358 = vsel %vm321, %v2353, %v2357
        %v2359 = vshrl.u32 %v2109, 16
        %v2361 = vrot.slane %v2359, 4
        %v2362 = vor.u32 %v2361, %v2357
        %v2363 = vrot.slane %v2362, 4
        %v2365 = vshll.u32 %v2110, 16
        %v2367 = vrot.slane %v2365, 5
        %v2368 = vsel %vm321, %v2363, %v2367
        %v2370 = vshrl.u32 %v2111, 16
        %v2372 = vrot.slane %v2370, 4
        %v2373 = vshll.u32 %v2111, 16
        %v2375 = vrot.slane %v2373, 5
        %v2376 = vor.u32 %v2372, %v2375
        %v2377 = vrot.slane %v2376, 4
        %v2379 = vshll.u32 %v2112, 16
        %v2381 = vrot.slane %v2379, 5
        %v2382 = vsel %vm321, %v2377, %v2381
        %v2383 = vshrl.u32 %v2112, 16
        %v2385 = vrot.slane %v2383, 4
        %v2386 = vor.u32 %v2385, %v2381
        %v2387 = vrot.slane %v2386, 4
        %v2389 = vshll.u32 %v2113, 16
        %v2391 = vrot.slane %v2389, 5
        %v2392 = vsel %vm321, %v2387, %v2391
        %v2394 = vshrl.u32 %v2114, 16
        %v2396 = vrot.slane %v2394, 4
        %v2397 = vshll.u32 %v2114, 16
        %v2399 = vrot.slane %v2397, 5
        %v2400 = vor.u32 %v2396, %v2399
        %v2401 = vrot.slane %v2400, 4
        %v2403 = vshll.u32 %v2115, 16
        %v2405 = vrot.slane %v2403, 5
        %v2406 = vsel %vm321, %v2401, %v2405
        %v2407 = vshrl.u32 %v2115, 16
        %v2409 = vrot.slane %v2407, 4
        %v2410 = vor.u32 %v2409, %v2405
        %v2411 = vrot.slane %v2410, 4
        %v2413 = vshll.u32 %v2116, 16
        %v2415 = vrot.slane %v2413, 5
        %v2416 = vsel %vm321, %v2411, %v2415
        %v2418 = vshrl.u32 %v2117, 16
        %v2420 = vrot.slane %v2418, 4
        %v2421 = vshll.u32 %v2117, 16
        %v2423 = vrot.slane %v2421, 5
        %v2424 = vor.u32 %v2420, %v2423
        %v2425 = vrot.slane %v2424, 4
        %v2427 = vshll.u32 %v2118, 16
        %v2429 = vrot.slane %v2427, 5
        %v2430 = vsel %vm321, %v2425, %v2429
        %v2431 = vshrl.u32 %v2118, 16
        %v2433 = vrot.slane %v2431, 4
        %v2434 = vor.u32 %v2433, %v2429
        %v2435 = vrot.slane %v2434, 4
        %v2437 = vshll.u32 %v2119, 16
        %v2439 = vrot.slane %v2437, 5
        %v2440 = vsel %vm321, %v2435, %v2439
        %v2442 = vshrl.u32 %v2120, 16
        %v2444 = vrot.slane %v2442, 4
        %v2445 = vshll.u32 %v2120, 16
        %v2447 = vrot.slane %v2445, 5
        %v2448 = vor.u32 %v2444, %v2447
        %v2449 = vrot.slane %v2448, 4
        %v2451 = vshll.u32 %v2121, 16
        %v2453 = vrot.slane %v2451, 5
        %v2454 = vsel %vm321, %v2449, %v2453
        %v2455 = vshrl.u32 %v2121, 16
        %v2457 = vrot.slane %v2455, 4
        %v2458 = vor.u32 %v2457, %v2453
        %v2459 = vrot.slane %v2458, 4
        %v2461 = vshll.u32 %v2122, 16
        %v2463 = vrot.slane %v2461, 5
        %v2464 = vsel %vm321, %v2459, %v2463
        %v2466 = vshrl.u32 %v2123, 16
        %v2468 = vrot.slane %v2466, 4
        %v2469 = vshll.u32 %v2123, 16
        %v2471 = vrot.slane %v2469, 5
        %v2472 = vor.u32 %v2468, %v2471
        %v2473 = vrot.slane %v2472, 4
        %v2475 = vshll.u32 %v2124, 16
        %v2477 = vrot.slane %v2475, 5
        %v2478 = vsel %vm321, %v2473, %v2477
        %v2479 = vshrl.u32 %v2124, 16
        %v2481 = vrot.slane %v2479, 4
        %v2482 = vor.u32 %v2481, %v2477
        %v2483 = vrot.slane %v2482, 4
        %v2485 = vshll.u32 %v2125, 16
        %v2487 = vrot.slane %v2485, 5
        %v2488 = vsel %vm321, %v2483, %v2487
        %v2490 = vshrl.u32 %v2126, 16
        %v2492 = vrot.slane %v2490, 4
        %v2493 = vshll.u32 %v2126, 16
        %v2495 = vrot.slane %v2493, 5
        %v2496 = vor.u32 %v2492, %v2495
        %v2497 = vrot.slane %v2496, 4
        %v2499 = vshll.u32 %v2127, 16
        %v2501 = vrot.slane %v2499, 5
        %v2502 = vsel %vm321, %v2497, %v2501
        %v2503 = vshrl.u32 %v2127, 16
        %v2505 = vrot.slane %v2503, 4
        %v2506 = vor.u32 %v2505, %v2501
        %v2507 = vrot.slane %v2506, 4
        %v2509 = vshll.u32 %v2128, 16
        %v2511 = vrot.slane %v2509, 5
        %v2512 = vsel %vm321, %v2507, %v2511
        %s2513 = scalar_lea.vmem %s257, 8
        %v2514 = vld [vmem:[%s2513] sm:$0x3]
        %v2515 = vunpack.c.l.b16 %v2142
        %v2516 = vunpack.c.l.b16 %v2152
        %v2517 = vunpack.c.l.b16 %v2166
        %v2518 = vunpack.c.l.b16 %v2176
        %v2519 = vunpack.c.l.b16 %v2190
        %v2520 = vunpack.c.l.b16 %v2200
        %v2521 = vunpack.c.l.b16 %v2214
        %v2522 = vunpack.c.l.b16 %v2224
        %v2523 = vunpack.c.l.b16 %v2238
        %v2524 = vunpack.c.l.b16 %v2248
        %v2525 = vunpack.c.l.b16 %v2262
        %v2526 = vunpack.c.l.b16 %v2272
        %v2527 = vunpack.c.l.b16 %v2286
        %v2528 = vunpack.c.l.b16 %v2296
        %v2529 = vunpack.c.l.b16 %v2310
        %v2530 = vunpack.c.l.b16 %v2320
        %v2531 = vunpack.c.l.b16 %v2334
        %v2532 = vunpack.c.l.b16 %v2344
        %v2533 = vunpack.c.l.b16 %v2358
        %v2534 = vunpack.c.l.b16 %v2368
        %v2535 = vunpack.c.l.b16 %v2382
        %v2536 = vunpack.c.l.b16 %v2392
        %v2537 = vunpack.c.l.b16 %v2406
        %v2538 = vunpack.c.l.b16 %v2416
        %v2539 = vunpack.c.l.b16 %v2430
        %v2540 = vunpack.c.l.b16 %v2440
        %v2541 = vunpack.c.l.b16 %v2454
        %v2542 = vunpack.c.l.b16 %v2464
        %v2543 = vunpack.c.l.b16 %v2478
        %v2544 = vunpack.c.l.b16 %v2488
        %v2545 = vunpack.c.l.b16 %v2502
        %v2546 = vunpack.c.l.b16 %v2512
        %v2547 = vpack.c.b16 %v2516, %v2515
        %v2548 = vpack.c.b16 %v2518, %v2517
        %v2549 = vpack.c.b16 %v2520, %v2519
        %v2550 = vpack.c.b16 %v2522, %v2521
        %v2551 = vpack.c.b16 %v2524, %v2523
        %v2552 = vpack.c.b16 %v2526, %v2525
        %v2553 = vpack.c.b16 %v2528, %v2527
        %v2554 = vpack.c.b16 %v2530, %v2529
        %v2555 = vpack.c.b16 %v2532, %v2531
        %v2556 = vpack.c.b16 %v2534, %v2533
        %v2557 = vpack.c.b16 %v2536, %v2535
        %v2558 = vpack.c.b16 %v2538, %v2537
        %v2559 = vpack.c.b16 %v2540, %v2539
        %v2560 = vpack.c.b16 %v2542, %v2541
        %v2561 = vpack.c.b16 %v2544, %v2543
        %v2562 = vpack.c.b16 %v2546, %v2545
        %v2564 = vsel %vm756, %v2547, 0
        %v2567 = vsel %vm756, %v2548, 0
        %v2570 = vsel %vm756, %v2549, 0
        %v2573 = vsel %vm756, %v2550, 0
        %v2576 = vsel %vm756, %v2551, 0
        %v2579 = vsel %vm756, %v2552, 0
        %v2582 = vsel %vm756, %v2553, 0
        %v2585 = vsel %vm756, %v2554, 0
        %v2588 = vsel %vm756, %v2555, 0
        %v2591 = vsel %vm756, %v2556, 0
        %v2594 = vsel %vm756, %v2557, 0
        %v2597 = vsel %vm756, %v2558, 0
        %v2600 = vsel %vm756, %v2559, 0
        %v2603 = vsel %vm756, %v2560, 0
        %v2606 = vsel %vm756, %v2561, 0
        %v2609 = vsel %vm756, %v2562, 0
        %v2612 = vsel %vm805, %v2514, 0
        %2614 = vmatprep.subr.bf16.mxu0 0
        %2615 = vmatpush1.bf16.msra.mxu0 %v2612
        %2616 = vmatprep.subr.bf16.mxu0 0
        %2617 = vmatpush1.bf16.msra.mxu0 0
        %2618 = vmatprep.subr.bf16.mxu0 0
        %2619 = vmatpush1.bf16.msra.mxu0 0
        %2620 = vmatprep.subr.bf16.mxu0 0
        %2621 = vmatpush1.bf16.msra.mxu0 0
        %2622 = vmatprep.subr.bf16.mxu0 0
        %2623 = vmatpush1.bf16.msra.mxu0 0
        %2624 = vmatprep.subr.bf16.mxu0 0
        %2625 = vmatpush1.bf16.msra.mxu0 0
        %2626 = vmatprep.subr.bf16.mxu0 0
        %2627 = vmatpush1.bf16.msra.mxu0 0
        %2628 = vmatprep.subr.bf16.mxu0 0
        %2629 = vmatpush1.bf16.msra.mxu0 0
        %2630 = vmatprep.subr.bf16.mxu0 0
        %2631 = vmatpush1.bf16.msra.mxu0 0
        %2632 = vmatprep.subr.bf16.mxu0 0
        %2633 = vmatpush1.bf16.msra.mxu0 0
        %2634 = vmatprep.subr.bf16.mxu0 0
        %2635 = vmatpush1.bf16.msra.mxu0 0
        %2636 = vmatprep.subr.bf16.mxu0 0
        %2637 = vmatpush1.bf16.msra.mxu0 0
        %2638 = vmatprep.subr.bf16.mxu0 0
        %2639 = vmatpush1.bf16.msra.mxu0 0
        %2640 = vmatprep.subr.bf16.mxu0 0
        %2641 = vmatpush1.bf16.msra.mxu0 0
        %2642 = vmatprep.subr.bf16.mxu0 0
        %2643 = vmatpush1.bf16.msra.mxu0 0
        %2644 = vmatprep.subr.bf16.mxu0 0
        %2645 = vmatpush1.bf16.msra.mxu0 0
        %2646 = vmatprep.mubr.bf16.mxu0 0
        %2647 = vmatmul.mubr.bf16.gmra.mrb[0].mxu0 %v2564
        %v2648 = vpop.f32.mrb[0].mxu0
        %v2649 = vadd.f32 0.0, %v2648
        %v2650 = vpop.f32.mrb[0].mxu0
        %v2651 = vpop.f32.mrb[0].mxu0
        %v2652 = vadd.f32 0.0, %v2651
        %v2653 = vpop.f32.mrb[0].mxu0
        %2654 = vmatprep.mubr.bf16.mxu0 0
        %2655 = vmatmul.mubr.bf16.gmra.mrb[0].mxu0 %v2567
        %v2656 = vpop.f32.mrb[0].mxu0
        %v2657 = vadd.f32 0.0, %v2656
        %v2658 = vpop.f32.mrb[0].mxu0
        %v2659 = vpop.f32.mrb[0].mxu0
        %v2660 = vadd.f32 0.0, %v2659
        %v2661 = vpop.f32.mrb[0].mxu0
        %2662 = vmatprep.mubr.bf16.mxu0 0
        %2663 = vmatmul.mubr.bf16.gmra.mrb[0].mxu0 %v2570
        %v2664 = vpop.f32.mrb[0].mxu0
        %v2665 = vadd.f32 0.0, %v2664
        %v2666 = vpop.f32.mrb[0].mxu0
        %v2667 = vpop.f32.mrb[0].mxu0
        %v2668 = vadd.f32 0.0, %v2667
        %v2669 = vpop.f32.mrb[0].mxu0
        %2670 = vmatprep.mubr.bf16.mxu0 0
        %2671 = vmatmul.mubr.bf16.gmra.mrb[0].mxu0 %v2573
        %v2672 = vpop.f32.mrb[0].mxu0
        %v2673 = vadd.f32 0.0, %v2672
        %v2674 = vpop.f32.mrb[0].mxu0
        %v2675 = vpop.f32.mrb[0].mxu0
        %v2676 = vadd.f32 0.0, %v2675
        %v2677 = vpop.f32.mrb[0].mxu0
        %2678 = vmatprep.mubr.bf16.mxu0 0
        %2679 = vmatmul.mubr.bf16.gmra.mrb[0].mxu0 %v2576
        %v2680 = vpop.f32.mrb[0].mxu0
        %v2681 = vadd.f32 0.0, %v2680
        %v2682 = vpop.f32.mrb[0].mxu0
        %v2683 = vpop.f32.mrb[0].mxu0
        %v2684 = vadd.f32 0.0, %v2683
        %v2685 = vpop.f32.mrb[0].mxu0
        %2686 = vmatprep.mubr.bf16.mxu0 0
        %2687 = vmatmul.mubr.bf16.gmra.mrb[0].mxu0 %v2579
        %v2688 = vpop.f32.mrb[0].mxu0
        %v2689 = vadd.f32 0.0, %v2688
        %v2690 = vpop.f32.mrb[0].mxu0
        %v2691 = vpop.f32.mrb[0].mxu0
        %v2692 = vadd.f32 0.0, %v2691
        %v2693 = vpop.f32.mrb[0].mxu0
        %2694 = vmatprep.mubr.bf16.mxu0 0
        %2695 = vmatmul.mubr.bf16.gmra.mrb[0].mxu0 %v2582
        %v2696 = vpop.f32.mrb[0].mxu0
        %v2697 = vadd.f32 0.0, %v2696
        %v2698 = vpop.f32.mrb[0].mxu0
        %v2699 = vpop.f32.mrb[0].mxu0
        %v2700 = vadd.f32 0.0, %v2699
        %v2701 = vpop.f32.mrb[0].mxu0
        %2702 = vmatprep.mubr.bf16.mxu0 0
        %2703 = vmatmul.mubr.bf16.gmra.mrb[0].mxu0 %v2585
        %v2704 = vpop.f32.mrb[0].mxu0
        %v2705 = vadd.f32 0.0, %v2704
        %v2706 = vpop.f32.mrb[0].mxu0
        %v2707 = vpop.f32.mrb[0].mxu0
        %v2708 = vadd.f32 0.0, %v2707
        %v2709 = vpop.f32.mrb[0].mxu0
        %2710 = vmatprep.mubr.bf16.mxu0 0
        %2711 = vmatmul.mubr.bf16.gmra.mrb[0].mxu0 %v2588
        %v2712 = vpop.f32.mrb[0].mxu0
        %v2713 = vadd.f32 0.0, %v2712
        %v2714 = vpop.f32.mrb[0].mxu0
        %v2715 = vpop.f32.mrb[0].mxu0
        %v2716 = vadd.f32 0.0, %v2715
        %v2717 = vpop.f32.mrb[0].mxu0
        %2718 = vmatprep.mubr.bf16.mxu0 0
        %2719 = vmatmul.mubr.bf16.gmra.mrb[0].mxu0 %v2591
        %v2720 = vpop.f32.mrb[0].mxu0
        %v2721 = vadd.f32 0.0, %v2720
        %v2722 = vpop.f32.mrb[0].mxu0
        %v2723 = vpop.f32.mrb[0].mxu0
        %v2724 = vadd.f32 0.0, %v2723
        %v2725 = vpop.f32.mrb[0].mxu0
        %2726 = vmatprep.mubr.bf16.mxu0 0
        %2727 = vmatmul.mubr.bf16.gmra.mrb[0].mxu0 %v2594
        %v2728 = vpop.f32.mrb[0].mxu0
        %v2729 = vadd.f32 0.0, %v2728
        %v2730 = vpop.f32.mrb[0].mxu0
        %v2731 = vpop.f32.mrb[0].mxu0
        %v2732 = vadd.f32 0.0, %v2731
        %v2733 = vpop.f32.mrb[0].mxu0
        %2734 = vmatprep.mubr.bf16.mxu0 0
        %2735 = vmatmul.mubr.bf16.gmra.mrb[0].mxu0 %v2597
        %v2736 = vpop.f32.mrb[0].mxu0
        %v2737 = vadd.f32 0.0, %v2736
        %v2738 = vpop.f32.mrb[0].mxu0
        %v2739 = vpop.f32.mrb[0].mxu0
        %v2740 = vadd.f32 0.0, %v2739
        %v2741 = vpop.f32.mrb[0].mxu0
        %2742 = vmatprep.mubr.bf16.mxu0 0
        %2743 = vmatmul.mubr.bf16.gmra.mrb[0].mxu0 %v2600
        %v2744 = vpop.f32.mrb[0].mxu0
        %v2745 = vadd.f32 0.0, %v2744
        %v2746 = vpop.f32.mrb[0].mxu0
        %v2747 = vpop.f32.mrb[0].mxu0
        %v2748 = vadd.f32 0.0, %v2747
        %v2749 = vpop.f32.mrb[0].mxu0
        %2750 = vmatprep.mubr.bf16.mxu0 0
        %2751 = vmatmul.mubr.bf16.gmra.mrb[0].mxu0 %v2603
        %v2752 = vpop.f32.mrb[0].mxu0
        %v2753 = vadd.f32 0.0, %v2752
        %v2754 = vpop.f32.mrb[0].mxu0
        %v2755 = vpop.f32.mrb[0].mxu0
        %v2756 = vadd.f32 0.0, %v2755
        %v2757 = vpop.f32.mrb[0].mxu0
        %2758 = vmatprep.mubr.bf16.mxu0 0
        %2759 = vmatmul.mubr.bf16.gmra.mrb[0].mxu0 %v2606
        %v2760 = vpop.f32.mrb[0].mxu0
        %v2761 = vadd.f32 0.0, %v2760
        %v2762 = vpop.f32.mrb[0].mxu0
        %v2763 = vpop.f32.mrb[0].mxu0
        %v2764 = vadd.f32 0.0, %v2763
        %v2765 = vpop.f32.mrb[0].mxu0
        %2766 = vmatprep.mubr.bf16.mxu0 0
        %2767 = vmatmul.mubr.bf16.gmra.mrb[0].mxu0 %v2609
        %v2768 = vpop.f32.mrb[0].mxu0
        %v2769 = vadd.f32 0.0, %v2768
        %v2770 = vpop.f32.mrb[0].mxu0
        %v2771 = vpop.f32.mrb[0].mxu0
        %v2772 = vadd.f32 0.0, %v2771
        %v2773 = vpop.f32.mrb[0].mxu0
        %2774 = vdwg.mxu0
        %v2775 = vadd.f32 %v2049, %v2649
        %v2776 = vadd.f32 %v2050, %v2652
        %v2777 = vadd.f32 %v2051, %v2657
        %v2778 = vadd.f32 %v2052, %v2660
        %v2779 = vadd.f32 %v2053, %v2665
        %v2780 = vadd.f32 %v2054, %v2668
        %v2781 = vadd.f32 %v2055, %v2673
        %v2782 = vadd.f32 %v2056, %v2676
        %v2783 = vadd.f32 %v2057, %v2681
        %v2784 = vadd.f32 %v2058, %v2684
        %v2785 = vadd.f32 %v2059, %v2689
        %v2786 = vadd.f32 %v2060, %v2692
        %v2787 = vadd.f32 %v2061, %v2697
        %v2788 = vadd.f32 %v2062, %v2700
        %v2789 = vadd.f32 %v2063, %v2705
        %v2790 = vadd.f32 %v2064, %v2708
        %v2791 = vadd.f32 %v2065, %v2713
        %v2792 = vadd.f32 %v2066, %v2716
        %v2793 = vadd.f32 %v2067, %v2721
        %v2794 = vadd.f32 %v2068, %v2724
        %v2795 = vadd.f32 %v2069, %v2729
        %v2796 = vadd.f32 %v2070, %v2732
        %v2797 = vadd.f32 %v2071, %v2737
        %v2798 = vadd.f32 %v2072, %v2740
        %v2799 = vadd.f32 %v2073, %v2745
        %v2800 = vadd.f32 %v2074, %v2748
        %v2801 = vadd.f32 %v2075, %v2753
        %v2802 = vadd.f32 %v2076, %v2756
        %v2803 = vadd.f32 %v2077, %v2761
        %v2804 = vadd.f32 %v2078, %v2764
        %v2805 = vadd.f32 %v2079, %v2769
        %v2806 = vadd.f32 %v2080, %v2772
        %v2807 = vld [vmem:[%s1722] sm:$0xe]
        %v2808 = vld [vmem:[%s1722 + $0xc] sm:$0xe]
        %v2809 = vld [vmem:[%s1722 + $0x18] sm:$0xe]
        %v2810 = vld [vmem:[%s1722 + $0x24] sm:$0xe]
        %v2811 = vld [vmem:[%s1722 + $0x30] sm:$0xe]
        %v2812 = vld [vmem:[%s1722 + $0x3c] sm:$0xe]
        %v2813 = vld [vmem:[%s1722 + $0x48] sm:$0xe]
        %v2814 = vld [vmem:[%s1722 + $0x54] sm:$0xe]
        %v2815 = vld [vmem:[%s1722 + $0x60] sm:$0xe]
        %v2816 = vld [vmem:[%s1722 + $0x6c] sm:$0xe]
        %v2817 = vld [vmem:[%s1722 + $0x78] sm:$0xe]
        %v2818 = vld [vmem:[%s1722 + $0x84] sm:$0xe]
        %v2819 = vld [vmem:[%s1722 + $0x90] sm:$0xe]
        %v2820 = vld [vmem:[%s1722 + $0x9c] sm:$0xe]
        %v2821 = vld [vmem:[%s1722 + $0xa8] sm:$0xe]
        %v2822 = vld [vmem:[%s1722 + $0xb4] sm:$0xe]
        %v2871 = vrot.slane %v2807, 5
        %v2872 = vrot.slane %v2871, 4
        %v2873 = vrot.slane %v2082, 5
        %v2874 = vsel %vm1312, %v2872, %v2873
        %v2875 = vrot.slane %v2873, 4
        %v2876 = vrot.slane %v2083, 5
        %v2877 = vsel %vm1312, %v2875, %v2876
        %v2878 = vrot.slane %v2808, 5
        %v2879 = vrot.slane %v2878, 4
        %v2880 = vrot.slane %v2085, 5
        %v2881 = vsel %vm1312, %v2879, %v2880
        %v2882 = vrot.slane %v2880, 4
        %v2883 = vrot.slane %v2086, 5
        %v2884 = vsel %vm1312, %v2882, %v2883
        %v2885 = vrot.slane %v2809, 5
        %v2886 = vrot.slane %v2885, 4
        %v2887 = vrot.slane %v2088, 5
        %v2888 = vsel %vm1312, %v2886, %v2887
        %v2889 = vrot.slane %v2887, 4
        %v2890 = vrot.slane %v2089, 5
        %v2891 = vsel %vm1312, %v2889, %v2890
        %v2892 = vrot.slane %v2810, 5
        %v2893 = vrot.slane %v2892, 4
        %v2894 = vrot.slane %v2091, 5
        %v2895 = vsel %vm1312, %v2893, %v2894
        %v2896 = vrot.slane %v2894, 4
        %v2897 = vrot.slane %v2092, 5
        %v2898 = vsel %vm1312, %v2896, %v2897
        %v2899 = vrot.slane %v2811, 5
        %v2900 = vrot.slane %v2899, 4
        %v2901 = vrot.slane %v2094, 5
        %v2902 = vsel %vm1312, %v2900, %v2901
        %v2903 = vrot.slane %v2901, 4
        %v2904 = vrot.slane %v2095, 5
        %v2905 = vsel %vm1312, %v2903, %v2904
        %v2906 = vrot.slane %v2812, 5
        %v2907 = vrot.slane %v2906, 4
        %v2908 = vrot.slane %v2097, 5
        %v2909 = vsel %vm1312, %v2907, %v2908
        %v2910 = vrot.slane %v2908, 4
        %v2911 = vrot.slane %v2098, 5
        %v2912 = vsel %vm1312, %v2910, %v2911
        %v2913 = vrot.slane %v2813, 5
        %v2914 = vrot.slane %v2913, 4
        %v2915 = vrot.slane %v2100, 5
        %v2916 = vsel %vm1312, %v2914, %v2915
        %v2917 = vrot.slane %v2915, 4
        %v2918 = vrot.slane %v2101, 5
        %v2919 = vsel %vm1312, %v2917, %v2918
        %v2920 = vrot.slane %v2814, 5
        %v2921 = vrot.slane %v2920, 4
        %v2922 = vrot.slane %v2103, 5
        %v2923 = vsel %vm1312, %v2921, %v2922
        %v2924 = vrot.slane %v2922, 4
        %v2925 = vrot.slane %v2104, 5
        %v2926 = vsel %vm1312, %v2924, %v2925
        %v2927 = vrot.slane %v2815, 5
        %v2928 = vrot.slane %v2927, 4
        %v2929 = vrot.slane %v2106, 5
        %v2930 = vsel %vm1312, %v2928, %v2929
        %v2931 = vrot.slane %v2929, 4
        %v2932 = vrot.slane %v2107, 5
        %v2933 = vsel %vm1312, %v2931, %v2932
        %v2934 = vrot.slane %v2816, 5
        %v2935 = vrot.slane %v2934, 4
        %v2936 = vrot.slane %v2109, 5
        %v2937 = vsel %vm1312, %v2935, %v2936
        %v2938 = vrot.slane %v2936, 4
        %v2939 = vrot.slane %v2110, 5
        %v2940 = vsel %vm1312, %v2938, %v2939
        %v2941 = vrot.slane %v2817, 5
        %v2942 = vrot.slane %v2941, 4
        %v2943 = vrot.slane %v2112, 5
        %v2944 = vsel %vm1312, %v2942, %v2943
        %v2945 = vrot.slane %v2943, 4
        %v2946 = vrot.slane %v2113, 5
        %v2947 = vsel %vm1312, %v2945, %v2946
        %v2948 = vrot.slane %v2818, 5
        %v2949 = vrot.slane %v2948, 4
        %v2950 = vrot.slane %v2115, 5
        %v2951 = vsel %vm1312, %v2949, %v2950
        %v2952 = vrot.slane %v2950, 4
        %v2953 = vrot.slane %v2116, 5
        %v2954 = vsel %vm1312, %v2952, %v2953
        %v2955 = vrot.slane %v2819, 5
        %v2956 = vrot.slane %v2955, 4
        %v2957 = vrot.slane %v2118, 5
        %v2958 = vsel %vm1312, %v2956, %v2957
        %v2959 = vrot.slane %v2957, 4
        %v2960 = vrot.slane %v2119, 5
        %v2961 = vsel %vm1312, %v2959, %v2960
        %v2962 = vrot.slane %v2820, 5
        %v2963 = vrot.slane %v2962, 4
        %v2964 = vrot.slane %v2121, 5
        %v2965 = vsel %vm1312, %v2963, %v2964
        %v2966 = vrot.slane %v2964, 4
        %v2967 = vrot.slane %v2122, 5
        %v2968 = vsel %vm1312, %v2966, %v2967
        %v2969 = vrot.slane %v2821, 5
        %v2970 = vrot.slane %v2969, 4
        %v2971 = vrot.slane %v2124, 5
        %v2972 = vsel %vm1312, %v2970, %v2971
        %v2973 = vrot.slane %v2971, 4
        %v2974 = vrot.slane %v2125, 5
        %v2975 = vsel %vm1312, %v2973, %v2974
        %v2976 = vrot.slane %v2822, 5
        %v2977 = vrot.slane %v2976, 4
        %v2978 = vrot.slane %v2127, 5
        %v2979 = vsel %vm1312, %v2977, %v2978
        %v2980 = vrot.slane %v2978, 4
        %v2981 = vrot.slane %v2128, 5
        %v2982 = vsel %vm1312, %v2980, %v2981
        %s2983 = scalar_lea.vmem %s257, 10
        %v2984 = vld [vmem:[%s2983] sm:$0x3]
        %v2985 = vunpack.c.l.b16 %v2874
        %v2986 = vunpack.c.l.b16 %v2877
        %v2987 = vunpack.c.l.b16 %v2881
        %v2988 = vunpack.c.l.b16 %v2884
        %v2989 = vunpack.c.l.b16 %v2888
        %v2990 = vunpack.c.l.b16 %v2891
        %v2991 = vunpack.c.l.b16 %v2895
        %v2992 = vunpack.c.l.b16 %v2898
        %v2993 = vunpack.c.l.b16 %v2902
        %v2994 = vunpack.c.l.b16 %v2905
        %v2995 = vunpack.c.l.b16 %v2909
        %v2996 = vunpack.c.l.b16 %v2912
        %v2997 = vunpack.c.l.b16 %v2916
        %v2998 = vunpack.c.l.b16 %v2919
        %v2999 = vunpack.c.l.b16 %v2923
        %v3000 = vunpack.c.l.b16 %v2926
        %v3001 = vunpack.c.l.b16 %v2930
        %v3002 = vunpack.c.l.b16 %v2933
        %v3003 = vunpack.c.l.b16 %v2937
        %v3004 = vunpack.c.l.b16 %v2940
        %v3005 = vunpack.c.l.b16 %v2944
        %v3006 = vunpack.c.l.b16 %v2947
        %v3007 = vunpack.c.l.b16 %v2951
        %v3008 = vunpack.c.l.b16 %v2954
        %v3009 = vunpack.c.l.b16 %v2958
        %v3010 = vunpack.c.l.b16 %v2961
        %v3011 = vunpack.c.l.b16 %v2965
        %v3012 = vunpack.c.l.b16 %v2968
        %v3013 = vunpack.c.l.b16 %v2972
        %v3014 = vunpack.c.l.b16 %v2975
        %v3015 = vunpack.c.l.b16 %v2979
        %v3016 = vunpack.c.l.b16 %v2982
        %v3017 = vpack.c.b16 %v2986, %v2985
        %v3018 = vpack.c.b16 %v2988, %v2987
        %v3019 = vpack.c.b16 %v2990, %v2989
        %v3020 = vpack.c.b16 %v2992, %v2991
        %v3021 = vpack.c.b16 %v2994, %v2993
        %v3022 = vpack.c.b16 %v2996, %v2995
        %v3023 = vpack.c.b16 %v2998, %v2997
        %v3024 = vpack.c.b16 %v3000, %v2999
        %v3025 = vpack.c.b16 %v3002, %v3001
        %v3026 = vpack.c.b16 %v3004, %v3003
        %v3027 = vpack.c.b16 %v3006, %v3005
        %v3028 = vpack.c.b16 %v3008, %v3007
        %v3029 = vpack.c.b16 %v3010, %v3009
        %v3030 = vpack.c.b16 %v3012, %v3011
        %v3031 = vpack.c.b16 %v3014, %v3013
        %v3032 = vpack.c.b16 %v3016, %v3015
        %v3034 = vsel %vm756, %v3017, 0
        %v3037 = vsel %vm756, %v3018, 0
        %v3040 = vsel %vm756, %v3019, 0
        %v3043 = vsel %vm756, %v3020, 0
        %v3046 = vsel %vm756, %v3021, 0
        %v3049 = vsel %vm756, %v3022, 0
        %v3052 = vsel %vm756, %v3023, 0
        %v3055 = vsel %vm756, %v3024, 0
        %v3058 = vsel %vm756, %v3025, 0
        %v3061 = vsel %vm756, %v3026, 0
        %v3064 = vsel %vm756, %v3027, 0
        %v3067 = vsel %vm756, %v3028, 0
        %v3070 = vsel %vm756, %v3029, 0
        %v3073 = vsel %vm756, %v3030, 0
        %v3076 = vsel %vm756, %v3031, 0
        %v3079 = vsel %vm756, %v3032, 0
        %v3082 = vsel %vm805, %v2984, 0
        %3084 = vmatprep.subr.bf16.mxu0 0
        %3085 = vmatpush1.bf16.msra.mxu0 %v3082
        %3086 = vmatprep.subr.bf16.mxu0 0
        %3087 = vmatpush1.bf16.msra.mxu0 0
        %3088 = vmatprep.subr.bf16.mxu0 0
        %3089 = vmatpush1.bf16.msra.mxu0 0
        %3090 = vmatprep.subr.bf16.mxu0 0
        %3091 = vmatpush1.bf16.msra.mxu0 0
        %3092 = vmatprep.subr.bf16.mxu0 0
        %3093 = vmatpush1.bf16.msra.mxu0 0
        %3094 = vmatprep.subr.bf16.mxu0 0
        %3095 = vmatpush1.bf16.msra.mxu0 0
        %3096 = vmatprep.subr.bf16.mxu0 0
        %3097 = vmatpush1.bf16.msra.mxu0 0
        %3098 = vmatprep.subr.bf16.mxu0 0
        %3099 = vmatpush1.bf16.msra.mxu0 0
        %3100 = vmatprep.subr.bf16.mxu0 0
        %3101 = vmatpush1.bf16.msra.mxu0 0
        %3102 = vmatprep.subr.bf16.mxu0 0
        %3103 = vmatpush1.bf16.msra.mxu0 0
        %3104 = vmatprep.subr.bf16.mxu0 0
        %3105 = vmatpush1.bf16.msra.mxu0 0
        %3106 = vmatprep.subr.bf16.mxu0 0
        %3107 = vmatpush1.bf16.msra.mxu0 0
        %3108 = vmatprep.subr.bf16.mxu0 0
        %3109 = vmatpush1.bf16.msra.mxu0 0
        %3110 = vmatprep.subr.bf16.mxu0 0
        %3111 = vmatpush1.bf16.msra.mxu0 0
        %3112 = vmatprep.subr.bf16.mxu0 0
        %3113 = vmatpush1.bf16.msra.mxu0 0
        %3114 = vmatprep.subr.bf16.mxu0 0
        %3115 = vmatpush1.bf16.msra.mxu0 0
        %3116 = vmatprep.mubr.bf16.mxu0 0
        %3117 = vmatmul.mubr.bf16.gmra.mrb[0].mxu0 %v3034
        %v3118 = vpop.f32.mrb[0].mxu0
        %v3119 = vadd.f32 0.0, %v3118
        %v3120 = vpop.f32.mrb[0].mxu0
        %v3121 = vpop.f32.mrb[0].mxu0
        %v3122 = vadd.f32 0.0, %v3121
        %v3123 = vpop.f32.mrb[0].mxu0
        %3124 = vmatprep.mubr.bf16.mxu0 0
        %3125 = vmatmul.mubr.bf16.gmra.mrb[0].mxu0 %v3037
        %v3126 = vpop.f32.mrb[0].mxu0
        %v3127 = vadd.f32 0.0, %v3126
        %v3128 = vpop.f32.mrb[0].mxu0
        %v3129 = vpop.f32.mrb[0].mxu0
        %v3130 = vadd.f32 0.0, %v3129
        %v3131 = vpop.f32.mrb[0].mxu0
        %3132 = vmatprep.mubr.bf16.mxu0 0
        %3133 = vmatmul.mubr.bf16.gmra.mrb[0].mxu0 %v3040
        %v3134 = vpop.f32.mrb[0].mxu0
        %v3135 = vadd.f32 0.0, %v3134
        %v3136 = vpop.f32.mrb[0].mxu0
        %v3137 = vpop.f32.mrb[0].mxu0
        %v3138 = vadd.f32 0.0, %v3137
        %v3139 = vpop.f32.mrb[0].mxu0
        %3140 = vmatprep.mubr.bf16.mxu0 0
        %3141 = vmatmul.mubr.bf16.gmra.mrb[0].mxu0 %v3043
        %v3142 = vpop.f32.mrb[0].mxu0
        %v3143 = vadd.f32 0.0, %v3142
        %v3144 = vpop.f32.mrb[0].mxu0
        %v3145 = vpop.f32.mrb[0].mxu0
        %v3146 = vadd.f32 0.0, %v3145
        %v3147 = vpop.f32.mrb[0].mxu0
        %3148 = vmatprep.mubr.bf16.mxu0 0
        %3149 = vmatmul.mubr.bf16.gmra.mrb[0].mxu0 %v3046
        %v3150 = vpop.f32.mrb[0].mxu0
        %v3151 = vadd.f32 0.0, %v3150
        %v3152 = vpop.f32.mrb[0].mxu0
        %v3153 = vpop.f32.mrb[0].mxu0
        %v3154 = vadd.f32 0.0, %v3153
        %v3155 = vpop.f32.mrb[0].mxu0
        %3156 = vmatprep.mubr.bf16.mxu0 0
        %3157 = vmatmul.mubr.bf16.gmra.mrb[0].mxu0 %v3049
        %v3158 = vpop.f32.mrb[0].mxu0
        %v3159 = vadd.f32 0.0, %v3158
        %v3160 = vpop.f32.mrb[0].mxu0
        %v3161 = vpop.f32.mrb[0].mxu0
        %v3162 = vadd.f32 0.0, %v3161
        %v3163 = vpop.f32.mrb[0].mxu0
        %3164 = vmatprep.mubr.bf16.mxu0 0
        %3165 = vmatmul.mubr.bf16.gmra.mrb[0].mxu0 %v3052
        %v3166 = vpop.f32.mrb[0].mxu0
        %v3167 = vadd.f32 0.0, %v3166
        %v3168 = vpop.f32.mrb[0].mxu0
        %v3169 = vpop.f32.mrb[0].mxu0
        %v3170 = vadd.f32 0.0, %v3169
        %v3171 = vpop.f32.mrb[0].mxu0
        %3172 = vmatprep.mubr.bf16.mxu0 0
        %3173 = vmatmul.mubr.bf16.gmra.mrb[0].mxu0 %v3055
        %v3174 = vpop.f32.mrb[0].mxu0
        %v3175 = vadd.f32 0.0, %v3174
        %v3176 = vpop.f32.mrb[0].mxu0
        %v3177 = vpop.f32.mrb[0].mxu0
        %v3178 = vadd.f32 0.0, %v3177
        %v3179 = vpop.f32.mrb[0].mxu0
        %3180 = vmatprep.mubr.bf16.mxu0 0
        %3181 = vmatmul.mubr.bf16.gmra.mrb[0].mxu0 %v3058
        %v3182 = vpop.f32.mrb[0].mxu0
        %v3183 = vadd.f32 0.0, %v3182
        %v3184 = vpop.f32.mrb[0].mxu0
        %v3185 = vpop.f32.mrb[0].mxu0
        %v3186 = vadd.f32 0.0, %v3185
        %v3187 = vpop.f32.mrb[0].mxu0
        %3188 = vmatprep.mubr.bf16.mxu0 0
        %3189 = vmatmul.mubr.bf16.gmra.mrb[0].mxu0 %v3061
        %v3190 = vpop.f32.mrb[0].mxu0
        %v3191 = vadd.f32 0.0, %v3190
        %v3192 = vpop.f32.mrb[0].mxu0
        %v3193 = vpop.f32.mrb[0].mxu0
        %v3194 = vadd.f32 0.0, %v3193
        %v3195 = vpop.f32.mrb[0].mxu0
        %3196 = vmatprep.mubr.bf16.mxu0 0
        %3197 = vmatmul.mubr.bf16.gmra.mrb[0].mxu0 %v3064
        %v3198 = vpop.f32.mrb[0].mxu0
        %v3199 = vadd.f32 0.0, %v3198
        %v3200 = vpop.f32.mrb[0].mxu0
        %v3201 = vpop.f32.mrb[0].mxu0
        %v3202 = vadd.f32 0.0, %v3201
        %v3203 = vpop.f32.mrb[0].mxu0
        %3204 = vmatprep.mubr.bf16.mxu0 0
        %3205 = vmatmul.mubr.bf16.gmra.mrb[0].mxu0 %v3067
        %v3206 = vpop.f32.mrb[0].mxu0
        %v3207 = vadd.f32 0.0, %v3206
        %v3208 = vpop.f32.mrb[0].mxu0
        %v3209 = vpop.f32.mrb[0].mxu0
        %v3210 = vadd.f32 0.0, %v3209
        %v3211 = vpop.f32.mrb[0].mxu0
        %3212 = vmatprep.mubr.bf16.mxu0 0
        %3213 = vmatmul.mubr.bf16.gmra.mrb[0].mxu0 %v3070
        %v3214 = vpop.f32.mrb[0].mxu0
        %v3215 = vadd.f32 0.0, %v3214
        %v3216 = vpop.f32.mrb[0].mxu0
        %v3217 = vpop.f32.mrb[0].mxu0
        %v3218 = vadd.f32 0.0, %v3217
        %v3219 = vpop.f32.mrb[0].mxu0
        %3220 = vmatprep.mubr.bf16.mxu0 0
        %3221 = vmatmul.mubr.bf16.gmra.mrb[0].mxu0 %v3073
        %v3222 = vpop.f32.mrb[0].mxu0
        %v3223 = vadd.f32 0.0, %v3222
        %v3224 = vpop.f32.mrb[0].mxu0
        %v3225 = vpop.f32.mrb[0].mxu0
        %v3226 = vadd.f32 0.0, %v3225
        %v3227 = vpop.f32.mrb[0].mxu0
        %3228 = vmatprep.mubr.bf16.mxu0 0
        %3229 = vmatmul.mubr.bf16.gmra.mrb[0].mxu0 %v3076
        %v3230 = vpop.f32.mrb[0].mxu0
        %v3231 = vadd.f32 0.0, %v3230
        %v3232 = vpop.f32.mrb[0].mxu0
        %v3233 = vpop.f32.mrb[0].mxu0
        %v3234 = vadd.f32 0.0, %v3233
        %v3235 = vpop.f32.mrb[0].mxu0
        %3236 = vmatprep.mubr.bf16.mxu0 0
        %3237 = vmatmul.mubr.bf16.gmra.mrb[0].mxu0 %v3079
        %v3238 = vpop.f32.mrb[0].mxu0
        %v3239 = vadd.f32 0.0, %v3238
        %v3240 = vpop.f32.mrb[0].mxu0
        %v3241 = vpop.f32.mrb[0].mxu0
        %v3242 = vadd.f32 0.0, %v3241
        %v3243 = vpop.f32.mrb[0].mxu0
        %3244 = vdwg.mxu0
        %v3245 = vadd.f32 %v2775, %v3119
        %v3246 = vadd.f32 %v2776, %v3122
        %v3247 = vadd.f32 %v2777, %v3127
        %v3248 = vadd.f32 %v2778, %v3130
        %v3249 = vadd.f32 %v2779, %v3135
        %v3250 = vadd.f32 %v2780, %v3138
        %v3251 = vadd.f32 %v2781, %v3143
        %v3252 = vadd.f32 %v2782, %v3146
        %v3253 = vadd.f32 %v2783, %v3151
        %v3254 = vadd.f32 %v2784, %v3154
        %v3255 = vadd.f32 %v2785, %v3159
        %v3256 = vadd.f32 %v2786, %v3162
        %v3257 = vadd.f32 %v2787, %v3167
        %v3258 = vadd.f32 %v2788, %v3170
        %v3259 = vadd.f32 %v2789, %v3175
        %v3260 = vadd.f32 %v2790, %v3178
        %v3261 = vadd.f32 %v2791, %v3183
        %v3262 = vadd.f32 %v2792, %v3186
        %v3263 = vadd.f32 %v2793, %v3191
        %v3264 = vadd.f32 %v2794, %v3194
        %v3265 = vadd.f32 %v2795, %v3199
        %v3266 = vadd.f32 %v2796, %v3202
        %v3267 = vadd.f32 %v2797, %v3207
        %v3268 = vadd.f32 %v2798, %v3210
        %v3269 = vadd.f32 %v2799, %v3215
        %v3270 = vadd.f32 %v2800, %v3218
        %v3271 = vadd.f32 %v2801, %v3223
        %v3272 = vadd.f32 %v2802, %v3226
        %v3273 = vadd.f32 %v2803, %v3231
        %v3274 = vadd.f32 %v2804, %v3234
        %v3275 = vadd.f32 %v2805, %v3239
        %v3276 = vadd.f32 %v2806, %v3242
        %s3277 = sadd.s32 %s266, 2
        %s3278 = smul.u32 %s3277, 3
        %s3279 = smul.addr %s3278, 4
        %s3280 = scalar_lea.vmem %s253, %s3279
        %v3281 = vld [vmem:[%s3280] sm:$0xf]
        %v3282 = vld [vmem:[%s3280 + $0x4] sm:$0xf]
        %v3283 = vld [vmem:[%s3280 + $0xc] sm:$0xf]
        %v3284 = vld [vmem:[%s3280 + $0x10] sm:$0xf]
        %v3285 = vld [vmem:[%s3280 + $0x18] sm:$0xf]
        %v3286 = vld [vmem:[%s3280 + $0x1c] sm:$0xf]
        %v3287 = vld [vmem:[%s3280 + $0x24] sm:$0xf]
        %v3288 = vld [vmem:[%s3280 + $0x28] sm:$0xf]
        %v3289 = vld [vmem:[%s3280 + $0x30] sm:$0xf]
        %v3290 = vld [vmem:[%s3280 + $0x34] sm:$0xf]
        %v3291 = vld [vmem:[%s3280 + $0x3c] sm:$0xf]
        %v3292 = vld [vmem:[%s3280 + $0x40] sm:$0xf]
        %v3293 = vld [vmem:[%s3280 + $0x48] sm:$0xf]
        %v3294 = vld [vmem:[%s3280 + $0x4c] sm:$0xf]
        %v3295 = vld [vmem:[%s3280 + $0x54] sm:$0xf]
        %v3296 = vld [vmem:[%s3280 + $0x58] sm:$0xf]
        %v3297 = vld [vmem:[%s3280 + $0x60] sm:$0xf]
        %v3298 = vld [vmem:[%s3280 + $0x64] sm:$0xf]
        %v3299 = vld [vmem:[%s3280 + $0x6c] sm:$0xf]
        %v3300 = vld [vmem:[%s3280 + $0x70] sm:$0xf]
        %v3301 = vld [vmem:[%s3280 + $0x78] sm:$0xf]
        %v3302 = vld [vmem:[%s3280 + $0x7c] sm:$0xf]
        %v3303 = vld [vmem:[%s3280 + $0x84] sm:$0xf]
        %v3304 = vld [vmem:[%s3280 + $0x88] sm:$0xf]
        %v3305 = vld [vmem:[%s3280 + $0x90] sm:$0xf]
        %v3306 = vld [vmem:[%s3280 + $0x94] sm:$0xf]
        %v3307 = vld [vmem:[%s3280 + $0x9c] sm:$0xf]
        %v3308 = vld [vmem:[%s3280 + $0xa0] sm:$0xf]
        %v3309 = vld [vmem:[%s3280 + $0xa8] sm:$0xf]
        %v3310 = vld [vmem:[%s3280 + $0xac] sm:$0xf]
        %v3311 = vld [vmem:[%s3280 + $0xb4] sm:$0xf]
        %v3312 = vld [vmem:[%s3280 + $0xb8] sm:$0xf]
        %s3313 = scalar_lea.vmem %s257, 12
        %v3314 = vld [vmem:[%s3313] sm:$0x3]
        %v3347 = vunpack.c.l.b16 %v3281
        %v3348 = vunpack.c.l.b16 %v3282
        %v3349 = vunpack.c.l.b16 %v3283
        %v3350 = vunpack.c.l.b16 %v3284
        %v3351 = vunpack.c.l.b16 %v3285
        %v3352 = vunpack.c.l.b16 %v3286
        %v3353 = vunpack.c.l.b16 %v3287
        %v3354 = vunpack.c.l.b16 %v3288
        %v3355 = vunpack.c.l.b16 %v3289
        %v3356 = vunpack.c.l.b16 %v3290
        %v3357 = vunpack.c.l.b16 %v3291
        %v3358 = vunpack.c.l.b16 %v3292
        %v3359 = vunpack.c.l.b16 %v3293
        %v3360 = vunpack.c.l.b16 %v3294
        %v3361 = vunpack.c.l.b16 %v3295
        %v3362 = vunpack.c.l.b16 %v3296
        %v3363 = vunpack.c.l.b16 %v3297
        %v3364 = vunpack.c.l.b16 %v3298
        %v3365 = vunpack.c.l.b16 %v3299
        %v3366 = vunpack.c.l.b16 %v3300
        %v3367 = vunpack.c.l.b16 %v3301
        %v3368 = vunpack.c.l.b16 %v3302
        %v3369 = vunpack.c.l.b16 %v3303
        %v3370 = vunpack.c.l.b16 %v3304
        %v3371 = vunpack.c.l.b16 %v3305
        %v3372 = vunpack.c.l.b16 %v3306
        %v3373 = vunpack.c.l.b16 %v3307
        %v3374 = vunpack.c.l.b16 %v3308
        %v3375 = vunpack.c.l.b16 %v3309
        %v3376 = vunpack.c.l.b16 %v3310
        %v3377 = vunpack.c.l.b16 %v3311
        %v3378 = vunpack.c.l.b16 %v3312
        %v3379 = vpack.c.b16 %v3348, %v3347
        %v3380 = vpack.c.b16 %v3350, %v3349
        %v3381 = vpack.c.b16 %v3352, %v3351
        %v3382 = vpack.c.b16 %v3354, %v3353
        %v3383 = vpack.c.b16 %v3356, %v3355
        %v3384 = vpack.c.b16 %v3358, %v3357
        %v3385 = vpack.c.b16 %v3360, %v3359
        %v3386 = vpack.c.b16 %v3362, %v3361
        %v3387 = vpack.c.b16 %v3364, %v3363
        %v3388 = vpack.c.b16 %v3366, %v3365
        %v3389 = vpack.c.b16 %v3368, %v3367
        %v3390 = vpack.c.b16 %v3370, %v3369
        %v3391 = vpack.c.b16 %v3372, %v3371
        %v3392 = vpack.c.b16 %v3374, %v3373
        %v3393 = vpack.c.b16 %v3376, %v3375
        %v3394 = vpack.c.b16 %v3378, %v3377
        %v3396 = vsel %vm756, %v3379, 0
        %v3399 = vsel %vm756, %v3380, 0
        %v3402 = vsel %vm756, %v3381, 0
        %v3405 = vsel %vm756, %v3382, 0
        %v3408 = vsel %vm756, %v3383, 0
        %v3411 = vsel %vm756, %v3384, 0
        %v3414 = vsel %vm756, %v3385, 0
        %v3417 = vsel %vm756, %v3386, 0
        %v3420 = vsel %vm756, %v3387, 0
        %v3423 = vsel %vm756, %v3388, 0
        %v3426 = vsel %vm756, %v3389, 0
        %v3429 = vsel %vm756, %v3390, 0
        %v3432 = vsel %vm756, %v3391, 0
        %v3435 = vsel %vm756, %v3392, 0
        %v3438 = vsel %vm756, %v3393, 0
        %v3441 = vsel %vm756, %v3394, 0
        %v3444 = vsel %vm805, %v3314, 0
        %3446 = vmatprep.subr.bf16.mxu0 0
        %3447 = vmatpush1.bf16.msra.mxu0 %v3444
        %3448 = vmatprep.subr.bf16.mxu0 0
        %3449 = vmatpush1.bf16.msra.mxu0 0
        %3450 = vmatprep.subr.bf16.mxu0 0
        %3451 = vmatpush1.bf16.msra.mxu0 0
        %3452 = vmatprep.subr.bf16.mxu0 0
        %3453 = vmatpush1.bf16.msra.mxu0 0
        %3454 = vmatprep.subr.bf16.mxu0 0
        %3455 = vmatpush1.bf16.msra.mxu0 0
        %3456 = vmatprep.subr.bf16.mxu0 0
        %3457 = vmatpush1.bf16.msra.mxu0 0
        %3458 = vmatprep.subr.bf16.mxu0 0
        %3459 = vmatpush1.bf16.msra.mxu0 0
        %3460 = vmatprep.subr.bf16.mxu0 0
        %3461 = vmatpush1.bf16.msra.mxu0 0
        %3462 = vmatprep.subr.bf16.mxu0 0
        %3463 = vmatpush1.bf16.msra.mxu0 0
        %3464 = vmatprep.subr.bf16.mxu0 0
        %3465 = vmatpush1.bf16.msra.mxu0 0
        %3466 = vmatprep.subr.bf16.mxu0 0
        %3467 = vmatpush1.bf16.msra.mxu0 0
        %3468 = vmatprep.subr.bf16.mxu0 0
        %3469 = vmatpush1.bf16.msra.mxu0 0
        %3470 = vmatprep.subr.bf16.mxu0 0
        %3471 = vmatpush1.bf16.msra.mxu0 0
        %3472 = vmatprep.subr.bf16.mxu0 0
        %3473 = vmatpush1.bf16.msra.mxu0 0
        %3474 = vmatprep.subr.bf16.mxu0 0
        %3475 = vmatpush1.bf16.msra.mxu0 0
        %3476 = vmatprep.subr.bf16.mxu0 0
        %3477 = vmatpush1.bf16.msra.mxu0 0
        %3478 = vmatprep.mubr.bf16.mxu0 0
        %3479 = vmatmul.mubr.bf16.gmra.mrb[0].mxu0 %v3396
        %v3480 = vpop.f32.mrb[0].mxu0
        %v3481 = vadd.f32 0.0, %v3480
        %v3482 = vpop.f32.mrb[0].mxu0
        %v3483 = vpop.f32.mrb[0].mxu0
        %v3484 = vadd.f32 0.0, %v3483
        %v3485 = vpop.f32.mrb[0].mxu0
        %3486 = vmatprep.mubr.bf16.mxu0 0
        %3487 = vmatmul.mubr.bf16.gmra.mrb[0].mxu0 %v3399
        %v3488 = vpop.f32.mrb[0].mxu0
        %v3489 = vadd.f32 0.0, %v3488
        %v3490 = vpop.f32.mrb[0].mxu0
        %v3491 = vpop.f32.mrb[0].mxu0
        %v3492 = vadd.f32 0.0, %v3491
        %v3493 = vpop.f32.mrb[0].mxu0
        %3494 = vmatprep.mubr.bf16.mxu0 0
        %3495 = vmatmul.mubr.bf16.gmra.mrb[0].mxu0 %v3402
        %v3496 = vpop.f32.mrb[0].mxu0
        %v3497 = vadd.f32 0.0, %v3496
        %v3498 = vpop.f32.mrb[0].mxu0
        %v3499 = vpop.f32.mrb[0].mxu0
        %v3500 = vadd.f32 0.0, %v3499
        %v3501 = vpop.f32.mrb[0].mxu0
        %3502 = vmatprep.mubr.bf16.mxu0 0
        %3503 = vmatmul.mubr.bf16.gmra.mrb[0].mxu0 %v3405
        %v3504 = vpop.f32.mrb[0].mxu0
        %v3505 = vadd.f32 0.0, %v3504
        %v3506 = vpop.f32.mrb[0].mxu0
        %v3507 = vpop.f32.mrb[0].mxu0
        %v3508 = vadd.f32 0.0, %v3507
        %v3509 = vpop.f32.mrb[0].mxu0
        %3510 = vmatprep.mubr.bf16.mxu0 0
        %3511 = vmatmul.mubr.bf16.gmra.mrb[0].mxu0 %v3408
        %v3512 = vpop.f32.mrb[0].mxu0
        %v3513 = vadd.f32 0.0, %v3512
        %v3514 = vpop.f32.mrb[0].mxu0
        %v3515 = vpop.f32.mrb[0].mxu0
        %v3516 = vadd.f32 0.0, %v3515
        %v3517 = vpop.f32.mrb[0].mxu0
        %3518 = vmatprep.mubr.bf16.mxu0 0
        %3519 = vmatmul.mubr.bf16.gmra.mrb[0].mxu0 %v3411
        %v3520 = vpop.f32.mrb[0].mxu0
        %v3521 = vadd.f32 0.0, %v3520
        %v3522 = vpop.f32.mrb[0].mxu0
        %v3523 = vpop.f32.mrb[0].mxu0
        %v3524 = vadd.f32 0.0, %v3523
        %v3525 = vpop.f32.mrb[0].mxu0
        %3526 = vmatprep.mubr.bf16.mxu0 0
        %3527 = vmatmul.mubr.bf16.gmra.mrb[0].mxu0 %v3414
        %v3528 = vpop.f32.mrb[0].mxu0
        %v3529 = vadd.f32 0.0, %v3528
        %v3530 = vpop.f32.mrb[0].mxu0
        %v3531 = vpop.f32.mrb[0].mxu0
        %v3532 = vadd.f32 0.0, %v3531
        %v3533 = vpop.f32.mrb[0].mxu0
        %3534 = vmatprep.mubr.bf16.mxu0 0
        %3535 = vmatmul.mubr.bf16.gmra.mrb[0].mxu0 %v3417
        %v3536 = vpop.f32.mrb[0].mxu0
        %v3537 = vadd.f32 0.0, %v3536
        %v3538 = vpop.f32.mrb[0].mxu0
        %v3539 = vpop.f32.mrb[0].mxu0
        %v3540 = vadd.f32 0.0, %v3539
        %v3541 = vpop.f32.mrb[0].mxu0
        %3542 = vmatprep.mubr.bf16.mxu0 0
        %3543 = vmatmul.mubr.bf16.gmra.mrb[0].mxu0 %v3420
        %v3544 = vpop.f32.mrb[0].mxu0
        %v3545 = vadd.f32 0.0, %v3544
        %v3546 = vpop.f32.mrb[0].mxu0
        %v3547 = vpop.f32.mrb[0].mxu0
        %v3548 = vadd.f32 0.0, %v3547
        %v3549 = vpop.f32.mrb[0].mxu0
        %3550 = vmatprep.mubr.bf16.mxu0 0
        %3551 = vmatmul.mubr.bf16.gmra.mrb[0].mxu0 %v3423
        %v3552 = vpop.f32.mrb[0].mxu0
        %v3553 = vadd.f32 0.0, %v3552
        %v3554 = vpop.f32.mrb[0].mxu0
        %v3555 = vpop.f32.mrb[0].mxu0
        %v3556 = vadd.f32 0.0, %v3555
        %v3557 = vpop.f32.mrb[0].mxu0
        %3558 = vmatprep.mubr.bf16.mxu0 0
        %3559 = vmatmul.mubr.bf16.gmra.mrb[0].mxu0 %v3426
        %v3560 = vpop.f32.mrb[0].mxu0
        %v3561 = vadd.f32 0.0, %v3560
        %v3562 = vpop.f32.mrb[0].mxu0
        %v3563 = vpop.f32.mrb[0].mxu0
        %v3564 = vadd.f32 0.0, %v3563
        %v3565 = vpop.f32.mrb[0].mxu0
        %3566 = vmatprep.mubr.bf16.mxu0 0
        %3567 = vmatmul.mubr.bf16.gmra.mrb[0].mxu0 %v3429
        %v3568 = vpop.f32.mrb[0].mxu0
        %v3569 = vadd.f32 0.0, %v3568
        %v3570 = vpop.f32.mrb[0].mxu0
        %v3571 = vpop.f32.mrb[0].mxu0
        %v3572 = vadd.f32 0.0, %v3571
        %v3573 = vpop.f32.mrb[0].mxu0
        %3574 = vmatprep.mubr.bf16.mxu0 0
        %3575 = vmatmul.mubr.bf16.gmra.mrb[0].mxu0 %v3432
        %v3576 = vpop.f32.mrb[0].mxu0
        %v3577 = vadd.f32 0.0, %v3576
        %v3578 = vpop.f32.mrb[0].mxu0
        %v3579 = vpop.f32.mrb[0].mxu0
        %v3580 = vadd.f32 0.0, %v3579
        %v3581 = vpop.f32.mrb[0].mxu0
        %3582 = vmatprep.mubr.bf16.mxu0 0
        %3583 = vmatmul.mubr.bf16.gmra.mrb[0].mxu0 %v3435
        %v3584 = vpop.f32.mrb[0].mxu0
        %v3585 = vadd.f32 0.0, %v3584
        %v3586 = vpop.f32.mrb[0].mxu0
        %v3587 = vpop.f32.mrb[0].mxu0
        %v3588 = vadd.f32 0.0, %v3587
        %v3589 = vpop.f32.mrb[0].mxu0
        %3590 = vmatprep.mubr.bf16.mxu0 0
        %3591 = vmatmul.mubr.bf16.gmra.mrb[0].mxu0 %v3438
        %v3592 = vpop.f32.mrb[0].mxu0
        %v3593 = vadd.f32 0.0, %v3592
        %v3594 = vpop.f32.mrb[0].mxu0
        %v3595 = vpop.f32.mrb[0].mxu0
        %v3596 = vadd.f32 0.0, %v3595
        %v3597 = vpop.f32.mrb[0].mxu0
        %3598 = vmatprep.mubr.bf16.mxu0 0
        %3599 = vmatmul.mubr.bf16.gmra.mrb[0].mxu0 %v3441
        %v3600 = vpop.f32.mrb[0].mxu0
        %v3601 = vadd.f32 0.0, %v3600
        %v3602 = vpop.f32.mrb[0].mxu0
        %v3603 = vpop.f32.mrb[0].mxu0
        %v3604 = vadd.f32 0.0, %v3603
        %v3605 = vpop.f32.mrb[0].mxu0
        %3606 = vdwg.mxu0
        %v3607 = vadd.f32 %v3245, %v3481
        %v3608 = vadd.f32 %v3246, %v3484
        %v3609 = vadd.f32 %v3247, %v3489
        %v3610 = vadd.f32 %v3248, %v3492
        %v3611 = vadd.f32 %v3249, %v3497
        %v3612 = vadd.f32 %v3250, %v3500
        %v3613 = vadd.f32 %v3251, %v3505
        %v3614 = vadd.f32 %v3252, %v3508
        %v3615 = vadd.f32 %v3253, %v3513
        %v3616 = vadd.f32 %v3254, %v3516
        %v3617 = vadd.f32 %v3255, %v3521
        %v3618 = vadd.f32 %v3256, %v3524
        %v3619 = vadd.f32 %v3257, %v3529
        %v3620 = vadd.f32 %v3258, %v3532
        %v3621 = vadd.f32 %v3259, %v3537
        %v3622 = vadd.f32 %v3260, %v3540
        %v3623 = vadd.f32 %v3261, %v3545
        %v3624 = vadd.f32 %v3262, %v3548
        %v3625 = vadd.f32 %v3263, %v3553
        %v3626 = vadd.f32 %v3264, %v3556
        %v3627 = vadd.f32 %v3265, %v3561
        %v3628 = vadd.f32 %v3266, %v3564
        %v3629 = vadd.f32 %v3267, %v3569
        %v3630 = vadd.f32 %v3268, %v3572
        %v3631 = vadd.f32 %v3269, %v3577
        %v3632 = vadd.f32 %v3270, %v3580
        %v3633 = vadd.f32 %v3271, %v3585
        %v3634 = vadd.f32 %v3272, %v3588
        %v3635 = vadd.f32 %v3273, %v3593
        %v3636 = vadd.f32 %v3274, %v3596
        %v3637 = vadd.f32 %v3275, %v3601
        %v3638 = vadd.f32 %v3276, %v3604
        %v3639 = vld [vmem:[%s3280] sm:$0xf]
        %v3640 = vld [vmem:[%s3280 + $0x4] sm:$0xf]
        %v3641 = vld [vmem:[%s3280 + $0x8] sm:$0x1]
        %v3642 = vld [vmem:[%s3280 + $0xc] sm:$0xf]
        %v3643 = vld [vmem:[%s3280 + $0x10] sm:$0xf]
        %v3644 = vld [vmem:[%s3280 + $0x14] sm:$0x1]
        %v3645 = vld [vmem:[%s3280 + $0x18] sm:$0xf]
        %v3646 = vld [vmem:[%s3280 + $0x1c] sm:$0xf]
        %v3647 = vld [vmem:[%s3280 + $0x20] sm:$0x1]
        %v3648 = vld [vmem:[%s3280 + $0x24] sm:$0xf]
        %v3649 = vld [vmem:[%s3280 + $0x28] sm:$0xf]
        %v3650 = vld [vmem:[%s3280 + $0x2c] sm:$0x1]
        %v3651 = vld [vmem:[%s3280 + $0x30] sm:$0xf]
        %v3652 = vld [vmem:[%s3280 + $0x34] sm:$0xf]
        %v3653 = vld [vmem:[%s3280 + $0x38] sm:$0x1]
        %v3654 = vld [vmem:[%s3280 + $0x3c] sm:$0xf]
        %v3655 = vld [vmem:[%s3280 + $0x40] sm:$0xf]
        %v3656 = vld [vmem:[%s3280 + $0x44] sm:$0x1]
        %v3657 = vld [vmem:[%s3280 + $0x48] sm:$0xf]
        %v3658 = vld [vmem:[%s3280 + $0x4c] sm:$0xf]
        %v3659 = vld [vmem:[%s3280 + $0x50] sm:$0x1]
        %v3660 = vld [vmem:[%s3280 + $0x54] sm:$0xf]
        %v3661 = vld [vmem:[%s3280 + $0x58] sm:$0xf]
        %v3662 = vld [vmem:[%s3280 + $0x5c] sm:$0x1]
        %v3663 = vld [vmem:[%s3280 + $0x60] sm:$0xf]
        %v3664 = vld [vmem:[%s3280 + $0x64] sm:$0xf]
        %v3665 = vld [vmem:[%s3280 + $0x68] sm:$0x1]
        %v3666 = vld [vmem:[%s3280 + $0x6c] sm:$0xf]
        %v3667 = vld [vmem:[%s3280 + $0x70] sm:$0xf]
        %v3668 = vld [vmem:[%s3280 + $0x74] sm:$0x1]
        %v3669 = vld [vmem:[%s3280 + $0x78] sm:$0xf]
        %v3670 = vld [vmem:[%s3280 + $0x7c] sm:$0xf]
        %v3671 = vld [vmem:[%s3280 + $0x80] sm:$0x1]
        %v3672 = vld [vmem:[%s3280 + $0x84] sm:$0xf]
        %v3673 = vld [vmem:[%s3280 + $0x88] sm:$0xf]
        %v3674 = vld [vmem:[%s3280 + $0x8c] sm:$0x1]
        %v3675 = vld [vmem:[%s3280 + $0x90] sm:$0xf]
        %v3676 = vld [vmem:[%s3280 + $0x94] sm:$0xf]
        %v3677 = vld [vmem:[%s3280 + $0x98] sm:$0x1]
        %v3678 = vld [vmem:[%s3280 + $0x9c] sm:$0xf]
        %v3679 = vld [vmem:[%s3280 + $0xa0] sm:$0xf]
        %v3680 = vld [vmem:[%s3280 + $0xa4] sm:$0x1]
        %v3681 = vld [vmem:[%s3280 + $0xa8] sm:$0xf]
        %v3682 = vld [vmem:[%s3280 + $0xac] sm:$0xf]
        %v3683 = vld [vmem:[%s3280 + $0xb0] sm:$0x1]
        %v3684 = vld [vmem:[%s3280 + $0xb4] sm:$0xf]
        %v3685 = vld [vmem:[%s3280 + $0xb8] sm:$0xf]
        %v3686 = vld [vmem:[%s3280 + $0xbc] sm:$0x1]
        %v3688 = vshrl.u32 %v3639, 16
        %v3690 = vrot.slane %v3688, 4
        %v3691 = vshll.u32 %v3639, 16
        %v3693 = vrot.slane %v3691, 5
        %v3694 = vor.u32 %v3690, %v3693
        %v3695 = vrot.slane %v3694, 4
        %v3697 = vshll.u32 %v3640, 16
        %v3699 = vrot.slane %v3697, 5
        %v3700 = vsel %vm321, %v3695, %v3699
        %v3701 = vshrl.u32 %v3640, 16
        %v3703 = vrot.slane %v3701, 4
        %v3704 = vor.u32 %v3703, %v3699
        %v3705 = vrot.slane %v3704, 4
        %v3707 = vshll.u32 %v3641, 16
        %v3709 = vrot.slane %v3707, 5
        %v3710 = vsel %vm321, %v3705, %v3709
        %v3712 = vshrl.u32 %v3642, 16
        %v3714 = vrot.slane %v3712, 4
        %v3715 = vshll.u32 %v3642, 16
        %v3717 = vrot.slane %v3715, 5
        %v3718 = vor.u32 %v3714, %v3717
        %v3719 = vrot.slane %v3718, 4
        %v3721 = vshll.u32 %v3643, 16
        %v3723 = vrot.slane %v3721, 5
        %v3724 = vsel %vm321, %v3719, %v3723
        %v3725 = vshrl.u32 %v3643, 16
        %v3727 = vrot.slane %v3725, 4
        %v3728 = vor.u32 %v3727, %v3723
        %v3729 = vrot.slane %v3728, 4
        %v3731 = vshll.u32 %v3644, 16
        %v3733 = vrot.slane %v3731, 5
        %v3734 = vsel %vm321, %v3729, %v3733
        %v3736 = vshrl.u32 %v3645, 16
        %v3738 = vrot.slane %v3736, 4
        %v3739 = vshll.u32 %v3645, 16
        %v3741 = vrot.slane %v3739, 5
        %v3742 = vor.u32 %v3738, %v3741
        %v3743 = vrot.slane %v3742, 4
        %v3745 = vshll.u32 %v3646, 16
        %v3747 = vrot.slane %v3745, 5
        %v3748 = vsel %vm321, %v3743, %v3747
        %v3749 = vshrl.u32 %v3646, 16
        %v3751 = vrot.slane %v3749, 4
        %v3752 = vor.u32 %v3751, %v3747
        %v3753 = vrot.slane %v3752, 4
        %v3755 = vshll.u32 %v3647, 16
        %v3757 = vrot.slane %v3755, 5
        %v3758 = vsel %vm321, %v3753, %v3757
        %v3760 = vshrl.u32 %v3648, 16
        %v3762 = vrot.slane %v3760, 4
        %v3763 = vshll.u32 %v3648, 16
        %v3765 = vrot.slane %v3763, 5
        %v3766 = vor.u32 %v3762, %v3765
        %v3767 = vrot.slane %v3766, 4
        %v3769 = vshll.u32 %v3649, 16
        %v3771 = vrot.slane %v3769, 5
        %v3772 = vsel %vm321, %v3767, %v3771
        %v3773 = vshrl.u32 %v3649, 16
        %v3775 = vrot.slane %v3773, 4
        %v3776 = vor.u32 %v3775, %v3771
        %v3777 = vrot.slane %v3776, 4
        %v3779 = vshll.u32 %v3650, 16
        %v3781 = vrot.slane %v3779, 5
        %v3782 = vsel %vm321, %v3777, %v3781
        %v3784 = vshrl.u32 %v3651, 16
        %v3786 = vrot.slane %v3784, 4
        %v3787 = vshll.u32 %v3651, 16
        %v3789 = vrot.slane %v3787, 5
        %v3790 = vor.u32 %v3786, %v3789
        %v3791 = vrot.slane %v3790, 4
        %v3793 = vshll.u32 %v3652, 16
        %v3795 = vrot.slane %v3793, 5
        %v3796 = vsel %vm321, %v3791, %v3795
        %v3797 = vshrl.u32 %v3652, 16
        %v3799 = vrot.slane %v3797, 4
        %v3800 = vor.u32 %v3799, %v3795
        %v3801 = vrot.slane %v3800, 4
        %v3803 = vshll.u32 %v3653, 16
        %v3805 = vrot.slane %v3803, 5
        %v3806 = vsel %vm321, %v3801, %v3805
        %v3808 = vshrl.u32 %v3654, 16
        %v3810 = vrot.slane %v3808, 4
        %v3811 = vshll.u32 %v3654, 16
        %v3813 = vrot.slane %v3811, 5
        %v3814 = vor.u32 %v3810, %v3813
        %v3815 = vrot.slane %v3814, 4
        %v3817 = vshll.u32 %v3655, 16
        %v3819 = vrot.slane %v3817, 5
        %v3820 = vsel %vm321, %v3815, %v3819
        %v3821 = vshrl.u32 %v3655, 16
        %v3823 = vrot.slane %v3821, 4
        %v3824 = vor.u32 %v3823, %v3819
        %v3825 = vrot.slane %v3824, 4
        %v3827 = vshll.u32 %v3656, 16
        %v3829 = vrot.slane %v3827, 5
        %v3830 = vsel %vm321, %v3825, %v3829
        %v3832 = vshrl.u32 %v3657, 16
        %v3834 = vrot.slane %v3832, 4
        %v3835 = vshll.u32 %v3657, 16
        %v3837 = vrot.slane %v3835, 5
        %v3838 = vor.u32 %v3834, %v3837
        %v3839 = vrot.slane %v3838, 4
        %v3841 = vshll.u32 %v3658, 16
        %v3843 = vrot.slane %v3841, 5
        %v3844 = vsel %vm321, %v3839, %v3843
        %v3845 = vshrl.u32 %v3658, 16
        %v3847 = vrot.slane %v3845, 4
        %v3848 = vor.u32 %v3847, %v3843
        %v3849 = vrot.slane %v3848, 4
        %v3851 = vshll.u32 %v3659, 16
        %v3853 = vrot.slane %v3851, 5
        %v3854 = vsel %vm321, %v3849, %v3853
        %v3856 = vshrl.u32 %v3660, 16
        %v3858 = vrot.slane %v3856, 4
        %v3859 = vshll.u32 %v3660, 16
        %v3861 = vrot.slane %v3859, 5
        %v3862 = vor.u32 %v3858, %v3861
        %v3863 = vrot.slane %v3862, 4
        %v3865 = vshll.u32 %v3661, 16
        %v3867 = vrot.slane %v3865, 5
        %v3868 = vsel %vm321, %v3863, %v3867
        %v3869 = vshrl.u32 %v3661, 16
        %v3871 = vrot.slane %v3869, 4
        %v3872 = vor.u32 %v3871, %v3867
        %v3873 = vrot.slane %v3872, 4
        %v3875 = vshll.u32 %v3662, 16
        %v3877 = vrot.slane %v3875, 5
        %v3878 = vsel %vm321, %v3873, %v3877
        %v3880 = vshrl.u32 %v3663, 16
        %v3882 = vrot.slane %v3880, 4
        %v3883 = vshll.u32 %v3663, 16
        %v3885 = vrot.slane %v3883, 5
        %v3886 = vor.u32 %v3882, %v3885
        %v3887 = vrot.slane %v3886, 4
        %v3889 = vshll.u32 %v3664, 16
        %v3891 = vrot.slane %v3889, 5
        %v3892 = vsel %vm321, %v3887, %v3891
        %v3893 = vshrl.u32 %v3664, 16
        %v3895 = vrot.slane %v3893, 4
        %v3896 = vor.u32 %v3895, %v3891
        %v3897 = vrot.slane %v3896, 4
        %v3899 = vshll.u32 %v3665, 16
        %v3901 = vrot.slane %v3899, 5
        %v3902 = vsel %vm321, %v3897, %v3901
        %v3904 = vshrl.u32 %v3666, 16
        %v3906 = vrot.slane %v3904, 4
        %v3907 = vshll.u32 %v3666, 16
        %v3909 = vrot.slane %v3907, 5
        %v3910 = vor.u32 %v3906, %v3909
        %v3911 = vrot.slane %v3910, 4
        %v3913 = vshll.u32 %v3667, 16
        %v3915 = vrot.slane %v3913, 5
        %v3916 = vsel %vm321, %v3911, %v3915
        %v3917 = vshrl.u32 %v3667, 16
        %v3919 = vrot.slane %v3917, 4
        %v3920 = vor.u32 %v3919, %v3915
        %v3921 = vrot.slane %v3920, 4
        %v3923 = vshll.u32 %v3668, 16
        %v3925 = vrot.slane %v3923, 5
        %v3926 = vsel %vm321, %v3921, %v3925
        %v3928 = vshrl.u32 %v3669, 16
        %v3930 = vrot.slane %v3928, 4
        %v3931 = vshll.u32 %v3669, 16
        %v3933 = vrot.slane %v3931, 5
        %v3934 = vor.u32 %v3930, %v3933
        %v3935 = vrot.slane %v3934, 4
        %v3937 = vshll.u32 %v3670, 16
        %v3939 = vrot.slane %v3937, 5
        %v3940 = vsel %vm321, %v3935, %v3939
        %v3941 = vshrl.u32 %v3670, 16
        %v3943 = vrot.slane %v3941, 4
        %v3944 = vor.u32 %v3943, %v3939
        %v3945 = vrot.slane %v3944, 4
        %v3947 = vshll.u32 %v3671, 16
        %v3949 = vrot.slane %v3947, 5
        %v3950 = vsel %vm321, %v3945, %v3949
        %v3952 = vshrl.u32 %v3672, 16
        %v3954 = vrot.slane %v3952, 4
        %v3955 = vshll.u32 %v3672, 16
        %v3957 = vrot.slane %v3955, 5
        %v3958 = vor.u32 %v3954, %v3957
        %v3959 = vrot.slane %v3958, 4
        %v3961 = vshll.u32 %v3673, 16
        %v3963 = vrot.slane %v3961, 5
        %v3964 = vsel %vm321, %v3959, %v3963
        %v3965 = vshrl.u32 %v3673, 16
        %v3967 = vrot.slane %v3965, 4
        %v3968 = vor.u32 %v3967, %v3963
        %v3969 = vrot.slane %v3968, 4
        %v3971 = vshll.u32 %v3674, 16
        %v3973 = vrot.slane %v3971, 5
        %v3974 = vsel %vm321, %v3969, %v3973
        %v3976 = vshrl.u32 %v3675, 16
        %v3978 = vrot.slane %v3976, 4
        %v3979 = vshll.u32 %v3675, 16
        %v3981 = vrot.slane %v3979, 5
        %v3982 = vor.u32 %v3978, %v3981
        %v3983 = vrot.slane %v3982, 4
        %v3985 = vshll.u32 %v3676, 16
        %v3987 = vrot.slane %v3985, 5
        %v3988 = vsel %vm321, %v3983, %v3987
        %v3989 = vshrl.u32 %v3676, 16
        %v3991 = vrot.slane %v3989, 4
        %v3992 = vor.u32 %v3991, %v3987
        %v3993 = vrot.slane %v3992, 4
        %v3995 = vshll.u32 %v3677, 16
        %v3997 = vrot.slane %v3995, 5
        %v3998 = vsel %vm321, %v3993, %v3997
        %v4000 = vshrl.u32 %v3678, 16
        %v4002 = vrot.slane %v4000, 4
        %v4003 = vshll.u32 %v3678, 16
        %v4005 = vrot.slane %v4003, 5
        %v4006 = vor.u32 %v4002, %v4005
        %v4007 = vrot.slane %v4006, 4
        %v4009 = vshll.u32 %v3679, 16
        %v4011 = vrot.slane %v4009, 5
        %v4012 = vsel %vm321, %v4007, %v4011
        %v4013 = vshrl.u32 %v3679, 16
        %v4015 = vrot.slane %v4013, 4
        %v4016 = vor.u32 %v4015, %v4011
        %v4017 = vrot.slane %v4016, 4
        %v4019 = vshll.u32 %v3680, 16
        %v4021 = vrot.slane %v4019, 5
        %v4022 = vsel %vm321, %v4017, %v4021
        %v4024 = vshrl.u32 %v3681, 16
        %v4026 = vrot.slane %v4024, 4
        %v4027 = vshll.u32 %v3681, 16
        %v4029 = vrot.slane %v4027, 5
        %v4030 = vor.u32 %v4026, %v4029
        %v4031 = vrot.slane %v4030, 4
        %v4033 = vshll.u32 %v3682, 16
        %v4035 = vrot.slane %v4033, 5
        %v4036 = vsel %vm321, %v4031, %v4035
        %v4037 = vshrl.u32 %v3682, 16
        %v4039 = vrot.slane %v4037, 4
        %v4040 = vor.u32 %v4039, %v4035
        %v4041 = vrot.slane %v4040, 4
        %v4043 = vshll.u32 %v3683, 16
        %v4045 = vrot.slane %v4043, 5
        %v4046 = vsel %vm321, %v4041, %v4045
        %v4048 = vshrl.u32 %v3684, 16
        %v4050 = vrot.slane %v4048, 4
        %v4051 = vshll.u32 %v3684, 16
        %v4053 = vrot.slane %v4051, 5
        %v4054 = vor.u32 %v4050, %v4053
        %v4055 = vrot.slane %v4054, 4
        %v4057 = vshll.u32 %v3685, 16
        %v4059 = vrot.slane %v4057, 5
        %v4060 = vsel %vm321, %v4055, %v4059
        %v4061 = vshrl.u32 %v3685, 16
        %v4063 = vrot.slane %v4061, 4
        %v4064 = vor.u32 %v4063, %v4059
        %v4065 = vrot.slane %v4064, 4
        %v4067 = vshll.u32 %v3686, 16
        %v4069 = vrot.slane %v4067, 5
        %v4070 = vsel %vm321, %v4065, %v4069
        %s4071 = scalar_lea.vmem %s257, 14
        %v4072 = vld [vmem:[%s4071] sm:$0x3]
        %v4073 = vunpack.c.l.b16 %v3700
        %v4074 = vunpack.c.l.b16 %v3710
        %v4075 = vunpack.c.l.b16 %v3724
        %v4076 = vunpack.c.l.b16 %v3734
        %v4077 = vunpack.c.l.b16 %v3748
        %v4078 = vunpack.c.l.b16 %v3758
        %v4079 = vunpack.c.l.b16 %v3772
        %v4080 = vunpack.c.l.b16 %v3782
        %v4081 = vunpack.c.l.b16 %v3796
        %v4082 = vunpack.c.l.b16 %v3806
        %v4083 = vunpack.c.l.b16 %v3820
        %v4084 = vunpack.c.l.b16 %v3830
        %v4085 = vunpack.c.l.b16 %v3844
        %v4086 = vunpack.c.l.b16 %v3854
        %v4087 = vunpack.c.l.b16 %v3868
        %v4088 = vunpack.c.l.b16 %v3878
        %v4089 = vunpack.c.l.b16 %v3892
        %v4090 = vunpack.c.l.b16 %v3902
        %v4091 = vunpack.c.l.b16 %v3916
        %v4092 = vunpack.c.l.b16 %v3926
        %v4093 = vunpack.c.l.b16 %v3940
        %v4094 = vunpack.c.l.b16 %v3950
        %v4095 = vunpack.c.l.b16 %v3964
        %v4096 = vunpack.c.l.b16 %v3974
        %v4097 = vunpack.c.l.b16 %v3988
        %v4098 = vunpack.c.l.b16 %v3998
        %v4099 = vunpack.c.l.b16 %v4012
        %v4100 = vunpack.c.l.b16 %v4022
        %v4101 = vunpack.c.l.b16 %v4036
        %v4102 = vunpack.c.l.b16 %v4046
        %v4103 = vunpack.c.l.b16 %v4060
        %v4104 = vunpack.c.l.b16 %v4070
        %v4105 = vpack.c.b16 %v4074, %v4073
        %v4106 = vpack.c.b16 %v4076, %v4075
        %v4107 = vpack.c.b16 %v4078, %v4077
        %v4108 = vpack.c.b16 %v4080, %v4079
        %v4109 = vpack.c.b16 %v4082, %v4081
        %v4110 = vpack.c.b16 %v4084, %v4083
        %v4111 = vpack.c.b16 %v4086, %v4085
        %v4112 = vpack.c.b16 %v4088, %v4087
        %v4113 = vpack.c.b16 %v4090, %v4089
        %v4114 = vpack.c.b16 %v4092, %v4091
        %v4115 = vpack.c.b16 %v4094, %v4093
        %v4116 = vpack.c.b16 %v4096, %v4095
        %v4117 = vpack.c.b16 %v4098, %v4097
        %v4118 = vpack.c.b16 %v4100, %v4099
        %v4119 = vpack.c.b16 %v4102, %v4101
        %v4120 = vpack.c.b16 %v4104, %v4103
        %v4122 = vsel %vm756, %v4105, 0
        %v4125 = vsel %vm756, %v4106, 0
        %v4128 = vsel %vm756, %v4107, 0
        %v4131 = vsel %vm756, %v4108, 0
        %v4134 = vsel %vm756, %v4109, 0
        %v4137 = vsel %vm756, %v4110, 0
        %v4140 = vsel %vm756, %v4111, 0
        %v4143 = vsel %vm756, %v4112, 0
        %v4146 = vsel %vm756, %v4113, 0
        %v4149 = vsel %vm756, %v4114, 0
        %v4152 = vsel %vm756, %v4115, 0
        %v4155 = vsel %vm756, %v4116, 0
        %v4158 = vsel %vm756, %v4117, 0
        %v4161 = vsel %vm756, %v4118, 0
        %v4164 = vsel %vm756, %v4119, 0
        %v4167 = vsel %vm756, %v4120, 0
        %v4170 = vsel %vm805, %v4072, 0
        %4172 = vmatprep.subr.bf16.mxu0 0
        %4173 = vmatpush1.bf16.msra.mxu0 %v4170
        %4174 = vmatprep.subr.bf16.mxu0 0
        %4175 = vmatpush1.bf16.msra.mxu0 0
        %4176 = vmatprep.subr.bf16.mxu0 0
        %4177 = vmatpush1.bf16.msra.mxu0 0
        %4178 = vmatprep.subr.bf16.mxu0 0
        %4179 = vmatpush1.bf16.msra.mxu0 0
        %4180 = vmatprep.subr.bf16.mxu0 0
        %4181 = vmatpush1.bf16.msra.mxu0 0
        %4182 = vmatprep.subr.bf16.mxu0 0
        %4183 = vmatpush1.bf16.msra.mxu0 0
        %4184 = vmatprep.subr.bf16.mxu0 0
        %4185 = vmatpush1.bf16.msra.mxu0 0
        %4186 = vmatprep.subr.bf16.mxu0 0
        %4187 = vmatpush1.bf16.msra.mxu0 0
        %4188 = vmatprep.subr.bf16.mxu0 0
        %4189 = vmatpush1.bf16.msra.mxu0 0
        %4190 = vmatprep.subr.bf16.mxu0 0
        %4191 = vmatpush1.bf16.msra.mxu0 0
        %4192 = vmatprep.subr.bf16.mxu0 0
        %4193 = vmatpush1.bf16.msra.mxu0 0
        %4194 = vmatprep.subr.bf16.mxu0 0
        %4195 = vmatpush1.bf16.msra.mxu0 0
        %4196 = vmatprep.subr.bf16.mxu0 0
        %4197 = vmatpush1.bf16.msra.mxu0 0
        %4198 = vmatprep.subr.bf16.mxu0 0
        %4199 = vmatpush1.bf16.msra.mxu0 0
        %4200 = vmatprep.subr.bf16.mxu0 0
        %4201 = vmatpush1.bf16.msra.mxu0 0
        %4202 = vmatprep.subr.bf16.mxu0 0
        %4203 = vmatpush1.bf16.msra.mxu0 0
        %4204 = vmatprep.mubr.bf16.mxu0 0
        %4205 = vmatmul.mubr.bf16.gmra.mrb[0].mxu0 %v4122
        %v4206 = vpop.f32.mrb[0].mxu0
        %v4207 = vadd.f32 0.0, %v4206
        %v4208 = vpop.f32.mrb[0].mxu0
        %v4209 = vpop.f32.mrb[0].mxu0
        %v4210 = vadd.f32 0.0, %v4209
        %v4211 = vpop.f32.mrb[0].mxu0
        %4212 = vmatprep.mubr.bf16.mxu0 0
        %4213 = vmatmul.mubr.bf16.gmra.mrb[0].mxu0 %v4125
        %v4214 = vpop.f32.mrb[0].mxu0
        %v4215 = vadd.f32 0.0, %v4214
        %v4216 = vpop.f32.mrb[0].mxu0
        %v4217 = vpop.f32.mrb[0].mxu0
        %v4218 = vadd.f32 0.0, %v4217
        %v4219 = vpop.f32.mrb[0].mxu0
        %4220 = vmatprep.mubr.bf16.mxu0 0
        %4221 = vmatmul.mubr.bf16.gmra.mrb[0].mxu0 %v4128
        %v4222 = vpop.f32.mrb[0].mxu0
        %v4223 = vadd.f32 0.0, %v4222
        %v4224 = vpop.f32.mrb[0].mxu0
        %v4225 = vpop.f32.mrb[0].mxu0
        %v4226 = vadd.f32 0.0, %v4225
        %v4227 = vpop.f32.mrb[0].mxu0
        %4228 = vmatprep.mubr.bf16.mxu0 0
        %4229 = vmatmul.mubr.bf16.gmra.mrb[0].mxu0 %v4131
        %v4230 = vpop.f32.mrb[0].mxu0
        %v4231 = vadd.f32 0.0, %v4230
        %v4232 = vpop.f32.mrb[0].mxu0
        %v4233 = vpop.f32.mrb[0].mxu0
        %v4234 = vadd.f32 0.0, %v4233
        %v4235 = vpop.f32.mrb[0].mxu0
        %4236 = vmatprep.mubr.bf16.mxu0 0
        %4237 = vmatmul.mubr.bf16.gmra.mrb[0].mxu0 %v4134
        %v4238 = vpop.f32.mrb[0].mxu0
        %v4239 = vadd.f32 0.0, %v4238
        %v4240 = vpop.f32.mrb[0].mxu0
        %v4241 = vpop.f32.mrb[0].mxu0
        %v4242 = vadd.f32 0.0, %v4241
        %v4243 = vpop.f32.mrb[0].mxu0
        %4244 = vmatprep.mubr.bf16.mxu0 0
        %4245 = vmatmul.mubr.bf16.gmra.mrb[0].mxu0 %v4137
        %v4246 = vpop.f32.mrb[0].mxu0
        %v4247 = vadd.f32 0.0, %v4246
        %v4248 = vpop.f32.mrb[0].mxu0
        %v4249 = vpop.f32.mrb[0].mxu0
        %v4250 = vadd.f32 0.0, %v4249
        %v4251 = vpop.f32.mrb[0].mxu0
        %4252 = vmatprep.mubr.bf16.mxu0 0
        %4253 = vmatmul.mubr.bf16.gmra.mrb[0].mxu0 %v4140
        %v4254 = vpop.f32.mrb[0].mxu0
        %v4255 = vadd.f32 0.0, %v4254
        %v4256 = vpop.f32.mrb[0].mxu0
        %v4257 = vpop.f32.mrb[0].mxu0
        %v4258 = vadd.f32 0.0, %v4257
        %v4259 = vpop.f32.mrb[0].mxu0
        %4260 = vmatprep.mubr.bf16.mxu0 0
        %4261 = vmatmul.mubr.bf16.gmra.mrb[0].mxu0 %v4143
        %v4262 = vpop.f32.mrb[0].mxu0
        %v4263 = vadd.f32 0.0, %v4262
        %v4264 = vpop.f32.mrb[0].mxu0
        %v4265 = vpop.f32.mrb[0].mxu0
        %v4266 = vadd.f32 0.0, %v4265
        %v4267 = vpop.f32.mrb[0].mxu0
        %4268 = vmatprep.mubr.bf16.mxu0 0
        %4269 = vmatmul.mubr.bf16.gmra.mrb[0].mxu0 %v4146
        %v4270 = vpop.f32.mrb[0].mxu0
        %v4271 = vadd.f32 0.0, %v4270
        %v4272 = vpop.f32.mrb[0].mxu0
        %v4273 = vpop.f32.mrb[0].mxu0
        %v4274 = vadd.f32 0.0, %v4273
        %v4275 = vpop.f32.mrb[0].mxu0
        %4276 = vmatprep.mubr.bf16.mxu0 0
        %4277 = vmatmul.mubr.bf16.gmra.mrb[0].mxu0 %v4149
        %v4278 = vpop.f32.mrb[0].mxu0
        %v4279 = vadd.f32 0.0, %v4278
        %v4280 = vpop.f32.mrb[0].mxu0
        %v4281 = vpop.f32.mrb[0].mxu0
        %v4282 = vadd.f32 0.0, %v4281
        %v4283 = vpop.f32.mrb[0].mxu0
        %4284 = vmatprep.mubr.bf16.mxu0 0
        %4285 = vmatmul.mubr.bf16.gmra.mrb[0].mxu0 %v4152
        %v4286 = vpop.f32.mrb[0].mxu0
        %v4287 = vadd.f32 0.0, %v4286
        %v4288 = vpop.f32.mrb[0].mxu0
        %v4289 = vpop.f32.mrb[0].mxu0
        %v4290 = vadd.f32 0.0, %v4289
        %v4291 = vpop.f32.mrb[0].mxu0
        %4292 = vmatprep.mubr.bf16.mxu0 0
        %4293 = vmatmul.mubr.bf16.gmra.mrb[0].mxu0 %v4155
        %v4294 = vpop.f32.mrb[0].mxu0
        %v4295 = vadd.f32 0.0, %v4294
        %v4296 = vpop.f32.mrb[0].mxu0
        %v4297 = vpop.f32.mrb[0].mxu0
        %v4298 = vadd.f32 0.0, %v4297
        %v4299 = vpop.f32.mrb[0].mxu0
        %4300 = vmatprep.mubr.bf16.mxu0 0
        %4301 = vmatmul.mubr.bf16.gmra.mrb[0].mxu0 %v4158
        %v4302 = vpop.f32.mrb[0].mxu0
        %v4303 = vadd.f32 0.0, %v4302
        %v4304 = vpop.f32.mrb[0].mxu0
        %v4305 = vpop.f32.mrb[0].mxu0
        %v4306 = vadd.f32 0.0, %v4305
        %v4307 = vpop.f32.mrb[0].mxu0
        %4308 = vmatprep.mubr.bf16.mxu0 0
        %4309 = vmatmul.mubr.bf16.gmra.mrb[0].mxu0 %v4161
        %v4310 = vpop.f32.mrb[0].mxu0
        %v4311 = vadd.f32 0.0, %v4310
        %v4312 = vpop.f32.mrb[0].mxu0
        %v4313 = vpop.f32.mrb[0].mxu0
        %v4314 = vadd.f32 0.0, %v4313
        %v4315 = vpop.f32.mrb[0].mxu0
        %4316 = vmatprep.mubr.bf16.mxu0 0
        %4317 = vmatmul.mubr.bf16.gmra.mrb[0].mxu0 %v4164
        %v4318 = vpop.f32.mrb[0].mxu0
        %v4319 = vadd.f32 0.0, %v4318
        %v4320 = vpop.f32.mrb[0].mxu0
        %v4321 = vpop.f32.mrb[0].mxu0
        %v4322 = vadd.f32 0.0, %v4321
        %v4323 = vpop.f32.mrb[0].mxu0
        %4324 = vmatprep.mubr.bf16.mxu0 0
        %4325 = vmatmul.mubr.bf16.gmra.mrb[0].mxu0 %v4167
        %v4326 = vpop.f32.mrb[0].mxu0
        %v4327 = vadd.f32 0.0, %v4326
        %v4328 = vpop.f32.mrb[0].mxu0
        %v4329 = vpop.f32.mrb[0].mxu0
        %v4330 = vadd.f32 0.0, %v4329
        %v4331 = vpop.f32.mrb[0].mxu0
        %4332 = vdwg.mxu0
        %v4333 = vadd.f32 %v3607, %v4207
        %v4334 = vadd.f32 %v3608, %v4210
        %v4335 = vadd.f32 %v3609, %v4215
        %v4336 = vadd.f32 %v3610, %v4218
        %v4337 = vadd.f32 %v3611, %v4223
        %v4338 = vadd.f32 %v3612, %v4226
        %v4339 = vadd.f32 %v3613, %v4231
        %v4340 = vadd.f32 %v3614, %v4234
        %v4341 = vadd.f32 %v3615, %v4239
        %v4342 = vadd.f32 %v3616, %v4242
        %v4343 = vadd.f32 %v3617, %v4247
        %v4344 = vadd.f32 %v3618, %v4250
        %v4345 = vadd.f32 %v3619, %v4255
        %v4346 = vadd.f32 %v3620, %v4258
        %v4347 = vadd.f32 %v3621, %v4263
        %v4348 = vadd.f32 %v3622, %v4266
        %v4349 = vadd.f32 %v3623, %v4271
        %v4350 = vadd.f32 %v3624, %v4274
        %v4351 = vadd.f32 %v3625, %v4279
        %v4352 = vadd.f32 %v3626, %v4282
        %v4353 = vadd.f32 %v3627, %v4287
        %v4354 = vadd.f32 %v3628, %v4290
        %v4355 = vadd.f32 %v3629, %v4295
        %v4356 = vadd.f32 %v3630, %v4298
        %v4357 = vadd.f32 %v3631, %v4303
        %v4358 = vadd.f32 %v3632, %v4306
        %v4359 = vadd.f32 %v3633, %v4311
        %v4360 = vadd.f32 %v3634, %v4314
        %v4361 = vadd.f32 %v3635, %v4319
        %v4362 = vadd.f32 %v3636, %v4322
        %v4363 = vadd.f32 %v3637, %v4327
        %v4364 = vadd.f32 %v3638, %v4330
        %v4365 = vld [vmem:[%s3280] sm:$0xe]
        %v4366 = vld [vmem:[%s3280 + $0xc] sm:$0xe]
        %v4367 = vld [vmem:[%s3280 + $0x18] sm:$0xe]
        %v4368 = vld [vmem:[%s3280 + $0x24] sm:$0xe]
        %v4369 = vld [vmem:[%s3280 + $0x30] sm:$0xe]
        %v4370 = vld [vmem:[%s3280 + $0x3c] sm:$0xe]
        %v4371 = vld [vmem:[%s3280 + $0x48] sm:$0xe]
        %v4372 = vld [vmem:[%s3280 + $0x54] sm:$0xe]
        %v4373 = vld [vmem:[%s3280 + $0x60] sm:$0xe]
        %v4374 = vld [vmem:[%s3280 + $0x6c] sm:$0xe]
        %v4375 = vld [vmem:[%s3280 + $0x78] sm:$0xe]
        %v4376 = vld [vmem:[%s3280 + $0x84] sm:$0xe]
        %v4377 = vld [vmem:[%s3280 + $0x90] sm:$0xe]
        %v4378 = vld [vmem:[%s3280 + $0x9c] sm:$0xe]
        %v4379 = vld [vmem:[%s3280 + $0xa8] sm:$0xe]
        %v4380 = vld [vmem:[%s3280 + $0xb4] sm:$0xe]
        %v4429 = vrot.slane %v4365, 5
        %v4430 = vrot.slane %v4429, 4
        %v4431 = vrot.slane %v3640, 5
        %v4432 = vsel %vm1312, %v4430, %v4431
        %v4433 = vrot.slane %v4431, 4
        %v4434 = vrot.slane %v3641, 5
        %v4435 = vsel %vm1312, %v4433, %v4434
        %v4436 = vrot.slane %v4366, 5
        %v4437 = vrot.slane %v4436, 4
        %v4438 = vrot.slane %v3643, 5
        %v4439 = vsel %vm1312, %v4437, %v4438
        %v4440 = vrot.slane %v4438, 4
        %v4441 = vrot.slane %v3644, 5
        %v4442 = vsel %vm1312, %v4440, %v4441
        %v4443 = vrot.slane %v4367, 5
        %v4444 = vrot.slane %v4443, 4
        %v4445 = vrot.slane %v3646, 5
        %v4446 = vsel %vm1312, %v4444, %v4445
        %v4447 = vrot.slane %v4445, 4
        %v4448 = vrot.slane %v3647, 5
        %v4449 = vsel %vm1312, %v4447, %v4448
        %v4450 = vrot.slane %v4368, 5
        %v4451 = vrot.slane %v4450, 4
        %v4452 = vrot.slane %v3649, 5
        %v4453 = vsel %vm1312, %v4451, %v4452
        %v4454 = vrot.slane %v4452, 4
        %v4455 = vrot.slane %v3650, 5
        %v4456 = vsel %vm1312, %v4454, %v4455
        %v4457 = vrot.slane %v4369, 5
        %v4458 = vrot.slane %v4457, 4
        %v4459 = vrot.slane %v3652, 5
        %v4460 = vsel %vm1312, %v4458, %v4459
        %v4461 = vrot.slane %v4459, 4
        %v4462 = vrot.slane %v3653, 5
        %v4463 = vsel %vm1312, %v4461, %v4462
        %v4464 = vrot.slane %v4370, 5
        %v4465 = vrot.slane %v4464, 4
        %v4466 = vrot.slane %v3655, 5
        %v4467 = vsel %vm1312, %v4465, %v4466
        %v4468 = vrot.slane %v4466, 4
        %v4469 = vrot.slane %v3656, 5
        %v4470 = vsel %vm1312, %v4468, %v4469
        %v4471 = vrot.slane %v4371, 5
        %v4472 = vrot.slane %v4471, 4
        %v4473 = vrot.slane %v3658, 5
        %v4474 = vsel %vm1312, %v4472, %v4473
        %v4475 = vrot.slane %v4473, 4
        %v4476 = vrot.slane %v3659, 5
        %v4477 = vsel %vm1312, %v4475, %v4476
        %v4478 = vrot.slane %v4372, 5
        %v4479 = vrot.slane %v4478, 4
        %v4480 = vrot.slane %v3661, 5
        %v4481 = vsel %vm1312, %v4479, %v4480
        %v4482 = vrot.slane %v4480, 4
        %v4483 = vrot.slane %v3662, 5
        %v4484 = vsel %vm1312, %v4482, %v4483
        %v4485 = vrot.slane %v4373, 5
        %v4486 = vrot.slane %v4485, 4
        %v4487 = vrot.slane %v3664, 5
        %v4488 = vsel %vm1312, %v4486, %v4487
        %v4489 = vrot.slane %v4487, 4
        %v4490 = vrot.slane %v3665, 5
        %v4491 = vsel %vm1312, %v4489, %v4490
        %v4492 = vrot.slane %v4374, 5
        %v4493 = vrot.slane %v4492, 4
        %v4494 = vrot.slane %v3667, 5
        %v4495 = vsel %vm1312, %v4493, %v4494
        %v4496 = vrot.slane %v4494, 4
        %v4497 = vrot.slane %v3668, 5
        %v4498 = vsel %vm1312, %v4496, %v4497
        %v4499 = vrot.slane %v4375, 5
        %v4500 = vrot.slane %v4499, 4
        %v4501 = vrot.slane %v3670, 5
        %v4502 = vsel %vm1312, %v4500, %v4501
        %v4503 = vrot.slane %v4501, 4
        %v4504 = vrot.slane %v3671, 5
        %v4505 = vsel %vm1312, %v4503, %v4504
        %v4506 = vrot.slane %v4376, 5
        %v4507 = vrot.slane %v4506, 4
        %v4508 = vrot.slane %v3673, 5
        %v4509 = vsel %vm1312, %v4507, %v4508
        %v4510 = vrot.slane %v4508, 4
        %v4511 = vrot.slane %v3674, 5
        %v4512 = vsel %vm1312, %v4510, %v4511
        %v4513 = vrot.slane %v4377, 5
        %v4514 = vrot.slane %v4513, 4
        %v4515 = vrot.slane %v3676, 5
        %v4516 = vsel %vm1312, %v4514, %v4515
        %v4517 = vrot.slane %v4515, 4
        %v4518 = vrot.slane %v3677, 5
        %v4519 = vsel %vm1312, %v4517, %v4518
        %v4520 = vrot.slane %v4378, 5
        %v4521 = vrot.slane %v4520, 4
        %v4522 = vrot.slane %v3679, 5
        %v4523 = vsel %vm1312, %v4521, %v4522
        %v4524 = vrot.slane %v4522, 4
        %v4525 = vrot.slane %v3680, 5
        %v4526 = vsel %vm1312, %v4524, %v4525
        %v4527 = vrot.slane %v4379, 5
        %v4528 = vrot.slane %v4527, 4
        %v4529 = vrot.slane %v3682, 5
        %v4530 = vsel %vm1312, %v4528, %v4529
        %v4531 = vrot.slane %v4529, 4
        %v4532 = vrot.slane %v3683, 5
        %v4533 = vsel %vm1312, %v4531, %v4532
        %v4534 = vrot.slane %v4380, 5
        %v4535 = vrot.slane %v4534, 4
        %v4536 = vrot.slane %v3685, 5
        %v4537 = vsel %vm1312, %v4535, %v4536
        %v4538 = vrot.slane %v4536, 4
        %v4539 = vrot.slane %v3686, 5
        %v4540 = vsel %vm1312, %v4538, %v4539
        %s4541 = scalar_lea.vmem %s257, 16
        %v4542 = vld [vmem:[%s4541] sm:$0x3]
        %v4543 = vunpack.c.l.b16 %v4432
        %v4544 = vunpack.c.l.b16 %v4435
        %v4545 = vunpack.c.l.b16 %v4439
        %v4546 = vunpack.c.l.b16 %v4442
        %v4547 = vunpack.c.l.b16 %v4446
        %v4548 = vunpack.c.l.b16 %v4449
        %v4549 = vunpack.c.l.b16 %v4453
        %v4550 = vunpack.c.l.b16 %v4456
        %v4551 = vunpack.c.l.b16 %v4460
        %v4552 = vunpack.c.l.b16 %v4463
        %v4553 = vunpack.c.l.b16 %v4467
        %v4554 = vunpack.c.l.b16 %v4470
        %v4555 = vunpack.c.l.b16 %v4474
        %v4556 = vunpack.c.l.b16 %v4477
        %v4557 = vunpack.c.l.b16 %v4481
        %v4558 = vunpack.c.l.b16 %v4484
        %v4559 = vunpack.c.l.b16 %v4488
        %v4560 = vunpack.c.l.b16 %v4491
        %v4561 = vunpack.c.l.b16 %v4495
        %v4562 = vunpack.c.l.b16 %v4498
        %v4563 = vunpack.c.l.b16 %v4502
        %v4564 = vunpack.c.l.b16 %v4505
        %v4565 = vunpack.c.l.b16 %v4509
        %v4566 = vunpack.c.l.b16 %v4512
        %v4567 = vunpack.c.l.b16 %v4516
        %v4568 = vunpack.c.l.b16 %v4519
        %v4569 = vunpack.c.l.b16 %v4523
        %v4570 = vunpack.c.l.b16 %v4526
        %v4571 = vunpack.c.l.b16 %v4530
        %v4572 = vunpack.c.l.b16 %v4533
        %v4573 = vunpack.c.l.b16 %v4537
        %v4574 = vunpack.c.l.b16 %v4540
        %v4575 = vpack.c.b16 %v4544, %v4543
        %v4576 = vpack.c.b16 %v4546, %v4545
        %v4577 = vpack.c.b16 %v4548, %v4547
        %v4578 = vpack.c.b16 %v4550, %v4549
        %v4579 = vpack.c.b16 %v4552, %v4551
        %v4580 = vpack.c.b16 %v4554, %v4553
        %v4581 = vpack.c.b16 %v4556, %v4555
        %v4582 = vpack.c.b16 %v4558, %v4557
        %v4583 = vpack.c.b16 %v4560, %v4559
        %v4584 = vpack.c.b16 %v4562, %v4561
        %v4585 = vpack.c.b16 %v4564, %v4563
        %v4586 = vpack.c.b16 %v4566, %v4565
        %v4587 = vpack.c.b16 %v4568, %v4567
        %v4588 = vpack.c.b16 %v4570, %v4569
        %v4589 = vpack.c.b16 %v4572, %v4571
        %v4590 = vpack.c.b16 %v4574, %v4573
        %v4592 = vsel %vm756, %v4575, 0
        %v4595 = vsel %vm756, %v4576, 0
        %v4598 = vsel %vm756, %v4577, 0
        %v4601 = vsel %vm756, %v4578, 0
        %v4604 = vsel %vm756, %v4579, 0
        %v4607 = vsel %vm756, %v4580, 0
        %v4610 = vsel %vm756, %v4581, 0
        %v4613 = vsel %vm756, %v4582, 0
        %v4616 = vsel %vm756, %v4583, 0
        %v4619 = vsel %vm756, %v4584, 0
        %v4622 = vsel %vm756, %v4585, 0
        %v4625 = vsel %vm756, %v4586, 0
        %v4628 = vsel %vm756, %v4587, 0
        %v4631 = vsel %vm756, %v4588, 0
        %v4634 = vsel %vm756, %v4589, 0
        %v4637 = vsel %vm756, %v4590, 0
        %v4640 = vsel %vm805, %v4542, 0
        %4642 = vmatprep.subr.bf16.mxu0 0
        %4643 = vmatpush1.bf16.msra.mxu0 %v4640
        %4644 = vmatprep.subr.bf16.mxu0 0
        %4645 = vmatpush1.bf16.msra.mxu0 0
        %4646 = vmatprep.subr.bf16.mxu0 0
        %4647 = vmatpush1.bf16.msra.mxu0 0
        %4648 = vmatprep.subr.bf16.mxu0 0
        %4649 = vmatpush1.bf16.msra.mxu0 0
        %4650 = vmatprep.subr.bf16.mxu0 0
        %4651 = vmatpush1.bf16.msra.mxu0 0
        %4652 = vmatprep.subr.bf16.mxu0 0
        %4653 = vmatpush1.bf16.msra.mxu0 0
        %4654 = vmatprep.subr.bf16.mxu0 0
        %4655 = vmatpush1.bf16.msra.mxu0 0
        %4656 = vmatprep.subr.bf16.mxu0 0
        %4657 = vmatpush1.bf16.msra.mxu0 0
        %4658 = vmatprep.subr.bf16.mxu0 0
        %4659 = vmatpush1.bf16.msra.mxu0 0
        %4660 = vmatprep.subr.bf16.mxu0 0
        %4661 = vmatpush1.bf16.msra.mxu0 0
        %4662 = vmatprep.subr.bf16.mxu0 0
        %4663 = vmatpush1.bf16.msra.mxu0 0
        %4664 = vmatprep.subr.bf16.mxu0 0
        %4665 = vmatpush1.bf16.msra.mxu0 0
        %4666 = vmatprep.subr.bf16.mxu0 0
        %4667 = vmatpush1.bf16.msra.mxu0 0
        %4668 = vmatprep.subr.bf16.mxu0 0
        %4669 = vmatpush1.bf16.msra.mxu0 0
        %4670 = vmatprep.subr.bf16.mxu0 0
        %4671 = vmatpush1.bf16.msra.mxu0 0
        %4672 = vmatprep.subr.bf16.mxu0 0
        %4673 = vmatpush1.bf16.msra.mxu0 0
        %4674 = vmatprep.mubr.bf16.mxu0 0
        %4675 = vmatmul.mubr.bf16.gmra.mrb[0].mxu0 %v4592
        %v4676 = vpop.f32.mrb[0].mxu0
        %v4677 = vadd.f32 0.0, %v4676
        %v4678 = vpop.f32.mrb[0].mxu0
        %v4679 = vpop.f32.mrb[0].mxu0
        %v4680 = vadd.f32 0.0, %v4679
        %v4681 = vpop.f32.mrb[0].mxu0
        %4682 = vmatprep.mubr.bf16.mxu0 0
        %4683 = vmatmul.mubr.bf16.gmra.mrb[0].mxu0 %v4595
        %v4684 = vpop.f32.mrb[0].mxu0
        %v4685 = vadd.f32 0.0, %v4684
        %v4686 = vpop.f32.mrb[0].mxu0
        %v4687 = vpop.f32.mrb[0].mxu0
        %v4688 = vadd.f32 0.0, %v4687
        %v4689 = vpop.f32.mrb[0].mxu0
        %4690 = vmatprep.mubr.bf16.mxu0 0
        %4691 = vmatmul.mubr.bf16.gmra.mrb[0].mxu0 %v4598
        %v4692 = vpop.f32.mrb[0].mxu0
        %v4693 = vadd.f32 0.0, %v4692
        %v4694 = vpop.f32.mrb[0].mxu0
        %v4695 = vpop.f32.mrb[0].mxu0
        %v4696 = vadd.f32 0.0, %v4695
        %v4697 = vpop.f32.mrb[0].mxu0
        %4698 = vmatprep.mubr.bf16.mxu0 0
        %4699 = vmatmul.mubr.bf16.gmra.mrb[0].mxu0 %v4601
        %v4700 = vpop.f32.mrb[0].mxu0
        %v4701 = vadd.f32 0.0, %v4700
        %v4702 = vpop.f32.mrb[0].mxu0
        %v4703 = vpop.f32.mrb[0].mxu0
        %v4704 = vadd.f32 0.0, %v4703
        %v4705 = vpop.f32.mrb[0].mxu0
        %4706 = vmatprep.mubr.bf16.mxu0 0
        %4707 = vmatmul.mubr.bf16.gmra.mrb[0].mxu0 %v4604
        %v4708 = vpop.f32.mrb[0].mxu0
        %v4709 = vadd.f32 0.0, %v4708
        %v4710 = vpop.f32.mrb[0].mxu0
        %v4711 = vpop.f32.mrb[0].mxu0
        %v4712 = vadd.f32 0.0, %v4711
        %v4713 = vpop.f32.mrb[0].mxu0
        %4714 = vmatprep.mubr.bf16.mxu0 0
        %4715 = vmatmul.mubr.bf16.gmra.mrb[0].mxu0 %v4607
        %v4716 = vpop.f32.mrb[0].mxu0
        %v4717 = vadd.f32 0.0, %v4716
        %v4718 = vpop.f32.mrb[0].mxu0
        %v4719 = vpop.f32.mrb[0].mxu0
        %v4720 = vadd.f32 0.0, %v4719
        %v4721 = vpop.f32.mrb[0].mxu0
        %4722 = vmatprep.mubr.bf16.mxu0 0
        %4723 = vmatmul.mubr.bf16.gmra.mrb[0].mxu0 %v4610
        %v4724 = vpop.f32.mrb[0].mxu0
        %v4725 = vadd.f32 0.0, %v4724
        %v4726 = vpop.f32.mrb[0].mxu0
        %v4727 = vpop.f32.mrb[0].mxu0
        %v4728 = vadd.f32 0.0, %v4727
        %v4729 = vpop.f32.mrb[0].mxu0
        %4730 = vmatprep.mubr.bf16.mxu0 0
        %4731 = vmatmul.mubr.bf16.gmra.mrb[0].mxu0 %v4613
        %v4732 = vpop.f32.mrb[0].mxu0
        %v4733 = vadd.f32 0.0, %v4732
        %v4734 = vpop.f32.mrb[0].mxu0
        %v4735 = vpop.f32.mrb[0].mxu0
        %v4736 = vadd.f32 0.0, %v4735
        %v4737 = vpop.f32.mrb[0].mxu0
        %4738 = vmatprep.mubr.bf16.mxu0 0
        %4739 = vmatmul.mubr.bf16.gmra.mrb[0].mxu0 %v4616
        %v4740 = vpop.f32.mrb[0].mxu0
        %v4741 = vadd.f32 0.0, %v4740
        %v4742 = vpop.f32.mrb[0].mxu0
        %v4743 = vpop.f32.mrb[0].mxu0
        %v4744 = vadd.f32 0.0, %v4743
        %v4745 = vpop.f32.mrb[0].mxu0
        %4746 = vmatprep.mubr.bf16.mxu0 0
        %4747 = vmatmul.mubr.bf16.gmra.mrb[0].mxu0 %v4619
        %v4748 = vpop.f32.mrb[0].mxu0
        %v4749 = vadd.f32 0.0, %v4748
        %v4750 = vpop.f32.mrb[0].mxu0
        %v4751 = vpop.f32.mrb[0].mxu0
        %v4752 = vadd.f32 0.0, %v4751
        %v4753 = vpop.f32.mrb[0].mxu0
        %4754 = vmatprep.mubr.bf16.mxu0 0
        %4755 = vmatmul.mubr.bf16.gmra.mrb[0].mxu0 %v4622
        %v4756 = vpop.f32.mrb[0].mxu0
        %v4757 = vadd.f32 0.0, %v4756
        %v4758 = vpop.f32.mrb[0].mxu0
        %v4759 = vpop.f32.mrb[0].mxu0
        %v4760 = vadd.f32 0.0, %v4759
        %v4761 = vpop.f32.mrb[0].mxu0
        %4762 = vmatprep.mubr.bf16.mxu0 0
        %4763 = vmatmul.mubr.bf16.gmra.mrb[0].mxu0 %v4625
        %v4764 = vpop.f32.mrb[0].mxu0
        %v4765 = vadd.f32 0.0, %v4764
        %v4766 = vpop.f32.mrb[0].mxu0
        %v4767 = vpop.f32.mrb[0].mxu0
        %v4768 = vadd.f32 0.0, %v4767
        %v4769 = vpop.f32.mrb[0].mxu0
        %4770 = vmatprep.mubr.bf16.mxu0 0
        %4771 = vmatmul.mubr.bf16.gmra.mrb[0].mxu0 %v4628
        %v4772 = vpop.f32.mrb[0].mxu0
        %v4773 = vadd.f32 0.0, %v4772
        %v4774 = vpop.f32.mrb[0].mxu0
        %v4775 = vpop.f32.mrb[0].mxu0
        %v4776 = vadd.f32 0.0, %v4775
        %v4777 = vpop.f32.mrb[0].mxu0
        %4778 = vmatprep.mubr.bf16.mxu0 0
        %4779 = vmatmul.mubr.bf16.gmra.mrb[0].mxu0 %v4631
        %v4780 = vpop.f32.mrb[0].mxu0
        %v4781 = vadd.f32 0.0, %v4780
        %v4782 = vpop.f32.mrb[0].mxu0
        %v4783 = vpop.f32.mrb[0].mxu0
        %v4784 = vadd.f32 0.0, %v4783
        %v4785 = vpop.f32.mrb[0].mxu0
        %4786 = vmatprep.mubr.bf16.mxu0 0
        %4787 = vmatmul.mubr.bf16.gmra.mrb[0].mxu0 %v4634
        %v4788 = vpop.f32.mrb[0].mxu0
        %v4789 = vadd.f32 0.0, %v4788
        %v4790 = vpop.f32.mrb[0].mxu0
        %v4791 = vpop.f32.mrb[0].mxu0
        %v4792 = vadd.f32 0.0, %v4791
        %v4793 = vpop.f32.mrb[0].mxu0
        %4794 = vmatprep.mubr.bf16.mxu0 0
        %4795 = vmatmul.mubr.bf16.gmra.mrb[0].mxu0 %v4637
        %v4796 = vpop.f32.mrb[0].mxu0
        %v4797 = vadd.f32 0.0, %v4796
        %v4798 = vpop.f32.mrb[0].mxu0
        %v4799 = vpop.f32.mrb[0].mxu0
        %v4800 = vadd.f32 0.0, %v4799
        %v4801 = vpop.f32.mrb[0].mxu0
        %4802 = vdwg.mxu0
        %v4803 = vadd.f32 %v4333, %v4677
        %v4804 = vadd.f32 %v4334, %v4680
        %v4805 = vadd.f32 %v4335, %v4685
        %v4806 = vadd.f32 %v4336, %v4688
        %v4807 = vadd.f32 %v4337, %v4693
        %v4808 = vadd.f32 %v4338, %v4696
        %v4809 = vadd.f32 %v4339, %v4701
        %v4810 = vadd.f32 %v4340, %v4704
        %v4811 = vadd.f32 %v4341, %v4709
        %v4812 = vadd.f32 %v4342, %v4712
        %v4813 = vadd.f32 %v4343, %v4717
        %v4814 = vadd.f32 %v4344, %v4720
        %v4815 = vadd.f32 %v4345, %v4725
        %v4816 = vadd.f32 %v4346, %v4728
        %v4817 = vadd.f32 %v4347, %v4733
        %v4818 = vadd.f32 %v4348, %v4736
        %v4819 = vadd.f32 %v4349, %v4741
        %v4820 = vadd.f32 %v4350, %v4744
        %v4821 = vadd.f32 %v4351, %v4749
        %v4822 = vadd.f32 %v4352, %v4752
        %v4823 = vadd.f32 %v4353, %v4757
        %v4824 = vadd.f32 %v4354, %v4760
        %v4825 = vadd.f32 %v4355, %v4765
        %v4826 = vadd.f32 %v4356, %v4768
        %v4827 = vadd.f32 %v4357, %v4773
        %v4828 = vadd.f32 %v4358, %v4776
        %v4829 = vadd.f32 %v4359, %v4781
        %v4830 = vadd.f32 %v4360, %v4784
        %v4831 = vadd.f32 %v4361, %v4789
        %v4832 = vadd.f32 %v4362, %v4792
        %v4833 = vadd.f32 %v4363, %v4797
        %v4834 = vadd.f32 %v4364, %v4800
        %v4835 = vld [vmem:[%s260] sm:$0x1]
        %v4837 = vlaneseq
        %v4838 = vshrl.u32 %v4837, 7
        %v4839 = vsub.s32 0, %v4838
        %v4840 = vrot.slane %v4835, %v4839
        %v4842 = vmul.f32 %v4803, %v4840
        %v4843 = vmul.f32 %v4804, %v4840
        %v4844 = vmul.f32 %v4805, %v4840
        %v4845 = vmul.f32 %v4806, %v4840
        %v4846 = vmul.f32 %v4807, %v4840
        %v4847 = vmul.f32 %v4808, %v4840
        %v4848 = vmul.f32 %v4809, %v4840
        %v4849 = vmul.f32 %v4810, %v4840
        %v4850 = vmul.f32 %v4811, %v4840
        %v4851 = vmul.f32 %v4812, %v4840
        %v4852 = vmul.f32 %v4813, %v4840
        %v4853 = vmul.f32 %v4814, %v4840
        %v4854 = vmul.f32 %v4815, %v4840
        %v4855 = vmul.f32 %v4816, %v4840
        %v4856 = vmul.f32 %v4817, %v4840
        %v4857 = vmul.f32 %v4818, %v4840
        %v4858 = vmul.f32 %v4819, %v4840
        %v4859 = vmul.f32 %v4820, %v4840
        %v4860 = vmul.f32 %v4821, %v4840
        %v4861 = vmul.f32 %v4822, %v4840
        %v4862 = vmul.f32 %v4823, %v4840
        %v4863 = vmul.f32 %v4824, %v4840
        %v4864 = vmul.f32 %v4825, %v4840
        %v4865 = vmul.f32 %v4826, %v4840
        %v4866 = vmul.f32 %v4827, %v4840
        %v4867 = vmul.f32 %v4828, %v4840
        %v4868 = vmul.f32 %v4829, %v4840
        %v4869 = vmul.f32 %v4830, %v4840
        %v4870 = vmul.f32 %v4831, %v4840
        %v4871 = vmul.f32 %v4832, %v4840
        %v4872 = vmul.f32 %v4833, %v4840
        %v4873 = vmul.f32 %v4834, %v4840
        %v4874 = vld [vmem:[%s263] sm:$0x1]
        %v4876 = vlaneseq
        %v4877 = vshrl.u32 %v4876, 7
        %v4878 = vsub.s32 0, %v4877
        %v4879 = vrot.slane %v4874, %v4878
        %v4881 = vadd.f32 %v4842, %v4879
        %v4882 = vadd.f32 %v4843, %v4879
        %v4883 = vadd.f32 %v4844, %v4879
        %v4884 = vadd.f32 %v4845, %v4879
        %v4885 = vadd.f32 %v4846, %v4879
        %v4886 = vadd.f32 %v4847, %v4879
        %v4887 = vadd.f32 %v4848, %v4879
        %v4888 = vadd.f32 %v4849, %v4879
        %v4889 = vadd.f32 %v4850, %v4879
        %v4890 = vadd.f32 %v4851, %v4879
        %v4891 = vadd.f32 %v4852, %v4879
        %v4892 = vadd.f32 %v4853, %v4879
        %v4893 = vadd.f32 %v4854, %v4879
        %v4894 = vadd.f32 %v4855, %v4879
        %v4895 = vadd.f32 %v4856, %v4879
        %v4896 = vadd.f32 %v4857, %v4879
        %v4897 = vadd.f32 %v4858, %v4879
        %v4898 = vadd.f32 %v4859, %v4879
        %v4899 = vadd.f32 %v4860, %v4879
        %v4900 = vadd.f32 %v4861, %v4879
        %v4901 = vadd.f32 %v4862, %v4879
        %v4902 = vadd.f32 %v4863, %v4879
        %v4903 = vadd.f32 %v4864, %v4879
        %v4904 = vadd.f32 %v4865, %v4879
        %v4905 = vadd.f32 %v4866, %v4879
        %v4906 = vadd.f32 %v4867, %v4879
        %v4907 = vadd.f32 %v4868, %v4879
        %v4908 = vadd.f32 %v4869, %v4879
        %v4909 = vadd.f32 %v4870, %v4879
        %v4910 = vadd.f32 %v4871, %v4879
        %v4911 = vadd.f32 %v4872, %v4879
        %v4912 = vadd.f32 %v4873, %v4879
        %v4913 = vmax.f32 %v4881, 0.0
        %v4914 = vmax.f32 %v4882, 0.0
        %v4915 = vmax.f32 %v4883, 0.0
        %v4916 = vmax.f32 %v4884, 0.0
        %v4917 = vmax.f32 %v4885, 0.0
        %v4918 = vmax.f32 %v4886, 0.0
        %v4919 = vmax.f32 %v4887, 0.0
        %v4920 = vmax.f32 %v4888, 0.0
        %v4921 = vmax.f32 %v4889, 0.0
        %v4922 = vmax.f32 %v4890, 0.0
        %v4923 = vmax.f32 %v4891, 0.0
        %v4924 = vmax.f32 %v4892, 0.0
        %v4925 = vmax.f32 %v4893, 0.0
        %v4926 = vmax.f32 %v4894, 0.0
        %v4927 = vmax.f32 %v4895, 0.0
        %v4928 = vmax.f32 %v4896, 0.0
        %v4929 = vmax.f32 %v4897, 0.0
        %v4930 = vmax.f32 %v4898, 0.0
        %v4931 = vmax.f32 %v4899, 0.0
        %v4932 = vmax.f32 %v4900, 0.0
        %v4933 = vmax.f32 %v4901, 0.0
        %v4934 = vmax.f32 %v4902, 0.0
        %v4935 = vmax.f32 %v4903, 0.0
        %v4936 = vmax.f32 %v4904, 0.0
        %v4937 = vmax.f32 %v4905, 0.0
        %v4938 = vmax.f32 %v4906, 0.0
        %v4939 = vmax.f32 %v4907, 0.0
        %v4940 = vmax.f32 %v4908, 0.0
        %v4941 = vmax.f32 %v4909, 0.0
        %v4942 = vmax.f32 %v4910, 0.0
        %v4943 = vmax.f32 %v4911, 0.0
        %v4944 = vmax.f32 %v4912, 0.0
        %v4945 = vpack.c.bf16 %v4914, %v4913
        %v4946 = vpack.c.bf16 %v4916, %v4915
        %v4947 = vpack.c.bf16 %v4918, %v4917
        %v4948 = vpack.c.bf16 %v4920, %v4919
        %v4949 = vpack.c.bf16 %v4922, %v4921
        %v4950 = vpack.c.bf16 %v4924, %v4923
        %v4951 = vpack.c.bf16 %v4926, %v4925
        %v4952 = vpack.c.bf16 %v4928, %v4927
        %v4953 = vpack.c.bf16 %v4930, %v4929
        %v4954 = vpack.c.bf16 %v4932, %v4931
        %v4955 = vpack.c.bf16 %v4934, %v4933
        %v4956 = vpack.c.bf16 %v4936, %v4935
        %v4957 = vpack.c.bf16 %v4938, %v4937
        %v4958 = vpack.c.bf16 %v4940, %v4939
        %v4959 = vpack.c.bf16 %v4942, %v4941
        %v4960 = vpack.c.bf16 %v4944, %v4943
        %v4977 = vunpack.c.l.b16 %v4945
        %v4978 = vunpack.c.h.b16 %v4945
        %v4979 = vunpack.c.l.b16 %v4946
        %v4980 = vunpack.c.h.b16 %v4946
        %v4981 = vunpack.c.l.b16 %v4947
        %v4982 = vunpack.c.h.b16 %v4947
        %v4983 = vunpack.c.l.b16 %v4948
        %v4984 = vunpack.c.h.b16 %v4948
        %v4985 = vunpack.c.l.b16 %v4949
        %v4986 = vunpack.c.h.b16 %v4949
        %v4987 = vunpack.c.l.b16 %v4950
        %v4988 = vunpack.c.h.b16 %v4950
        %v4989 = vunpack.c.l.b16 %v4951
        %v4990 = vunpack.c.h.b16 %v4951
        %v4991 = vunpack.c.l.b16 %v4952
        %v4992 = vunpack.c.h.b16 %v4952
        %v4993 = vunpack.c.l.b16 %v4953
        %v4994 = vunpack.c.h.b16 %v4953
        %v4995 = vunpack.c.l.b16 %v4954
        %v4996 = vunpack.c.h.b16 %v4954
        %v4997 = vunpack.c.l.b16 %v4955
        %v4998 = vunpack.c.h.b16 %v4955
        %v4999 = vunpack.c.l.b16 %v4956
        %v5000 = vunpack.c.h.b16 %v4956
        %v5001 = vunpack.c.l.b16 %v4957
        %v5002 = vunpack.c.h.b16 %v4957
        %v5003 = vunpack.c.l.b16 %v4958
        %v5004 = vunpack.c.h.b16 %v4958
        %v5005 = vunpack.c.l.b16 %v4959
        %v5006 = vunpack.c.h.b16 %v4959
        %v5007 = vunpack.c.l.b16 %v4960
        %v5008 = vunpack.c.h.b16 %v4960
        %v5009 = vpack.c.b16 %v4977, %v4977
        %v5010 = vpack.c.b16 %v4978, %v4978
        %v5011 = vpack.c.b16 %v4979, %v4979
        %v5012 = vpack.c.b16 %v4980, %v4980
        %v5013 = vpack.c.b16 %v4981, %v4981
        %v5014 = vpack.c.b16 %v4982, %v4982
        %v5015 = vpack.c.b16 %v4983, %v4983
        %v5016 = vpack.c.b16 %v4984, %v4984
        %v5017 = vpack.c.b16 %v4985, %v4985
        %v5018 = vpack.c.b16 %v4986, %v4986
        %v5019 = vpack.c.b16 %v4987, %v4987
        %v5020 = vpack.c.b16 %v4988, %v4988
        %v5021 = vpack.c.b16 %v4989, %v4989
        %v5022 = vpack.c.b16 %v4990, %v4990
        %v5023 = vpack.c.b16 %v4991, %v4991
        %v5024 = vpack.c.b16 %v4992, %v4992
        %v5025 = vpack.c.b16 %v4993, %v4993
        %v5026 = vpack.c.b16 %v4994, %v4994
        %v5027 = vpack.c.b16 %v4995, %v4995
        %v5028 = vpack.c.b16 %v4996, %v4996
        %v5029 = vpack.c.b16 %v4997, %v4997
        %v5030 = vpack.c.b16 %v4998, %v4998
        %v5031 = vpack.c.b16 %v4999, %v4999
        %v5032 = vpack.c.b16 %v5000, %v5000
        %v5033 = vpack.c.b16 %v5001, %v5001
        %v5034 = vpack.c.b16 %v5002, %v5002
        %v5035 = vpack.c.b16 %v5003, %v5003
        %v5036 = vpack.c.b16 %v5004, %v5004
        %v5037 = vpack.c.b16 %v5005, %v5005
        %v5038 = vpack.c.b16 %v5006, %v5006
        %v5039 = vpack.c.b16 %v5007, %v5007
        %v5040 = vpack.c.b16 %v5008, %v5008
        %5073 = vst [vmem:[%s248] sm:$0xf] %v5009
        %5074 = vst [vmem:[%s248 + $0x4] sm:$0xf] %v5010
        %5075 = vst [vmem:[%s248 + $0x8] sm:$0xf] %v5011
        %5076 = vst [vmem:[%s248 + $0xc] sm:$0xf] %v5012
        %5077 = vst [vmem:[%s248 + $0x10] sm:$0xf] %v5013
        %5078 = vst [vmem:[%s248 + $0x14] sm:$0xf] %v5014
        %5079 = vst [vmem:[%s248 + $0x18] sm:$0xf] %v5015
        %5080 = vst [vmem:[%s248 + $0x1c] sm:$0xf] %v5016
        %5081 = vst [vmem:[%s248 + $0x20] sm:$0xf] %v5017
        %5082 = vst [vmem:[%s248 + $0x24] sm:$0xf] %v5018
        %5083 = vst [vmem:[%s248 + $0x28] sm:$0xf] %v5019
        %5084 = vst [vmem:[%s248 + $0x2c] sm:$0xf] %v5020
        %5085 = vst [vmem:[%s248 + $0x30] sm:$0xf] %v5021
        %5086 = vst [vmem:[%s248 + $0x34] sm:$0xf] %v5022
        %5087 = vst [vmem:[%s248 + $0x38] sm:$0xf] %v5023
        %5088 = vst [vmem:[%s248 + $0x3c] sm:$0xf] %v5024
        %5089 = vst [vmem:[%s248 + $0x40] sm:$0xf] %v5025
        %5090 = vst [vmem:[%s248 + $0x44] sm:$0xf] %v5026
        %5091 = vst [vmem:[%s248 + $0x48] sm:$0xf] %v5027
        %5092 = vst [vmem:[%s248 + $0x4c] sm:$0xf] %v5028
        %5093 = vst [vmem:[%s248 + $0x50] sm:$0xf] %v5029
        %5094 = vst [vmem:[%s248 + $0x54] sm:$0xf] %v5030
        %5095 = vst [vmem:[%s248 + $0x58] sm:$0xf] %v5031
        %5096 = vst [vmem:[%s248 + $0x5c] sm:$0xf] %v5032
        %5097 = vst [vmem:[%s248 + $0x60] sm:$0xf] %v5033
        %5098 = vst [vmem:[%s248 + $0x64] sm:$0xf] %v5034
        %5099 = vst [vmem:[%s248 + $0x68] sm:$0xf] %v5035
        %5100 = vst [vmem:[%s248 + $0x6c] sm:$0xf] %v5036
        %5101 = vst [vmem:[%s248 + $0x70] sm:$0xf] %v5037
        %5102 = vst [vmem:[%s248 + $0x74] sm:$0xf] %v5038
        %5103 = vst [vmem:[%s248 + $0x78] sm:$0xf] %v5039
        %5104 = vst [vmem:[%s248 + $0x7c] sm:$0xf] %v5040
        %s5105 = sand.u32 %s153, 1
        %s5106 = scalar_lea.sflag [#allocation3], %s5105
        %s5107 = sand.u32 %s153, 1
        %s5108 = smul.addr %s5107, 128
        %s5109 = scalar_lea.vmem [#allocation2], %s5108
        // Predicated region
        $region37: #{tpu_custom_call.1} parent=35 // pred_check
          %p5110 = pneg %p163
        $region38: #{tpu_custom_call.1} parent=35 // pred_check_branch
          %5112 = sbr.rel (%p5110) target = $region40
        $region39: #{tpu_custom_call.1} parent=35 // pred_region
          %s5113 = smul.u32 16, %s25
          %s5115 = ssub.s32 2048, 2048
          %5116 = vsyncadd %s5106, %s5115
          %s5117 = smul.addr %s5113, 2
          %s5118 = sadd.s32 %s24, %s5117
          %s5119 = smul.addr %s23, 32
          %s5120 = sadd.s32 %s5118, %s5119
          %s5121 = smul.addr %s5120, 64
          %s5122 = scalar_lea.hbm %s4, %s5121
          %s5123 = sshll.u32 %s5109, 4
          %s5124 = int_to_ptr.vmem [resolvable:$true] %s5123
          %5129 = dma.vmem_to_hbm [thread:$0]  %s5124, 2048, %s5122, %s5106, 64, 64, 4
        $region40: #{tpu_custom_call.1} parent=35 // pred_fallthru
          _
      $region36: #{tpu_custom_call.1} parent=5 // pred_fallthru
        _
      %p5130 = scmp.le.s32.totalorder 2, %s13
      // Predicated region
      $region41: #{tpu_custom_call.1} parent=5 // pred_check
        %p5131 = pneg %p5130
      $region42: #{tpu_custom_call.1} parent=5 // pred_check_branch
        %5133 = sbr.rel (%p5131) target = $region44
      $region43: #{tpu_custom_call.1} parent=5 // pred_region
        %s5134 = ssub.s32 %s13, 2
        // Predicated region
        $region45: #{tpu_custom_call.1} parent=43 // pred_check
          %p5135 = pneg %p169
        $region46: #{tpu_custom_call.1} parent=43 // pred_check_branch
          %5137 = sbr.rel (%p5135) target = $region48
        $region47: #{tpu_custom_call.1} parent=43 // pred_region
          %s5138 = sand.u32 %s154, 1
          %s5139 = scalar_lea.sflag [#allocation3], %s5138
          %s5140 = sand.u32 %s154, 1
          %s5141 = smul.addr %s5140, 128
          %s5142 = scalar_lea.vmem [#allocation2], %s5141
          %5143 = dma.done %s5139, 2048
        $region48: #{tpu_custom_call.1} parent=43 // pred_fallthru
          _
      $region44: #{tpu_custom_call.1} parent=5 // pred_fallthru
        _
    $region6: #{tpu_custom_call.1} parent=1 // loop_footer
      %s17 = sadd.s32 1, %s13
    $region7: #{tpu_custom_call.1} parent=1 // loop_footer_branch
      %12 = sbr.rel target = $region3
    $region8: #{tpu_custom_call.1} parent=1 // loop_exit
      _
    %5144 = vsyncpa [#allocation3], 1
    %s5145 = scalar_lea.sflag [#allocation3], 1
    %5146 = vsyncpa %s5145, 1

</llo_original>
